<compile_context>
chip_gen: v7x
topology: tpu7x:2x2x1
jax: 0.10.0
libtpu: 0.0.40
codegen_flags: <defaults>
</compile_context>

<pallas_src>
import functools
import math

import jax
import jax.numpy as jnp
from jax.experimental import pallas as pl
from jax.experimental.pallas import tpu as pltpu


# ------------------------------ kernel helpers -------------------------------

def _layer_norm(x, g, b, eps):
    mean = jnp.mean(x, axis=-1, keepdims=True)
    cen = x - mean
    var = jnp.mean(cen * cen, axis=-1, keepdims=True)
    return cen * jax.lax.rsqrt(var + eps) * g + b


def _attend(q, k, v, mask_ref, bt, l_q, l_kv, n_head, dh, scale):
    """Per-(batch-row, head) score / AV dots.  q,k,v are bf16 [bt*L(_kv), D]."""
    rows = []
    for b in range(bt):                               # static unroll, small bt
        qb = q[b * l_q:(b + 1) * l_q]
        kb = k[b * l_kv:(b + 1) * l_kv]
        vb = v[b * l_kv:(b + 1) * l_kv]
        mb = mask_ref[b]                              # [l_q, l_kv] additive, f32
        per_head = []
        for h in range(n_head):
            c0 = h * dh
            s = jax.lax.dot_general(qb[:, c0:c0 + dh], kb[:, c0:c0 + dh],
                                    (((1,), (1,)), ((), ())),
                                    preferred_element_type=jnp.float32)
            s = s * scale + mb
            s = s - jnp.max(s, axis=-1, keepdims=True)
            p = jnp.exp(s)
            p = p / jnp.sum(p, axis=-1, keepdims=True)          # exact divide
            per_head.append(jnp.dot(p.astype(jnp.bfloat16), vb[:, c0:c0 + dh],
                                    preferred_element_type=jnp.float32))
        rows.append(jnp.concatenate(per_head, axis=-1))
    return jnp.concatenate(rows, axis=0)              # [bt*l_q, D] f32


# ------------------------------ fused kernel ---------------------------------

def decoder_stack_kernel(x_ref, enc_ref, spad_ref, cpad_ref,
                         ln_g_ref, ln_b_ref,
                         a1_wqkv_ref, a1_bqkv_ref, a1_wo_ref, a1_bo_ref,
                         a2_wq_ref, a2_bq_ref, a2_wkv_ref, a2_bkv_ref,
                         a2_wo_ref, a2_bo_ref,
                         wu_ref, bu_ref, wd_ref, bd_ref,
                         nf_g_ref, nf_b_ref,
                         o_ref,
                         hs_ref, smask_ref, cmask_ref,
                         *, n_head, eps, bt, l_q, l_kv):
    layer = pl.program_id(1)
    n_layers = pl.num_programs(1)

    D = hs_ref.shape[-1]
    dh = D // n_head
    scale = 1.0 / math.sqrt(dh)
    bf16 = jnp.bfloat16

    # ---- once per batch block: init residual stream and masks (hoisted) ----
    @pl.when(layer == 0)
    def _init():
        hs_ref[...] = x_ref[...].astype(jnp.float32)
        row = jax.lax.broadcasted_iota(jnp.int32, (l_q, l_q), 0)
        col = jax.lax.broadcasted_iota(jnp.int32, (l_q, l_q), 1)
        causal = jnp.where(col > row, jnp.float32(-1e9), jnp.float32(0.0))
        smask_ref[...] = causal[None, :, :] + spad_ref[...]       # [bt, L, L]
        cmask_ref[...] = jnp.broadcast_to(cpad_ref[...], (bt, l_q, l_kv))

    hs = hs_ref[...]                                  # [bt*L, D] f32 residual
    ln_g = ln_g_ref[0]                                # [3, D] (attn1/attn2/ffn)
    ln_b = ln_b_ref[0]

    # --------------------- self attention (causal + padding) -----------------
    hn = _layer_norm(hs, ln_g[0:1], ln_b[0:1], eps).astype(bf16)
    qkv = (jnp.dot(hn, a1_wqkv_ref[0], preferred_element_type=jnp.float32)
           + a1_bqkv_ref[0]).astype(bf16)             # one [bt*L,D]x[D,3D] dot
    attn = _attend(qkv[:, :D], qkv[:, D:2 * D], qkv[:, 2 * D:],
                   smask_ref, bt, l_q, l_q, n_head, dh, scale)
    hs = hs + (jnp.dot(attn.astype(bf16), a1_wo_ref[0],
                       preferred_element_type=jnp.float32) + a1_bo_ref[0])

    # --------------------- cross attention (encoder padding) -----------------
    hn = _layer_norm(hs, ln_g[1:2], ln_b[1:2], eps).astype(bf16)
    q = (jnp.dot(hn, a2_wq_ref[0], preferred_element_type=jnp.float32)
         + a2_bq_ref[0]).astype(bf16)
    enc_bf = enc_ref[...].astype(bf16)                # [bt*Le, D]
    kv = (jnp.dot(enc_bf, a2_wkv_ref[0], preferred_element_type=jnp.float32)
          + a2_bkv_ref[0]).astype(bf16)               # one [bt*Le,D]x[D,2D] dot
    attn = _attend(q, kv[:, :D], kv[:, D:],
                   cmask_ref, bt, l_q, l_kv, n_head, dh, scale)
    hs = hs + (jnp.dot(attn.astype(bf16), a2_wo_ref[0],
                       preferred_element_type=jnp.float32) + a2_bo_ref[0])

    # ------------------------------- SiLU FFN --------------------------------
    hn = _layer_norm(hs, ln_g[2:3], ln_b[2:3], eps).astype(bf16)
    up = jnp.dot(hn, wu_ref[0], preferred_element_type=jnp.float32) + bu_ref[0]
    up = (up * jax.nn.sigmoid(up)).astype(bf16)
    hs = hs + (jnp.dot(up, wd_ref[0],
                       preferred_element_type=jnp.float32) + bd_ref[0])

    # TODO(synk): Dropout is identity in eval mode; no stochastic path implemented.
    hs_ref[...] = hs

    @pl.when(layer == n_layers - 1)
    def _finalize():
        out = _layer_norm(hs, nf_g_ref[...], nf_b_ref[...], eps)
        o_ref[...] = out.astype(o_ref.dtype)


# --------------------------------- wrapper ------------------------------------

def transformer_decoder(params, encoder_hidden_states, input_embedding,
                        input_padding_mask, encoder_padding_mask,
                        *, n_head, eps, batch_block=None):
    B, L, D = input_embedding.shape
    Le = encoder_hidden_states.shape[1]
    n_layers = params["ln_g"].shape[0]
    Dff = params["w_up"].shape[-1]

    bt = B if batch_block is None else batch_block
    assert B % bt == 0, "batch_block must divide batch"

    neg = jnp.float32(-1e9)
    if input_padding_mask is None:
        spad = jnp.zeros((B, 1, L), jnp.float32)
    else:
        spad = jnp.where(input_padding_mask, neg, 0.0).astype(jnp.float32).reshape(B, 1, L)
    if encoder_padding_mask is None:
        cpad = jnp.zeros((B, 1, Le), jnp.float32)
    else:
        cpad = jnp.where(encoder_padding_mask, neg, 0.0).astype(jnp.float32).reshape(B, 1, Le)

    # Flatten (B, L, D) -> (B*L, D) in the wrapper so the kernel sees 2-D,
    # lane-dense slabs and all projections are plain [Bt*L, D] MXU dots.
    x2 = input_embedding.reshape(B * L, D)
    enc2 = encoder_hidden_states.reshape(B * Le, D)

    per_batch2 = lambda i, l: (i, 0)
    per_batch3 = lambda i, l: (i, 0, 0)
    per_layer3 = lambda i, l: (l, 0, 0)
    const2 = lambda i, l: (0, 0)

    in_defs = [
        (x2,                     (bt * L, D),   per_batch2),   # input embedding
        (enc2,                   (bt * Le, D),  per_batch2),   # encoder states
        (spad,                   (bt, 1, L),    per_batch3),   # self key padding (additive)
        (cpad,                   (bt, 1, Le),   per_batch3),   # cross key padding (additive)
        (params["ln_g"],         (1, 3, D),     per_layer3),
        (params["ln_b"],         (1, 3, D),     per_layer3),
        (params["a1_wqkv"],      (1, D, 3 * D), per_layer3),   # bf16
        (params["a1_bqkv"],      (1, 1, 3 * D), per_layer3),
        (params["a1_wo"],        (1, D, D),     per_layer3),   # bf16
        (params["a1_bo"],        (1, 1, D),     per_layer3),
        (params["a2_wq"],        (1, D, D),     per_layer3),   # bf16
        (params["a2_bq"],        (1, 1, D),     per_layer3),
        (params["a2_wkv"],       (1, D, 2 * D), per_layer3),   # bf16
        (params["a2_bkv"],       (1, 1, 2 * D), per_layer3),
        (params["a2_wo"],        (1, D, D),     per_layer3),   # bf16
        (params["a2_bo"],        (1, 1, D),     per_layer3),
        (params["w_up"],         (1, D, Dff),   per_layer3),   # bf16
        (params["b_up"],         (1, 1, Dff),   per_layer3),
        (params["w_down"],       (1, Dff, D),   per_layer3),   # bf16
        (params["b_down"],       (1, 1, D),     per_layer3),
        (params["norm_g"],       (1, D),        const2),
        (params["norm_b"],       (1, D),        const2),
    ]
    operands = [a for a, _, _ in in_defs]
    in_specs = [pl.BlockSpec(s, m) for _, s, m in in_defs]

    # Explicit scoped-VMEM budget: double-buffered blocks + output + scratch + slack.
    block_bytes = sum(math.prod(s) * a.dtype.itemsize for a, s, _ in in_defs)
    block_bytes += math.prod((bt * L, D)) * input_embedding.dtype.itemsize
    scratch_bytes = 4 * (bt * L * D + bt * L * L + bt * L * Le)
    vmem_limit = int(min(100 << 20,
                         max(32 << 20, 2 * block_bytes + scratch_bytes + (8 << 20))))

    kernel = functools.partial(decoder_stack_kernel, n_head=n_head, eps=eps,
                               bt=bt, l_q=L, l_kv=Le)
    out = pl.pallas_call(
        kernel,
        out_shape=jax.ShapeDtypeStruct((B * L, D), input_embedding.dtype),
        grid=(B // bt, n_layers),
        in_specs=in_specs,
        out_specs=pl.BlockSpec((bt * L, D), per_batch2),
        scratch_shapes=[
            pltpu.VMEM((bt * L, D), jnp.float32),    # residual stream
            pltpu.VMEM((bt, L, L), jnp.float32),     # causal + self key padding
            pltpu.VMEM((bt, L, Le), jnp.float32),    # cross key padding, pre-broadcast
        ],
        compiler_params=pltpu.CompilerParams(
            dimension_semantics=("parallel", "arbitrary"),
            vmem_limit_bytes=vmem_limit),
    )(*operands)
    return out.reshape(B, L, D)


# --------------------------- parameter init -----------------------------------

def _init_linear(key, fan_in, fan_out):
    kw, kb = jax.random.split(key)
    bound = 1.0 / math.sqrt(fan_in)
    w = jax.random.uniform(kw, (fan_in, fan_out), jnp.float32, -bound, bound)
    b = jax.random.uniform(kb, (fan_out,), jnp.float32, -bound, bound)
    return w, b


def init_params(key, n_layers, d, ffn_ratio):
    dff = d * ffn_ratio
    names = ["ln_g", "ln_b", "a1_wqkv", "a1_bqkv", "a1_wo", "a1_bo",
             "a2_wq", "a2_bq", "a2_wkv", "a2_bkv", "a2_wo", "a2_bo",
             "w_up", "b_up", "w_down", "b_down"]
    P = {n: [] for n in names}
    for _ in range(n_layers):
        key, *ks = jax.random.split(key, 11)
        wq, bq = _init_linear(ks[0], d, d)
        wk, bk = _init_linear(ks[1], d, d)
        wv, bv = _init_linear(ks[2], d, d)
        wo, bo = _init_linear(ks[3], d, d)
        P["a1_wqkv"].append(jnp.concatenate([wq, wk, wv], axis=1))
        P["a1_bqkv"].append(jnp.concatenate([bq, bk, bv]).reshape(1, 3 * d))
        P["a1_wo"].append(wo); P["a1_bo"].append(bo.reshape(1, d))
        wq, bq = _init_linear(ks[4], d, d)
        wk, bk = _init_linear(ks[5], d, d)
        wv, bv = _init_linear(ks[6], d, d)
        wo, bo = _init_linear(ks[7], d, d)
        P["a2_wq"].append(wq); P["a2_bq"].append(bq.reshape(1, d))
        P["a2_wkv"].append(jnp.concatenate([wk, wv], axis=1))
        P["a2_bkv"].append(jnp.concatenate([bk, bv]).reshape(1, 2 * d))
        P["a2_wo"].append(wo); P["a2_bo"].append(bo.reshape(1, d))
        wu, bu = _init_linear(ks[8], d, dff)
        wd, bd = _init_linear(ks[9], dff, d)
        P["w_up"].append(wu); P["b_up"].append(bu.reshape(1, dff))
        P["w_down"].append(wd); P["b_down"].append(bd.reshape(1, d))
        P["ln_g"].append(jnp.ones((3, d), jnp.float32))
        P["ln_b"].append(jnp.zeros((3, d), jnp.float32))
    params = {k: jnp.stack(v) for k, v in P.items()}
    # Stream matmul weights as bf16 (biases / LayerNorm params stay f32).
    for k in ["a1_wqkv", "a1_wo", "a2_wq", "a2_wkv", "a2_wo", "w_up", "w_down"]:
        params[k] = params[k].astype(jnp.bfloat16)
    params["norm_g"] = jnp.ones((1, d), jnp.float32)
    params["norm_b"] = jnp.zeros((1, d), jnp.float32)
    return params


# -------------------------- pure-JAX reference --------------------------------

def reference_forward(params, enc, x, ipad, epad, n_head, eps):
    f32 = jnp.float32

    def ln(v, g, b):
        m = v.mean(-1, keepdims=True)
        s = ((v - m) ** 2).mean(-1, keepdims=True)
        return (v - m) / jnp.sqrt(s + eps) * g + b

    def split_heads(t, B, Lx, D):
        dh = D // n_head
        return t.reshape(B, Lx, n_head, dh).transpose(0, 2, 1, 3)

    def attend(q, k, v, mask):
        dh = q.shape[-1]
        s = jnp.einsum('bhqd,bhkd->bhqk', q, k) / math.sqrt(dh) + mask[:, None]
        p = jax.nn.softmax(s, axis=-1)
        o = jnp.einsum('bhqk,bhkd->bhqd', p, v)
        B, H, Lq, _ = o.shape
        return o.transpose(0, 2, 1, 3).reshape(B, Lq, H * dh)

    B, L, D = x.shape
    Le = enc.shape[1]
    causal = jnp.where(jnp.triu(jnp.ones((L, L)), 1) > 0, -1e9, 0.0)
    smask = causal[None] + jnp.where(ipad, -1e9, 0.0)[:, None, :]
    cmask = jnp.where(epad, -1e9, 0.0)[:, None, :]

    hs = x
    for i in range(params["ln_g"].shape[0]):
        hn = ln(hs, params["ln_g"][i, 0], params["ln_b"][i, 0])
        qkv = hn @ params["a1_wqkv"][i].astype(f32) + params["a1_bqkv"][i, 0]
        q, k, v = qkv[..., :D], qkv[..., D:2 * D], qkv[..., 2 * D:]
        o = attend(split_heads(q, B, L, D), split_heads(k, B, L, D),
                   split_heads(v, B, L, D), smask)
        hs = hs + o @ params["a1_wo"][i].astype(f32) + params["a1_bo"][i, 0]

        hn = ln(hs, params["ln_g"][i, 1], params["ln_b"][i, 1])
        q = hn @ params["a2_wq"][i].astype(f32) + params["a2_bq"][i, 0]
        kv = enc @ params["a2_wkv"][i].astype(f32) + params["a2_bkv"][i, 0]
        k, v = kv[..., :D], kv[..., D:]
        o = attend(split_heads(q, B, L, D), split_heads(k, B, Le, D),
                   split_heads(v, B, Le, D), cmask)
        hs = hs + o @ params["a2_wo"][i].astype(f32) + params["a2_bo"][i, 0]

        hn = ln(hs, params["ln_g"][i, 2], params["ln_b"][i, 2])
        up = hn @ params["w_up"][i].astype(f32) + params["b_up"][i, 0]
        up = up * jax.nn.sigmoid(up)
        hs = hs + up @ params["w_down"][i].astype(f32) + params["b_down"][i, 0]
    return ln(hs, params["norm_g"][0], params["norm_b"][0])


# ----------------------------------- main --------------------------------------

if __name__ == "__main__":
    # config: n_embd=32, n_head=4, ffn_ratio=4, n_decoder_layer=2,
    #         norm_eps=1e-5, dropout=0.0 (eval)
    B, L, Le, D = 2, 8, 8, 32
    n_head, ffn_ratio, n_layers, eps = 4, 4, 2, 1e-5

    key = jax.random.PRNGKey(0)
    key, k_enc, k_in, k_p = jax.random.split(key, 4)

    encoder_hidden_states = jax.random.normal(k_enc, (B, Le, D), jnp.float32)
    input_embedding = jax.random.normal(k_in, (B, L, D), jnp.float32)

    # padding masks: True = padded position
    input_padding_mask = jnp.zeros((B, L), dtype=bool).at[1, -1].set(True)
    encoder_padding_mask = jnp.zeros((B, Le), dtype=bool).at[1, -2:].set(True)

    params = init_params(k_p, n_layers, D, ffn_ratio)

    fwd = jax.jit(functools.partial(transformer_decoder, n_head=n_head, eps=eps))
    out = fwd(params, encoder_hidden_states, input_embedding,
              input_padding_mask, encoder_padding_mask)
    out = jax.block_until_ready(out)

    assert out.shape == (B, L, D)
    assert bool(jnp.all(jnp.isfinite(out)))

    ref = reference_forward(params, encoder_hidden_states, input_embedding,
                            input_padding_mask, encoder_padding_mask, n_head, eps)
    # bf16 activation/weight streaming inside the kernel vs. f32 reference:
    # expected relative error ~0.5%; 5e-2 absolute tolerance on O(1) outputs.
    max_err = float(jnp.max(jnp.abs(out - ref)))
    assert max_err < 5e-2, f"mismatch vs reference: {max_err}"

    print("KERNEL_OK")
</pallas_src>

<mosaic_0001>
module attributes {stable_mosaic.version = 11 : i64} {
  func.func @decoder_stack_kernel(%arg0: i32, %arg1: i32, %arg2: memref<16x32xf32, #tpu.memory_space<vmem>>, %arg3: memref<16x32xf32, #tpu.memory_space<vmem>>, %arg4: memref<2x1x8xf32, #tpu.memory_space<vmem>>, %arg5: memref<2x1x8xf32, #tpu.memory_space<vmem>>, %arg6: memref<1x3x32xf32, #tpu.memory_space<vmem>>, %arg7: memref<1x3x32xf32, #tpu.memory_space<vmem>>, %arg8: memref<1x32x96xbf16, #tpu.memory_space<vmem>>, %arg9: memref<1x1x96xf32, #tpu.memory_space<vmem>>, %arg10: memref<1x32x32xbf16, #tpu.memory_space<vmem>>, %arg11: memref<1x1x32xf32, #tpu.memory_space<vmem>>, %arg12: memref<1x32x32xbf16, #tpu.memory_space<vmem>>, %arg13: memref<1x1x32xf32, #tpu.memory_space<vmem>>, %arg14: memref<1x32x64xbf16, #tpu.memory_space<vmem>>, %arg15: memref<1x1x64xf32, #tpu.memory_space<vmem>>, %arg16: memref<1x32x32xbf16, #tpu.memory_space<vmem>>, %arg17: memref<1x1x32xf32, #tpu.memory_space<vmem>>, %arg18: memref<1x32x128xbf16, #tpu.memory_space<vmem>>, %arg19: memref<1x1x128xf32, #tpu.memory_space<vmem>>, %arg20: memref<1x128x32xbf16, #tpu.memory_space<vmem>>, %arg21: memref<1x1x32xf32, #tpu.memory_space<vmem>>, %arg22: memref<1x32xf32, #tpu.memory_space<vmem>>, %arg23: memref<1x32xf32, #tpu.memory_space<vmem>>, %arg24: memref<16x32xf32, #tpu.memory_space<vmem>>, %arg25: memref<16x32xf32, #tpu.memory_space<vmem>>, %arg26: memref<2x8x8xf32, #tpu.memory_space<vmem>>, %arg27: memref<2x8x8xf32, #tpu.memory_space<vmem>>) attributes {dimension_semantics = [#tpu.dimension_semantics<parallel>, #tpu.dimension_semantics<arbitrary>], iteration_bounds = array<i64: 1, 2>, scalar_prefetch = 0 : i64, scratch_operands = 3 : i64, tpu.core_type = #tpu.core_type<tc>, window_params = [{transform_indices = @transform_0, window_bounds = array<i64: 16, 32>}, {transform_indices = @transform_1, window_bounds = array<i64: 16, 32>}, {transform_indices = @transform_2, window_bounds = array<i64: 2, 1, 8>}, {transform_indices = @transform_3, window_bounds = array<i64: 2, 1, 8>}, {transform_indices = @transform_4, window_bounds = array<i64: 1, 3, 32>}, {transform_indices = @transform_5, window_bounds = array<i64: 1, 3, 32>}, {transform_indices = @transform_6, window_bounds = array<i64: 1, 32, 96>}, {transform_indices = @transform_7, window_bounds = array<i64: 1, 1, 96>}, {transform_indices = @transform_8, window_bounds = array<i64: 1, 32, 32>}, {transform_indices = @transform_9, window_bounds = array<i64: 1, 1, 32>}, {transform_indices = @transform_10, window_bounds = array<i64: 1, 32, 32>}, {transform_indices = @transform_11, window_bounds = array<i64: 1, 1, 32>}, {transform_indices = @transform_12, window_bounds = array<i64: 1, 32, 64>}, {transform_indices = @transform_13, window_bounds = array<i64: 1, 1, 64>}, {transform_indices = @transform_14, window_bounds = array<i64: 1, 32, 32>}, {transform_indices = @transform_15, window_bounds = array<i64: 1, 1, 32>}, {transform_indices = @transform_16, window_bounds = array<i64: 1, 32, 128>}, {transform_indices = @transform_17, window_bounds = array<i64: 1, 1, 128>}, {transform_indices = @transform_18, window_bounds = array<i64: 1, 128, 32>}, {transform_indices = @transform_19, window_bounds = array<i64: 1, 1, 32>}, {pipeline_mode = #tpu.pipeline_mode<synchronous>, transform_indices = @transform_20, window_bounds = array<i64: 1, 32>}, {pipeline_mode = #tpu.pipeline_mode<synchronous>, transform_indices = @transform_21, window_bounds = array<i64: 1, 32>}, {transform_indices = @transform_22, window_bounds = array<i64: 16, 32>}]} {
    %c0_i32 = arith.constant 0 : i32
    %0 = arith.cmpi eq, %arg1, %c0_i32 : i32
    %1 = arith.extui %0 : i1 to i32
    %c0_i32_0 = arith.constant 0 : i32
    %2 = arith.cmpi ne, %1, %c0_i32_0 : i32
    scf.if %2 {
      %c0_168 = arith.constant 0 : index
      %c0_169 = arith.constant 0 : index
      %466 = vector.load %arg2[%c0_168, %c0_169] : memref<16x32xf32, #tpu.memory_space<vmem>>, vector<16x32xf32>
      %c0_170 = arith.constant 0 : index
      %c0_171 = arith.constant 0 : index
      %467 = vector.load %arg25[%c0_170, %c0_171] : memref<16x32xf32, #tpu.memory_space<vmem>>, vector<16x32xf32>
      tpu.vector_store %arg25[%c0_170, %c0_171], %466 {strides = array<i32>} : memref<16x32xf32, #tpu.memory_space<vmem>>, vector<16x32xf32>,
      %468 = tpu.iota {dimensions = array<i32: 0>} : vector<8x8xi32>
      %469 = tpu.iota {dimensions = array<i32: 1>} : vector<8x8xi32>
      %470 = arith.cmpi sgt, %469, %468 : vector<8x8xi32>
      %cst_172 = arith.constant -1.000000e+09 : f32
      %cst_173 = arith.constant 0.000000e+00 : f32
      %471 = vector.broadcast %cst_172 : f32 to vector<8x8xf32>
      %472 = vector.broadcast %cst_173 : f32 to vector<8x8xf32>
      %473 = arith.select %470, %471, %472 : vector<8x8xi1>, vector<8x8xf32>
      %474 = vector.shape_cast %473 : vector<8x8xf32> to vector<1x8x8xf32>
      %c0_174 = arith.constant 0 : index
      %c0_175 = arith.constant 0 : index
      %c0_176 = arith.constant 0 : index
      %475 = vector.load %arg4[%c0_174, %c0_175, %c0_176] : memref<2x1x8xf32, #tpu.memory_space<vmem>>, vector<2x1x8xf32>
      %476 = vector.broadcast %474 : vector<1x8x8xf32> to vector<2x8x8xf32>
      %477 = vector.broadcast %475 : vector<2x1x8xf32> to vector<2x8x8xf32>
      %478 = arith.addf %476, %477 : vector<2x8x8xf32>
      %c0_177 = arith.constant 0 : index
      %c0_178 = arith.constant 0 : index
      %c0_179 = arith.constant 0 : index
      %479 = vector.load %arg26[%c0_177, %c0_178, %c0_179] : memref<2x8x8xf32, #tpu.memory_space<vmem>>, vector<2x8x8xf32>
      tpu.vector_store %arg26[%c0_177, %c0_178, %c0_179], %478 {strides = array<i32>} : memref<2x8x8xf32, #tpu.memory_space<vmem>>, vector<2x8x8xf32>,
      %c0_180 = arith.constant 0 : index
      %c0_181 = arith.constant 0 : index
      %c0_182 = arith.constant 0 : index
      %480 = vector.load %arg5[%c0_180, %c0_181, %c0_182] : memref<2x1x8xf32, #tpu.memory_space<vmem>>, vector<2x1x8xf32>
      %481 = vector.shape_cast %480 : vector<2x1x8xf32> to vector<2x1x8xf32>
      %482 = vector.broadcast %481 : vector<2x1x8xf32> to vector<2x8x8xf32>
      %c0_183 = arith.constant 0 : index
      %c0_184 = arith.constant 0 : index
      %c0_185 = arith.constant 0 : index
      %483 = vector.load %arg27[%c0_183, %c0_184, %c0_185] : memref<2x8x8xf32, #tpu.memory_space<vmem>>, vector<2x8x8xf32>
      tpu.vector_store %arg27[%c0_183, %c0_184, %c0_185], %482 {strides = array<i32>} : memref<2x8x8xf32, #tpu.memory_space<vmem>>, vector<2x8x8xf32>,
    } else {
    }
    %c0 = arith.constant 0 : index
    %c0_1 = arith.constant 0 : index
    %3 = vector.load %arg25[%c0, %c0_1] : memref<16x32xf32, #tpu.memory_space<vmem>>, vector<16x32xf32>
    %c0_2 = arith.constant 0 : index
    %c0_3 = arith.constant 0 : index
    %c0_4 = arith.constant 0 : index
    %4 = vector.load %arg6[%c0_2, %c0_3, %c0_4] : memref<1x3x32xf32, #tpu.memory_space<vmem>>, vector<1x3x32xf32>
    %5 = vector.shape_cast %4 : vector<1x3x32xf32> to vector<3x32xf32>
    %c0_5 = arith.constant 0 : index
    %c0_6 = arith.constant 0 : index
    %c0_7 = arith.constant 0 : index
    %6 = vector.load %arg7[%c0_5, %c0_6, %c0_7] : memref<1x3x32xf32, #tpu.memory_space<vmem>>, vector<1x3x32xf32>
    %7 = vector.shape_cast %6 : vector<1x3x32xf32> to vector<3x32xf32>
    %8 = vector.extract_strided_slice %5 {offsets = [0, 0], sizes = [1, 32], strides = [1, 1]} : vector<3x32xf32> to vector<1x32xf32>
    %9 = vector.extract_strided_slice %7 {offsets = [0, 0], sizes = [1, 32], strides = [1, 1]} : vector<3x32xf32> to vector<1x32xf32>
    %cst = arith.constant dense<0.000000e+00> : vector<16xf32>
    %10 = vector.multi_reduction <add>, %3, %cst [1] : vector<16x32xf32> to vector<16xf32>
    %11 = vector.shape_cast %10 : vector<16xf32> to vector<16x1xf32>
    %cst_8 = arith.constant 3.200000e+01 : f32
    %12 = vector.broadcast %cst_8 : f32 to vector<16x1xf32>
    %13 = arith.divf %11, %12 : vector<16x1xf32>
    %14 = vector.broadcast %13 : vector<16x1xf32> to vector<16x32xf32>
    %15 = arith.subf %3, %14 : vector<16x32xf32>
    %16 = arith.mulf %15, %15 : vector<16x32xf32>
    %cst_9 = arith.constant dense<0.000000e+00> : vector<16xf32>
    %17 = vector.multi_reduction <add>, %16, %cst_9 [1] : vector<16x32xf32> to vector<16xf32>
    %18 = vector.shape_cast %17 : vector<16xf32> to vector<16x1xf32>
    %cst_10 = arith.constant 3.200000e+01 : f32
    %19 = vector.broadcast %cst_10 : f32 to vector<16x1xf32>
    %20 = arith.divf %18, %19 : vector<16x1xf32>
    %cst_11 = arith.constant 9.99999974E-6 : f32
    %21 = vector.broadcast %cst_11 : f32 to vector<16x1xf32>
    %22 = arith.addf %20, %21 : vector<16x1xf32>
    %23 = math.rsqrt %22 : vector<16x1xf32>
    %24 = vector.broadcast %23 : vector<16x1xf32> to vector<16x32xf32>
    %25 = arith.mulf %15, %24 : vector<16x32xf32>
    %26 = vector.broadcast %8 : vector<1x32xf32> to vector<16x32xf32>
    %27 = arith.mulf %25, %26 : vector<16x32xf32>
    %28 = vector.broadcast %9 : vector<1x32xf32> to vector<16x32xf32>
    %29 = arith.addf %27, %28 : vector<16x32xf32>
    %30 = arith.truncf %29 : vector<16x32xf32> to vector<16x32xbf16>
    %c0_12 = arith.constant 0 : index
    %c0_13 = arith.constant 0 : index
    %c0_14 = arith.constant 0 : index
    %31 = vector.load %arg8[%c0_12, %c0_13, %c0_14] : memref<1x32x96xbf16, #tpu.memory_space<vmem>>, vector<1x32x96xbf16>
    %32 = vector.shape_cast %31 : vector<1x32x96xbf16> to vector<32x96xbf16>
    %cst_15 = arith.constant dense<0.000000e+00> : vector<16x96xf32>
    %33 = tpu.matmul %30, %32, %cst_15 {dimension_numbers = #tpu.dot_dimension_numbers<[1], [0], [0], [1], [0, 0, 1, 1], [], []>} : vector<16x32xbf16>, vector<32x96xbf16>, vector<16x96xf32> -> vector<16x96xf32>
    %c0_16 = arith.constant 0 : index
    %c0_17 = arith.constant 0 : index
    %c0_18 = arith.constant 0 : index
    %34 = vector.load %arg9[%c0_16, %c0_17, %c0_18] : memref<1x1x96xf32, #tpu.memory_space<vmem>>, vector<1x1x96xf32>
    %35 = vector.shape_cast %34 : vector<1x1x96xf32> to vector<1x96xf32>
    %36 = vector.broadcast %35 : vector<1x96xf32> to vector<16x96xf32>
    %37 = arith.addf %33, %36 : vector<16x96xf32>
    %38 = arith.truncf %37 : vector<16x96xf32> to vector<16x96xbf16>
    %39 = vector.extract_strided_slice %38 {offsets = [0, 0], sizes = [16, 32], strides = [1, 1]} : vector<16x96xbf16> to vector<16x32xbf16>
    %40 = vector.extract_strided_slice %38 {offsets = [0, 32], sizes = [16, 32], strides = [1, 1]} : vector<16x96xbf16> to vector<16x32xbf16>
    %41 = vector.extract_strided_slice %38 {offsets = [0, 64], sizes = [16, 32], strides = [1, 1]} : vector<16x96xbf16> to vector<16x32xbf16>
    %42 = vector.extract_strided_slice %39 {offsets = [0, 0], sizes = [8, 32], strides = [1, 1]} : vector<16x32xbf16> to vector<8x32xbf16>
    %43 = vector.extract_strided_slice %40 {offsets = [0, 0], sizes = [8, 32], strides = [1, 1]} : vector<16x32xbf16> to vector<8x32xbf16>
    %44 = vector.extract_strided_slice %41 {offsets = [0, 0], sizes = [8, 32], strides = [1, 1]} : vector<16x32xbf16> to vector<8x32xbf16>
    %c0_19 = arith.constant 0 : index
    %c0_20 = arith.constant 0 : index
    %c0_21 = arith.constant 0 : index
    %45 = vector.load %arg26[%c0_19, %c0_20, %c0_21] : memref<2x8x8xf32, #tpu.memory_space<vmem>>, vector<1x8x8xf32>
    %46 = vector.shape_cast %45 : vector<1x8x8xf32> to vector<8x8xf32>
    %47 = vector.extract_strided_slice %42 {offsets = [0, 0], sizes = [8, 8], strides = [1, 1]} : vector<8x32xbf16> to vector<8x8xbf16>
    %48 = vector.extract_strided_slice %43 {offsets = [0, 0], sizes = [8, 8], strides = [1, 1]} : vector<8x32xbf16> to vector<8x8xbf16>
    %cst_22 = arith.constant dense<0.000000e+00> : vector<8x8xf32>
    %49 = tpu.matmul %47, %48, %cst_22 {dimension_numbers = #tpu.dot_dimension_numbers<[1], [1], [0], [0], [0, 0, 1, 0], [], []>} : vector<8x8xbf16>, vector<8x8xbf16>, vector<8x8xf32> -> vector<8x8xf32>
    %cst_23 = arith.constant 0.353553385 : f32
    %50 = vector.broadcast %cst_23 : f32 to vector<8x8xf32>
    %51 = arith.mulf %49, %50 : vector<8x8xf32>
    %52 = arith.addf %51, %46 : vector<8x8xf32>
    %cst_24 = arith.constant dense<0xFF800000> : vector<8xf32>
    %53 = vector.multi_reduction <maximumf>, %52, %cst_24 [1] : vector<8x8xf32> to vector<8xf32>
    %54 = vector.shape_cast %53 : vector<8xf32> to vector<8x1xf32>
    %55 = vector.broadcast %54 : vector<8x1xf32> to vector<8x8xf32>
    %56 = arith.subf %52, %55 : vector<8x8xf32>
    %57 = math.exp %56 : vector<8x8xf32>
    %cst_25 = arith.constant dense<0.000000e+00> : vector<8xf32>
    %58 = vector.multi_reduction <add>, %57, %cst_25 [1] : vector<8x8xf32> to vector<8xf32>
    %59 = vector.shape_cast %58 : vector<8xf32> to vector<8x1xf32>
    %60 = vector.broadcast %59 : vector<8x1xf32> to vector<8x8xf32>
    %61 = arith.divf %57, %60 : vector<8x8xf32>
    %62 = arith.truncf %61 : vector<8x8xf32> to vector<8x8xbf16>
    %63 = vector.extract_strided_slice %44 {offsets = [0, 0], sizes = [8, 8], strides = [1, 1]} : vector<8x32xbf16> to vector<8x8xbf16>
    %cst_26 = arith.constant dense<0.000000e+00> : vector<8x8xf32>
    %64 = tpu.matmul %62, %63, %cst_26 {dimension_numbers = #tpu.dot_dimension_numbers<[1], [0], [0], [1], [0, 0, 1, 1], [], []>} : vector<8x8xbf16>, vector<8x8xbf16>, vector<8x8xf32> -> vector<8x8xf32>
    %65 = vector.extract_strided_slice %42 {offsets = [0, 8], sizes = [8, 8], strides = [1, 1]} : vector<8x32xbf16> to vector<8x8xbf16>
    %66 = vector.extract_strided_slice %43 {offsets = [0, 8], sizes = [8, 8], strides = [1, 1]} : vector<8x32xbf16> to vector<8x8xbf16>
    %cst_27 = arith.constant dense<0.000000e+00> : vector<8x8xf32>
    %67 = tpu.matmul %65, %66, %cst_27 {dimension_numbers = #tpu.dot_dimension_numbers<[1], [1], [0], [0], [0, 0, 1, 0], [], []>} : vector<8x8xbf16>, vector<8x8xbf16>, vector<8x8xf32> -> vector<8x8xf32>
    %cst_28 = arith.constant 0.353553385 : f32
    %68 = vector.broadcast %cst_28 : f32 to vector<8x8xf32>
    %69 = arith.mulf %67, %68 : vector<8x8xf32>
    %70 = arith.addf %69, %46 : vector<8x8xf32>
    %cst_29 = arith.constant dense<0xFF800000> : vector<8xf32>
    %71 = vector.multi_reduction <maximumf>, %70, %cst_29 [1] : vector<8x8xf32> to vector<8xf32>
    %72 = vector.shape_cast %71 : vector<8xf32> to vector<8x1xf32>
    %73 = vector.broadcast %72 : vector<8x1xf32> to vector<8x8xf32>
    %74 = arith.subf %70, %73 : vector<8x8xf32>
    %75 = math.exp %74 : vector<8x8xf32>
    %cst_30 = arith.constant dense<0.000000e+00> : vector<8xf32>
    %76 = vector.multi_reduction <add>, %75, %cst_30 [1] : vector<8x8xf32> to vector<8xf32>
    %77 = vector.shape_cast %76 : vector<8xf32> to vector<8x1xf32>
    %78 = vector.broadcast %77 : vector<8x1xf32> to vector<8x8xf32>
    %79 = arith.divf %75, %78 : vector<8x8xf32>
    %80 = arith.truncf %79 : vector<8x8xf32> to vector<8x8xbf16>
    %81 = vector.extract_strided_slice %44 {offsets = [0, 8], sizes = [8, 8], strides = [1, 1]} : vector<8x32xbf16> to vector<8x8xbf16>
    %cst_31 = arith.constant dense<0.000000e+00> : vector<8x8xf32>
    %82 = tpu.matmul %80, %81, %cst_31 {dimension_numbers = #tpu.dot_dimension_numbers<[1], [0], [0], [1], [0, 0, 1, 1], [], []>} : vector<8x8xbf16>, vector<8x8xbf16>, vector<8x8xf32> -> vector<8x8xf32>
    %83 = vector.extract_strided_slice %42 {offsets = [0, 16], sizes = [8, 8], strides = [1, 1]} : vector<8x32xbf16> to vector<8x8xbf16>
    %84 = vector.extract_strided_slice %43 {offsets = [0, 16], sizes = [8, 8], strides = [1, 1]} : vector<8x32xbf16> to vector<8x8xbf16>
    %cst_32 = arith.constant dense<0.000000e+00> : vector<8x8xf32>
    %85 = tpu.matmul %83, %84, %cst_32 {dimension_numbers = #tpu.dot_dimension_numbers<[1], [1], [0], [0], [0, 0, 1, 0], [], []>} : vector<8x8xbf16>, vector<8x8xbf16>, vector<8x8xf32> -> vector<8x8xf32>
    %cst_33 = arith.constant 0.353553385 : f32
    %86 = vector.broadcast %cst_33 : f32 to vector<8x8xf32>
    %87 = arith.mulf %85, %86 : vector<8x8xf32>
    %88 = arith.addf %87, %46 : vector<8x8xf32>
    %cst_34 = arith.constant dense<0xFF800000> : vector<8xf32>
    %89 = vector.multi_reduction <maximumf>, %88, %cst_34 [1] : vector<8x8xf32> to vector<8xf32>
    %90 = vector.shape_cast %89 : vector<8xf32> to vector<8x1xf32>
    %91 = vector.broadcast %90 : vector<8x1xf32> to vector<8x8xf32>
    %92 = arith.subf %88, %91 : vector<8x8xf32>
    %93 = math.exp %92 : vector<8x8xf32>
    %cst_35 = arith.constant dense<0.000000e+00> : vector<8xf32>
    %94 = vector.multi_reduction <add>, %93, %cst_35 [1] : vector<8x8xf32> to vector<8xf32>
    %95 = vector.shape_cast %94 : vector<8xf32> to vector<8x1xf32>
    %96 = vector.broadcast %95 : vector<8x1xf32> to vector<8x8xf32>
    %97 = arith.divf %93, %96 : vector<8x8xf32>
    %98 = arith.truncf %97 : vector<8x8xf32> to vector<8x8xbf16>
    %99 = vector.extract_strided_slice %44 {offsets = [0, 16], sizes = [8, 8], strides = [1, 1]} : vector<8x32xbf16> to vector<8x8xbf16>
    %cst_36 = arith.constant dense<0.000000e+00> : vector<8x8xf32>
    %100 = tpu.matmul %98, %99, %cst_36 {dimension_numbers = #tpu.dot_dimension_numbers<[1], [0], [0], [1], [0, 0, 1, 1], [], []>} : vector<8x8xbf16>, vector<8x8xbf16>, vector<8x8xf32> -> vector<8x8xf32>
    %101 = vector.extract_strided_slice %42 {offsets = [0, 24], sizes = [8, 8], strides = [1, 1]} : vector<8x32xbf16> to vector<8x8xbf16>
    %102 = vector.extract_strided_slice %43 {offsets = [0, 24], sizes = [8, 8], strides = [1, 1]} : vector<8x32xbf16> to vector<8x8xbf16>
    %cst_37 = arith.constant dense<0.000000e+00> : vector<8x8xf32>
    %103 = tpu.matmul %101, %102, %cst_37 {dimension_numbers = #tpu.dot_dimension_numbers<[1], [1], [0], [0], [0, 0, 1, 0], [], []>} : vector<8x8xbf16>, vector<8x8xbf16>, vector<8x8xf32> -> vector<8x8xf32>
    %cst_38 = arith.constant 0.353553385 : f32
    %104 = vector.broadcast %cst_38 : f32 to vector<8x8xf32>
    %105 = arith.mulf %103, %104 : vector<8x8xf32>
    %106 = arith.addf %105, %46 : vector<8x8xf32>
    %cst_39 = arith.constant dense<0xFF800000> : vector<8xf32>
    %107 = vector.multi_reduction <maximumf>, %106, %cst_39 [1] : vector<8x8xf32> to vector<8xf32>
    %108 = vector.shape_cast %107 : vector<8xf32> to vector<8x1xf32>
    %109 = vector.broadcast %108 : vector<8x1xf32> to vector<8x8xf32>
    %110 = arith.subf %106, %109 : vector<8x8xf32>
    %111 = math.exp %110 : vector<8x8xf32>
    %cst_40 = arith.constant dense<0.000000e+00> : vector<8xf32>
    %112 = vector.multi_reduction <add>, %111, %cst_40 [1] : vector<8x8xf32> to vector<8xf32>
    %113 = vector.shape_cast %112 : vector<8xf32> to vector<8x1xf32>
    %114 = vector.broadcast %113 : vector<8x1xf32> to vector<8x8xf32>
    %115 = arith.divf %111, %114 : vector<8x8xf32>
    %116 = arith.truncf %115 : vector<8x8xf32> to vector<8x8xbf16>
    %117 = vector.extract_strided_slice %44 {offsets = [0, 24], sizes = [8, 8], strides = [1, 1]} : vector<8x32xbf16> to vector<8x8xbf16>
    %cst_41 = arith.constant dense<0.000000e+00> : vector<8x8xf32>
    %118 = tpu.matmul %116, %117, %cst_41 {dimension_numbers = #tpu.dot_dimension_numbers<[1], [0], [0], [1], [0, 0, 1, 1], [], []>} : vector<8x8xbf16>, vector<8x8xbf16>, vector<8x8xf32> -> vector<8x8xf32>
    %119 = tpu.concatenate %64, %82, %100, %118 in 1 : vector<8x8xf32>, vector<8x8xf32>, vector<8x8xf32>, vector<8x8xf32> -> vector<8x32xf32>
    %120 = vector.extract_strided_slice %39 {offsets = [8, 0], sizes = [8, 32], strides = [1, 1]} : vector<16x32xbf16> to vector<8x32xbf16>
    %121 = vector.extract_strided_slice %40 {offsets = [8, 0], sizes = [8, 32], strides = [1, 1]} : vector<16x32xbf16> to vector<8x32xbf16>
    %122 = vector.extract_strided_slice %41 {offsets = [8, 0], sizes = [8, 32], strides = [1, 1]} : vector<16x32xbf16> to vector<8x32xbf16>
    %c1 = arith.constant 1 : index
    %c0_42 = arith.constant 0 : index
    %c0_43 = arith.constant 0 : index
    %123 = vector.load %arg26[%c1, %c0_42, %c0_43] : memref<2x8x8xf32, #tpu.memory_space<vmem>>, vector<1x8x8xf32>
    %124 = vector.shape_cast %123 : vector<1x8x8xf32> to vector<8x8xf32>
    %125 = vector.extract_strided_slice %120 {offsets = [0, 0], sizes = [8, 8], strides = [1, 1]} : vector<8x32xbf16> to vector<8x8xbf16>
    %126 = vector.extract_strided_slice %121 {offsets = [0, 0], sizes = [8, 8], strides = [1, 1]} : vector<8x32xbf16> to vector<8x8xbf16>
    %cst_44 = arith.constant dense<0.000000e+00> : vector<8x8xf32>
    %127 = tpu.matmul %125, %126, %cst_44 {dimension_numbers = #tpu.dot_dimension_numbers<[1], [1], [0], [0], [0, 0, 1, 0], [], []>} : vector<8x8xbf16>, vector<8x8xbf16>, vector<8x8xf32> -> vector<8x8xf32>
    %cst_45 = arith.constant 0.353553385 : f32
    %128 = vector.broadcast %cst_45 : f32 to vector<8x8xf32>
    %129 = arith.mulf %127, %128 : vector<8x8xf32>
    %130 = arith.addf %129, %124 : vector<8x8xf32>
    %cst_46 = arith.constant dense<0xFF800000> : vector<8xf32>
    %131 = vector.multi_reduction <maximumf>, %130, %cst_46 [1] : vector<8x8xf32> to vector<8xf32>
    %132 = vector.shape_cast %131 : vector<8xf32> to vector<8x1xf32>
    %133 = vector.broadcast %132 : vector<8x1xf32> to vector<8x8xf32>
    %134 = arith.subf %130, %133 : vector<8x8xf32>
    %135 = math.exp %134 : vector<8x8xf32>
    %cst_47 = arith.constant dense<0.000000e+00> : vector<8xf32>
    %136 = vector.multi_reduction <add>, %135, %cst_47 [1] : vector<8x8xf32> to vector<8xf32>
    %137 = vector.shape_cast %136 : vector<8xf32> to vector<8x1xf32>
    %138 = vector.broadcast %137 : vector<8x1xf32> to vector<8x8xf32>
    %139 = arith.divf %135, %138 : vector<8x8xf32>
    %140 = arith.truncf %139 : vector<8x8xf32> to vector<8x8xbf16>
    %141 = vector.extract_strided_slice %122 {offsets = [0, 0], sizes = [8, 8], strides = [1, 1]} : vector<8x32xbf16> to vector<8x8xbf16>
    %cst_48 = arith.constant dense<0.000000e+00> : vector<8x8xf32>
    %142 = tpu.matmul %140, %141, %cst_48 {dimension_numbers = #tpu.dot_dimension_numbers<[1], [0], [0], [1], [0, 0, 1, 1], [], []>} : vector<8x8xbf16>, vector<8x8xbf16>, vector<8x8xf32> -> vector<8x8xf32>
    %143 = vector.extract_strided_slice %120 {offsets = [0, 8], sizes = [8, 8], strides = [1, 1]} : vector<8x32xbf16> to vector<8x8xbf16>
    %144 = vector.extract_strided_slice %121 {offsets = [0, 8], sizes = [8, 8], strides = [1, 1]} : vector<8x32xbf16> to vector<8x8xbf16>
    %cst_49 = arith.constant dense<0.000000e+00> : vector<8x8xf32>
    %145 = tpu.matmul %143, %144, %cst_49 {dimension_numbers = #tpu.dot_dimension_numbers<[1], [1], [0], [0], [0, 0, 1, 0], [], []>} : vector<8x8xbf16>, vector<8x8xbf16>, vector<8x8xf32> -> vector<8x8xf32>
    %cst_50 = arith.constant 0.353553385 : f32
    %146 = vector.broadcast %cst_50 : f32 to vector<8x8xf32>
    %147 = arith.mulf %145, %146 : vector<8x8xf32>
    %148 = arith.addf %147, %124 : vector<8x8xf32>
    %cst_51 = arith.constant dense<0xFF800000> : vector<8xf32>
    %149 = vector.multi_reduction <maximumf>, %148, %cst_51 [1] : vector<8x8xf32> to vector<8xf32>
    %150 = vector.shape_cast %149 : vector<8xf32> to vector<8x1xf32>
    %151 = vector.broadcast %150 : vector<8x1xf32> to vector<8x8xf32>
    %152 = arith.subf %148, %151 : vector<8x8xf32>
    %153 = math.exp %152 : vector<8x8xf32>
    %cst_52 = arith.constant dense<0.000000e+00> : vector<8xf32>
    %154 = vector.multi_reduction <add>, %153, %cst_52 [1] : vector<8x8xf32> to vector<8xf32>
    %155 = vector.shape_cast %154 : vector<8xf32> to vector<8x1xf32>
    %156 = vector.broadcast %155 : vector<8x1xf32> to vector<8x8xf32>
    %157 = arith.divf %153, %156 : vector<8x8xf32>
    %158 = arith.truncf %157 : vector<8x8xf32> to vector<8x8xbf16>
    %159 = vector.extract_strided_slice %122 {offsets = [0, 8], sizes = [8, 8], strides = [1, 1]} : vector<8x32xbf16> to vector<8x8xbf16>
    %cst_53 = arith.constant dense<0.000000e+00> : vector<8x8xf32>
    %160 = tpu.matmul %158, %159, %cst_53 {dimension_numbers = #tpu.dot_dimension_numbers<[1], [0], [0], [1], [0, 0, 1, 1], [], []>} : vector<8x8xbf16>, vector<8x8xbf16>, vector<8x8xf32> -> vector<8x8xf32>
    %161 = vector.extract_strided_slice %120 {offsets = [0, 16], sizes = [8, 8], strides = [1, 1]} : vector<8x32xbf16> to vector<8x8xbf16>
    %162 = vector.extract_strided_slice %121 {offsets = [0, 16], sizes = [8, 8], strides = [1, 1]} : vector<8x32xbf16> to vector<8x8xbf16>
    %cst_54 = arith.constant dense<0.000000e+00> : vector<8x8xf32>
    %163 = tpu.matmul %161, %162, %cst_54 {dimension_numbers = #tpu.dot_dimension_numbers<[1], [1], [0], [0], [0, 0, 1, 0], [], []>} : vector<8x8xbf16>, vector<8x8xbf16>, vector<8x8xf32> -> vector<8x8xf32>
    %cst_55 = arith.constant 0.353553385 : f32
    %164 = vector.broadcast %cst_55 : f32 to vector<8x8xf32>
    %165 = arith.mulf %163, %164 : vector<8x8xf32>
    %166 = arith.addf %165, %124 : vector<8x8xf32>
    %cst_56 = arith.constant dense<0xFF800000> : vector<8xf32>
    %167 = vector.multi_reduction <maximumf>, %166, %cst_56 [1] : vector<8x8xf32> to vector<8xf32>
    %168 = vector.shape_cast %167 : vector<8xf32> to vector<8x1xf32>
    %169 = vector.broadcast %168 : vector<8x1xf32> to vector<8x8xf32>
    %170 = arith.subf %166, %169 : vector<8x8xf32>
    %171 = math.exp %170 : vector<8x8xf32>
    %cst_57 = arith.constant dense<0.000000e+00> : vector<8xf32>
    %172 = vector.multi_reduction <add>, %171, %cst_57 [1] : vector<8x8xf32> to vector<8xf32>
    %173 = vector.shape_cast %172 : vector<8xf32> to vector<8x1xf32>
    %174 = vector.broadcast %173 : vector<8x1xf32> to vector<8x8xf32>
    %175 = arith.divf %171, %174 : vector<8x8xf32>
    %176 = arith.truncf %175 : vector<8x8xf32> to vector<8x8xbf16>
    %177 = vector.extract_strided_slice %122 {offsets = [0, 16], sizes = [8, 8], strides = [1, 1]} : vector<8x32xbf16> to vector<8x8xbf16>
    %cst_58 = arith.constant dense<0.000000e+00> : vector<8x8xf32>
    %178 = tpu.matmul %176, %177, %cst_58 {dimension_numbers = #tpu.dot_dimension_numbers<[1], [0], [0], [1], [0, 0, 1, 1], [], []>} : vector<8x8xbf16>, vector<8x8xbf16>, vector<8x8xf32> -> vector<8x8xf32>
    %179 = vector.extract_strided_slice %120 {offsets = [0, 24], sizes = [8, 8], strides = [1, 1]} : vector<8x32xbf16> to vector<8x8xbf16>
    %180 = vector.extract_strided_slice %121 {offsets = [0, 24], sizes = [8, 8], strides = [1, 1]} : vector<8x32xbf16> to vector<8x8xbf16>
    %cst_59 = arith.constant dense<0.000000e+00> : vector<8x8xf32>
    %181 = tpu.matmul %179, %180, %cst_59 {dimension_numbers = #tpu.dot_dimension_numbers<[1], [1], [0], [0], [0, 0, 1, 0], [], []>} : vector<8x8xbf16>, vector<8x8xbf16>, vector<8x8xf32> -> vector<8x8xf32>
    %cst_60 = arith.constant 0.353553385 : f32
    %182 = vector.broadcast %cst_60 : f32 to vector<8x8xf32>
    %183 = arith.mulf %181, %182 : vector<8x8xf32>
    %184 = arith.addf %183, %124 : vector<8x8xf32>
    %cst_61 = arith.constant dense<0xFF800000> : vector<8xf32>
    %185 = vector.multi_reduction <maximumf>, %184, %cst_61 [1] : vector<8x8xf32> to vector<8xf32>
    %186 = vector.shape_cast %185 : vector<8xf32> to vector<8x1xf32>
    %187 = vector.broadcast %186 : vector<8x1xf32> to vector<8x8xf32>
    %188 = arith.subf %184, %187 : vector<8x8xf32>
    %189 = math.exp %188 : vector<8x8xf32>
    %cst_62 = arith.constant dense<0.000000e+00> : vector<8xf32>
    %190 = vector.multi_reduction <add>, %189, %cst_62 [1] : vector<8x8xf32> to vector<8xf32>
    %191 = vector.shape_cast %190 : vector<8xf32> to vector<8x1xf32>
    %192 = vector.broadcast %191 : vector<8x1xf32> to vector<8x8xf32>
    %193 = arith.divf %189, %192 : vector<8x8xf32>
    %194 = arith.truncf %193 : vector<8x8xf32> to vector<8x8xbf16>
    %195 = vector.extract_strided_slice %122 {offsets = [0, 24], sizes = [8, 8], strides = [1, 1]} : vector<8x32xbf16> to vector<8x8xbf16>
    %cst_63 = arith.constant dense<0.000000e+00> : vector<8x8xf32>
    %196 = tpu.matmul %194, %195, %cst_63 {dimension_numbers = #tpu.dot_dimension_numbers<[1], [0], [0], [1], [0, 0, 1, 1], [], []>} : vector<8x8xbf16>, vector<8x8xbf16>, vector<8x8xf32> -> vector<8x8xf32>
    %197 = tpu.concatenate %142, %160, %178, %196 in 1 : vector<8x8xf32>, vector<8x8xf32>, vector<8x8xf32>, vector<8x8xf32> -> vector<8x32xf32>
    %198 = tpu.concatenate %119, %197 in 0 : vector<8x32xf32>, vector<8x32xf32> -> vector<16x32xf32>
    %199 = arith.truncf %198 : vector<16x32xf32> to vector<16x32xbf16>
    %c0_64 = arith.constant 0 : index
    %c0_65 = arith.constant 0 : index
    %c0_66 = arith.constant 0 : index
    %200 = vector.load %arg10[%c0_64, %c0_65, %c0_66] : memref<1x32x32xbf16, #tpu.memory_space<vmem>>, vector<1x32x32xbf16>
    %201 = vector.shape_cast %200 : vector<1x32x32xbf16> to vector<32x32xbf16>
    %cst_67 = arith.constant dense<0.000000e+00> : vector<16x32xf32>
    %202 = tpu.matmul %199, %201, %cst_67 {dimension_numbers = #tpu.dot_dimension_numbers<[1], [0], [0], [1], [0, 0, 1, 1], [], []>} : vector<16x32xbf16>, vector<32x32xbf16>, vector<16x32xf32> -> vector<16x32xf32>
    %c0_68 = arith.constant 0 : index
    %c0_69 = arith.constant 0 : index
    %c0_70 = arith.constant 0 : index
    %203 = vector.load %arg11[%c0_68, %c0_69, %c0_70] : memref<1x1x32xf32, #tpu.memory_space<vmem>>, vector<1x1x32xf32>
    %204 = vector.shape_cast %203 : vector<1x1x32xf32> to vector<1x32xf32>
    %205 = vector.broadcast %204 : vector<1x32xf32> to vector<16x32xf32>
    %206 = arith.addf %202, %205 : vector<16x32xf32>
    %207 = arith.addf %3, %206 : vector<16x32xf32>
    %208 = vector.extract_strided_slice %5 {offsets = [1, 0], sizes = [1, 32], strides = [1, 1]} : vector<3x32xf32> to vector<1x32xf32>
    %209 = vector.extract_strided_slice %7 {offsets = [1, 0], sizes = [1, 32], strides = [1, 1]} : vector<3x32xf32> to vector<1x32xf32>
    %cst_71 = arith.constant dense<0.000000e+00> : vector<16xf32>
    %210 = vector.multi_reduction <add>, %207, %cst_71 [1] : vector<16x32xf32> to vector<16xf32>
    %211 = vector.shape_cast %210 : vector<16xf32> to vector<16x1xf32>
    %cst_72 = arith.constant 3.200000e+01 : f32
    %212 = vector.broadcast %cst_72 : f32 to vector<16x1xf32>
    %213 = arith.divf %211, %212 : vector<16x1xf32>
    %214 = vector.broadcast %213 : vector<16x1xf32> to vector<16x32xf32>
    %215 = arith.subf %207, %214 : vector<16x32xf32>
    %216 = arith.mulf %215, %215 : vector<16x32xf32>
    %cst_73 = arith.constant dense<0.000000e+00> : vector<16xf32>
    %217 = vector.multi_reduction <add>, %216, %cst_73 [1] : vector<16x32xf32> to vector<16xf32>
    %218 = vector.shape_cast %217 : vector<16xf32> to vector<16x1xf32>
    %cst_74 = arith.constant 3.200000e+01 : f32
    %219 = vector.broadcast %cst_74 : f32 to vector<16x1xf32>
    %220 = arith.divf %218, %219 : vector<16x1xf32>
    %cst_75 = arith.constant 9.99999974E-6 : f32
    %221 = vector.broadcast %cst_75 : f32 to vector<16x1xf32>
    %222 = arith.addf %220, %221 : vector<16x1xf32>
    %223 = math.rsqrt %222 : vector<16x1xf32>
    %224 = vector.broadcast %223 : vector<16x1xf32> to vector<16x32xf32>
    %225 = arith.mulf %215, %224 : vector<16x32xf32>
    %226 = vector.broadcast %208 : vector<1x32xf32> to vector<16x32xf32>
    %227 = arith.mulf %225, %226 : vector<16x32xf32>
    %228 = vector.broadcast %209 : vector<1x32xf32> to vector<16x32xf32>
    %229 = arith.addf %227, %228 : vector<16x32xf32>
    %230 = arith.truncf %229 : vector<16x32xf32> to vector<16x32xbf16>
    %c0_76 = arith.constant 0 : index
    %c0_77 = arith.constant 0 : index
    %c0_78 = arith.constant 0 : index
    %231 = vector.load %arg12[%c0_76, %c0_77, %c0_78] : memref<1x32x32xbf16, #tpu.memory_space<vmem>>, vector<1x32x32xbf16>
    %232 = vector.shape_cast %231 : vector<1x32x32xbf16> to vector<32x32xbf16>
    %cst_79 = arith.constant dense<0.000000e+00> : vector<16x32xf32>
    %233 = tpu.matmul %230, %232, %cst_79 {dimension_numbers = #tpu.dot_dimension_numbers<[1], [0], [0], [1], [0, 0, 1, 1], [], []>} : vector<16x32xbf16>, vector<32x32xbf16>, vector<16x32xf32> -> vector<16x32xf32>
    %c0_80 = arith.constant 0 : index
    %c0_81 = arith.constant 0 : index
    %c0_82 = arith.constant 0 : index
    %234 = vector.load %arg13[%c0_80, %c0_81, %c0_82] : memref<1x1x32xf32, #tpu.memory_space<vmem>>, vector<1x1x32xf32>
    %235 = vector.shape_cast %234 : vector<1x1x32xf32> to vector<1x32xf32>
    %236 = vector.broadcast %235 : vector<1x32xf32> to vector<16x32xf32>
    %237 = arith.addf %233, %236 : vector<16x32xf32>
    %238 = arith.truncf %237 : vector<16x32xf32> to vector<16x32xbf16>
    %c0_83 = arith.constant 0 : index
    %c0_84 = arith.constant 0 : index
    %239 = vector.load %arg3[%c0_83, %c0_84] : memref<16x32xf32, #tpu.memory_space<vmem>>, vector<16x32xf32>
    %240 = arith.truncf %239 : vector<16x32xf32> to vector<16x32xbf16>
    %c0_85 = arith.constant 0 : index
    %c0_86 = arith.constant 0 : index
    %c0_87 = arith.constant 0 : index
    %241 = vector.load %arg14[%c0_85, %c0_86, %c0_87] : memref<1x32x64xbf16, #tpu.memory_space<vmem>>, vector<1x32x64xbf16>
    %242 = vector.shape_cast %241 : vector<1x32x64xbf16> to vector<32x64xbf16>
    %cst_88 = arith.constant dense<0.000000e+00> : vector<16x64xf32>
    %243 = tpu.matmul %240, %242, %cst_88 {dimension_numbers = #tpu.dot_dimension_numbers<[1], [0], [0], [1], [0, 0, 1, 1], [], []>} : vector<16x32xbf16>, vector<32x64xbf16>, vector<16x64xf32> -> vector<16x64xf32>
    %c0_89 = arith.constant 0 : index
    %c0_90 = arith.constant 0 : index
    %c0_91 = arith.constant 0 : index
    %244 = vector.load %arg15[%c0_89, %c0_90, %c0_91] : memref<1x1x64xf32, #tpu.memory_space<vmem>>, vector<1x1x64xf32>
    %245 = vector.shape_cast %244 : vector<1x1x64xf32> to vector<1x64xf32>
    %246 = vector.broadcast %245 : vector<1x64xf32> to vector<16x64xf32>
    %247 = arith.addf %243, %246 : vector<16x64xf32>
    %248 = arith.truncf %247 : vector<16x64xf32> to vector<16x64xbf16>
    %249 = vector.extract_strided_slice %248 {offsets = [0, 0], sizes = [16, 32], strides = [1, 1]} : vector<16x64xbf16> to vector<16x32xbf16>
    %250 = vector.extract_strided_slice %248 {offsets = [0, 32], sizes = [16, 32], strides = [1, 1]} : vector<16x64xbf16> to vector<16x32xbf16>
    %251 = vector.extract_strided_slice %238 {offsets = [0, 0], sizes = [8, 32], strides = [1, 1]} : vector<16x32xbf16> to vector<8x32xbf16>
    %252 = vector.extract_strided_slice %249 {offsets = [0, 0], sizes = [8, 32], strides = [1, 1]} : vector<16x32xbf16> to vector<8x32xbf16>
    %253 = vector.extract_strided_slice %250 {offsets = [0, 0], sizes = [8, 32], strides = [1, 1]} : vector<16x32xbf16> to vector<8x32xbf16>
    %c0_92 = arith.constant 0 : index
    %c0_93 = arith.constant 0 : index
    %c0_94 = arith.constant 0 : index
    %254 = vector.load %arg27[%c0_92, %c0_93, %c0_94] : memref<2x8x8xf32, #tpu.memory_space<vmem>>, vector<1x8x8xf32>
    %255 = vector.shape_cast %254 : vector<1x8x8xf32> to vector<8x8xf32>
    %256 = vector.extract_strided_slice %251 {offsets = [0, 0], sizes = [8, 8], strides = [1, 1]} : vector<8x32xbf16> to vector<8x8xbf16>
    %257 = vector.extract_strided_slice %252 {offsets = [0, 0], sizes = [8, 8], strides = [1, 1]} : vector<8x32xbf16> to vector<8x8xbf16>
    %cst_95 = arith.constant dense<0.000000e+00> : vector<8x8xf32>
    %258 = tpu.matmul %256, %257, %cst_95 {dimension_numbers = #tpu.dot_dimension_numbers<[1], [1], [0], [0], [0, 0, 1, 0], [], []>} : vector<8x8xbf16>, vector<8x8xbf16>, vector<8x8xf32> -> vector<8x8xf32>
    %cst_96 = arith.constant 0.353553385 : f32
    %259 = vector.broadcast %cst_96 : f32 to vector<8x8xf32>
    %260 = arith.mulf %258, %259 : vector<8x8xf32>
    %261 = arith.addf %260, %255 : vector<8x8xf32>
    %cst_97 = arith.constant dense<0xFF800000> : vector<8xf32>
    %262 = vector.multi_reduction <maximumf>, %261, %cst_97 [1] : vector<8x8xf32> to vector<8xf32>
    %263 = vector.shape_cast %262 : vector<8xf32> to vector<8x1xf32>
    %264 = vector.broadcast %263 : vector<8x1xf32> to vector<8x8xf32>
    %265 = arith.subf %261, %264 : vector<8x8xf32>
    %266 = math.exp %265 : vector<8x8xf32>
    %cst_98 = arith.constant dense<0.000000e+00> : vector<8xf32>
    %267 = vector.multi_reduction <add>, %266, %cst_98 [1] : vector<8x8xf32> to vector<8xf32>
    %268 = vector.shape_cast %267 : vector<8xf32> to vector<8x1xf32>
    %269 = vector.broadcast %268 : vector<8x1xf32> to vector<8x8xf32>
    %270 = arith.divf %266, %269 : vector<8x8xf32>
    %271 = arith.truncf %270 : vector<8x8xf32> to vector<8x8xbf16>
    %272 = vector.extract_strided_slice %253 {offsets = [0, 0], sizes = [8, 8], strides = [1, 1]} : vector<8x32xbf16> to vector<8x8xbf16>
    %cst_99 = arith.constant dense<0.000000e+00> : vector<8x8xf32>
    %273 = tpu.matmul %271, %272, %cst_99 {dimension_numbers = #tpu.dot_dimension_numbers<[1], [0], [0], [1], [0, 0, 1, 1], [], []>} : vector<8x8xbf16>, vector<8x8xbf16>, vector<8x8xf32> -> vector<8x8xf32>
    %274 = vector.extract_strided_slice %251 {offsets = [0, 8], sizes = [8, 8], strides = [1, 1]} : vector<8x32xbf16> to vector<8x8xbf16>
    %275 = vector.extract_strided_slice %252 {offsets = [0, 8], sizes = [8, 8], strides = [1, 1]} : vector<8x32xbf16> to vector<8x8xbf16>
    %cst_100 = arith.constant dense<0.000000e+00> : vector<8x8xf32>
    %276 = tpu.matmul %274, %275, %cst_100 {dimension_numbers = #tpu.dot_dimension_numbers<[1], [1], [0], [0], [0, 0, 1, 0], [], []>} : vector<8x8xbf16>, vector<8x8xbf16>, vector<8x8xf32> -> vector<8x8xf32>
    %cst_101 = arith.constant 0.353553385 : f32
    %277 = vector.broadcast %cst_101 : f32 to vector<8x8xf32>
    %278 = arith.mulf %276, %277 : vector<8x8xf32>
    %279 = arith.addf %278, %255 : vector<8x8xf32>
    %cst_102 = arith.constant dense<0xFF800000> : vector<8xf32>
    %280 = vector.multi_reduction <maximumf>, %279, %cst_102 [1] : vector<8x8xf32> to vector<8xf32>
    %281 = vector.shape_cast %280 : vector<8xf32> to vector<8x1xf32>
    %282 = vector.broadcast %281 : vector<8x1xf32> to vector<8x8xf32>
    %283 = arith.subf %279, %282 : vector<8x8xf32>
    %284 = math.exp %283 : vector<8x8xf32>
    %cst_103 = arith.constant dense<0.000000e+00> : vector<8xf32>
    %285 = vector.multi_reduction <add>, %284, %cst_103 [1] : vector<8x8xf32> to vector<8xf32>
    %286 = vector.shape_cast %285 : vector<8xf32> to vector<8x1xf32>
    %287 = vector.broadcast %286 : vector<8x1xf32> to vector<8x8xf32>
    %288 = arith.divf %284, %287 : vector<8x8xf32>
    %289 = arith.truncf %288 : vector<8x8xf32> to vector<8x8xbf16>
    %290 = vector.extract_strided_slice %253 {offsets = [0, 8], sizes = [8, 8], strides = [1, 1]} : vector<8x32xbf16> to vector<8x8xbf16>
    %cst_104 = arith.constant dense<0.000000e+00> : vector<8x8xf32>
    %291 = tpu.matmul %289, %290, %cst_104 {dimension_numbers = #tpu.dot_dimension_numbers<[1], [0], [0], [1], [0, 0, 1, 1], [], []>} : vector<8x8xbf16>, vector<8x8xbf16>, vector<8x8xf32> -> vector<8x8xf32>
    %292 = vector.extract_strided_slice %251 {offsets = [0, 16], sizes = [8, 8], strides = [1, 1]} : vector<8x32xbf16> to vector<8x8xbf16>
    %293 = vector.extract_strided_slice %252 {offsets = [0, 16], sizes = [8, 8], strides = [1, 1]} : vector<8x32xbf16> to vector<8x8xbf16>
    %cst_105 = arith.constant dense<0.000000e+00> : vector<8x8xf32>
    %294 = tpu.matmul %292, %293, %cst_105 {dimension_numbers = #tpu.dot_dimension_numbers<[1], [1], [0], [0], [0, 0, 1, 0], [], []>} : vector<8x8xbf16>, vector<8x8xbf16>, vector<8x8xf32> -> vector<8x8xf32>
    %cst_106 = arith.constant 0.353553385 : f32
    %295 = vector.broadcast %cst_106 : f32 to vector<8x8xf32>
    %296 = arith.mulf %294, %295 : vector<8x8xf32>
    %297 = arith.addf %296, %255 : vector<8x8xf32>
    %cst_107 = arith.constant dense<0xFF800000> : vector<8xf32>
    %298 = vector.multi_reduction <maximumf>, %297, %cst_107 [1] : vector<8x8xf32> to vector<8xf32>
    %299 = vector.shape_cast %298 : vector<8xf32> to vector<8x1xf32>
    %300 = vector.broadcast %299 : vector<8x1xf32> to vector<8x8xf32>
    %301 = arith.subf %297, %300 : vector<8x8xf32>
    %302 = math.exp %301 : vector<8x8xf32>
    %cst_108 = arith.constant dense<0.000000e+00> : vector<8xf32>
    %303 = vector.multi_reduction <add>, %302, %cst_108 [1] : vector<8x8xf32> to vector<8xf32>
    %304 = vector.shape_cast %303 : vector<8xf32> to vector<8x1xf32>
    %305 = vector.broadcast %304 : vector<8x1xf32> to vector<8x8xf32>
    %306 = arith.divf %302, %305 : vector<8x8xf32>
    %307 = arith.truncf %306 : vector<8x8xf32> to vector<8x8xbf16>
    %308 = vector.extract_strided_slice %253 {offsets = [0, 16], sizes = [8, 8], strides = [1, 1]} : vector<8x32xbf16> to vector<8x8xbf16>
    %cst_109 = arith.constant dense<0.000000e+00> : vector<8x8xf32>
    %309 = tpu.matmul %307, %308, %cst_109 {dimension_numbers = #tpu.dot_dimension_numbers<[1], [0], [0], [1], [0, 0, 1, 1], [], []>} : vector<8x8xbf16>, vector<8x8xbf16>, vector<8x8xf32> -> vector<8x8xf32>
    %310 = vector.extract_strided_slice %251 {offsets = [0, 24], sizes = [8, 8], strides = [1, 1]} : vector<8x32xbf16> to vector<8x8xbf16>
    %311 = vector.extract_strided_slice %252 {offsets = [0, 24], sizes = [8, 8], strides = [1, 1]} : vector<8x32xbf16> to vector<8x8xbf16>
    %cst_110 = arith.constant dense<0.000000e+00> : vector<8x8xf32>
    %312 = tpu.matmul %310, %311, %cst_110 {dimension_numbers = #tpu.dot_dimension_numbers<[1], [1], [0], [0], [0, 0, 1, 0], [], []>} : vector<8x8xbf16>, vector<8x8xbf16>, vector<8x8xf32> -> vector<8x8xf32>
    %cst_111 = arith.constant 0.353553385 : f32
    %313 = vector.broadcast %cst_111 : f32 to vector<8x8xf32>
    %314 = arith.mulf %312, %313 : vector<8x8xf32>
    %315 = arith.addf %314, %255 : vector<8x8xf32>
    %cst_112 = arith.constant dense<0xFF800000> : vector<8xf32>
    %316 = vector.multi_reduction <maximumf>, %315, %cst_112 [1] : vector<8x8xf32> to vector<8xf32>
    %317 = vector.shape_cast %316 : vector<8xf32> to vector<8x1xf32>
    %318 = vector.broadcast %317 : vector<8x1xf32> to vector<8x8xf32>
    %319 = arith.subf %315, %318 : vector<8x8xf32>
    %320 = math.exp %319 : vector<8x8xf32>
    %cst_113 = arith.constant dense<0.000000e+00> : vector<8xf32>
    %321 = vector.multi_reduction <add>, %320, %cst_113 [1] : vector<8x8xf32> to vector<8xf32>
    %322 = vector.shape_cast %321 : vector<8xf32> to vector<8x1xf32>
    %323 = vector.broadcast %322 : vector<8x1xf32> to vector<8x8xf32>
    %324 = arith.divf %320, %323 : vector<8x8xf32>
    %325 = arith.truncf %324 : vector<8x8xf32> to vector<8x8xbf16>
    %326 = vector.extract_strided_slice %253 {offsets = [0, 24], sizes = [8, 8], strides = [1, 1]} : vector<8x32xbf16> to vector<8x8xbf16>
    %cst_114 = arith.constant dense<0.000000e+00> : vector<8x8xf32>
    %327 = tpu.matmul %325, %326, %cst_114 {dimension_numbers = #tpu.dot_dimension_numbers<[1], [0], [0], [1], [0, 0, 1, 1], [], []>} : vector<8x8xbf16>, vector<8x8xbf16>, vector<8x8xf32> -> vector<8x8xf32>
    %328 = tpu.concatenate %273, %291, %309, %327 in 1 : vector<8x8xf32>, vector<8x8xf32>, vector<8x8xf32>, vector<8x8xf32> -> vector<8x32xf32>
    %329 = vector.extract_strided_slice %238 {offsets = [8, 0], sizes = [8, 32], strides = [1, 1]} : vector<16x32xbf16> to vector<8x32xbf16>
    %330 = vector.extract_strided_slice %249 {offsets = [8, 0], sizes = [8, 32], strides = [1, 1]} : vector<16x32xbf16> to vector<8x32xbf16>
    %331 = vector.extract_strided_slice %250 {offsets = [8, 0], sizes = [8, 32], strides = [1, 1]} : vector<16x32xbf16> to vector<8x32xbf16>
    %c1_115 = arith.constant 1 : index
    %c0_116 = arith.constant 0 : index
    %c0_117 = arith.constant 0 : index
    %332 = vector.load %arg27[%c1_115, %c0_116, %c0_117] : memref<2x8x8xf32, #tpu.memory_space<vmem>>, vector<1x8x8xf32>
    %333 = vector.shape_cast %332 : vector<1x8x8xf32> to vector<8x8xf32>
    %334 = vector.extract_strided_slice %329 {offsets = [0, 0], sizes = [8, 8], strides = [1, 1]} : vector<8x32xbf16> to vector<8x8xbf16>
    %335 = vector.extract_strided_slice %330 {offsets = [0, 0], sizes = [8, 8], strides = [1, 1]} : vector<8x32xbf16> to vector<8x8xbf16>
    %cst_118 = arith.constant dense<0.000000e+00> : vector<8x8xf32>
    %336 = tpu.matmul %334, %335, %cst_118 {dimension_numbers = #tpu.dot_dimension_numbers<[1], [1], [0], [0], [0, 0, 1, 0], [], []>} : vector<8x8xbf16>, vector<8x8xbf16>, vector<8x8xf32> -> vector<8x8xf32>
    %cst_119 = arith.constant 0.353553385 : f32
    %337 = vector.broadcast %cst_119 : f32 to vector<8x8xf32>
    %338 = arith.mulf %336, %337 : vector<8x8xf32>
    %339 = arith.addf %338, %333 : vector<8x8xf32>
    %cst_120 = arith.constant dense<0xFF800000> : vector<8xf32>
    %340 = vector.multi_reduction <maximumf>, %339, %cst_120 [1] : vector<8x8xf32> to vector<8xf32>
    %341 = vector.shape_cast %340 : vector<8xf32> to vector<8x1xf32>
    %342 = vector.broadcast %341 : vector<8x1xf32> to vector<8x8xf32>
    %343 = arith.subf %339, %342 : vector<8x8xf32>
    %344 = math.exp %343 : vector<8x8xf32>
    %cst_121 = arith.constant dense<0.000000e+00> : vector<8xf32>
    %345 = vector.multi_reduction <add>, %344, %cst_121 [1] : vector<8x8xf32> to vector<8xf32>
    %346 = vector.shape_cast %345 : vector<8xf32> to vector<8x1xf32>
    %347 = vector.broadcast %346 : vector<8x1xf32> to vector<8x8xf32>
    %348 = arith.divf %344, %347 : vector<8x8xf32>
    %349 = arith.truncf %348 : vector<8x8xf32> to vector<8x8xbf16>
    %350 = vector.extract_strided_slice %331 {offsets = [0, 0], sizes = [8, 8], strides = [1, 1]} : vector<8x32xbf16> to vector<8x8xbf16>
    %cst_122 = arith.constant dense<0.000000e+00> : vector<8x8xf32>
    %351 = tpu.matmul %349, %350, %cst_122 {dimension_numbers = #tpu.dot_dimension_numbers<[1], [0], [0], [1], [0, 0, 1, 1], [], []>} : vector<8x8xbf16>, vector<8x8xbf16>, vector<8x8xf32> -> vector<8x8xf32>
    %352 = vector.extract_strided_slice %329 {offsets = [0, 8], sizes = [8, 8], strides = [1, 1]} : vector<8x32xbf16> to vector<8x8xbf16>
    %353 = vector.extract_strided_slice %330 {offsets = [0, 8], sizes = [8, 8], strides = [1, 1]} : vector<8x32xbf16> to vector<8x8xbf16>
    %cst_123 = arith.constant dense<0.000000e+00> : vector<8x8xf32>
    %354 = tpu.matmul %352, %353, %cst_123 {dimension_numbers = #tpu.dot_dimension_numbers<[1], [1], [0], [0], [0, 0, 1, 0], [], []>} : vector<8x8xbf16>, vector<8x8xbf16>, vector<8x8xf32> -> vector<8x8xf32>
    %cst_124 = arith.constant 0.353553385 : f32
    %355 = vector.broadcast %cst_124 : f32 to vector<8x8xf32>
    %356 = arith.mulf %354, %355 : vector<8x8xf32>
    %357 = arith.addf %356, %333 : vector<8x8xf32>
    %cst_125 = arith.constant dense<0xFF800000> : vector<8xf32>
    %358 = vector.multi_reduction <maximumf>, %357, %cst_125 [1] : vector<8x8xf32> to vector<8xf32>
    %359 = vector.shape_cast %358 : vector<8xf32> to vector<8x1xf32>
    %360 = vector.broadcast %359 : vector<8x1xf32> to vector<8x8xf32>
    %361 = arith.subf %357, %360 : vector<8x8xf32>
    %362 = math.exp %361 : vector<8x8xf32>
    %cst_126 = arith.constant dense<0.000000e+00> : vector<8xf32>
    %363 = vector.multi_reduction <add>, %362, %cst_126 [1] : vector<8x8xf32> to vector<8xf32>
    %364 = vector.shape_cast %363 : vector<8xf32> to vector<8x1xf32>
    %365 = vector.broadcast %364 : vector<8x1xf32> to vector<8x8xf32>
    %366 = arith.divf %362, %365 : vector<8x8xf32>
    %367 = arith.truncf %366 : vector<8x8xf32> to vector<8x8xbf16>
    %368 = vector.extract_strided_slice %331 {offsets = [0, 8], sizes = [8, 8], strides = [1, 1]} : vector<8x32xbf16> to vector<8x8xbf16>
    %cst_127 = arith.constant dense<0.000000e+00> : vector<8x8xf32>
    %369 = tpu.matmul %367, %368, %cst_127 {dimension_numbers = #tpu.dot_dimension_numbers<[1], [0], [0], [1], [0, 0, 1, 1], [], []>} : vector<8x8xbf16>, vector<8x8xbf16>, vector<8x8xf32> -> vector<8x8xf32>
    %370 = vector.extract_strided_slice %329 {offsets = [0, 16], sizes = [8, 8], strides = [1, 1]} : vector<8x32xbf16> to vector<8x8xbf16>
    %371 = vector.extract_strided_slice %330 {offsets = [0, 16], sizes = [8, 8], strides = [1, 1]} : vector<8x32xbf16> to vector<8x8xbf16>
    %cst_128 = arith.constant dense<0.000000e+00> : vector<8x8xf32>
    %372 = tpu.matmul %370, %371, %cst_128 {dimension_numbers = #tpu.dot_dimension_numbers<[1], [1], [0], [0], [0, 0, 1, 0], [], []>} : vector<8x8xbf16>, vector<8x8xbf16>, vector<8x8xf32> -> vector<8x8xf32>
    %cst_129 = arith.constant 0.353553385 : f32
    %373 = vector.broadcast %cst_129 : f32 to vector<8x8xf32>
    %374 = arith.mulf %372, %373 : vector<8x8xf32>
    %375 = arith.addf %374, %333 : vector<8x8xf32>
    %cst_130 = arith.constant dense<0xFF800000> : vector<8xf32>
    %376 = vector.multi_reduction <maximumf>, %375, %cst_130 [1] : vector<8x8xf32> to vector<8xf32>
    %377 = vector.shape_cast %376 : vector<8xf32> to vector<8x1xf32>
    %378 = vector.broadcast %377 : vector<8x1xf32> to vector<8x8xf32>
    %379 = arith.subf %375, %378 : vector<8x8xf32>
    %380 = math.exp %379 : vector<8x8xf32>
    %cst_131 = arith.constant dense<0.000000e+00> : vector<8xf32>
    %381 = vector.multi_reduction <add>, %380, %cst_131 [1] : vector<8x8xf32> to vector<8xf32>
    %382 = vector.shape_cast %381 : vector<8xf32> to vector<8x1xf32>
    %383 = vector.broadcast %382 : vector<8x1xf32> to vector<8x8xf32>
    %384 = arith.divf %380, %383 : vector<8x8xf32>
    %385 = arith.truncf %384 : vector<8x8xf32> to vector<8x8xbf16>
    %386 = vector.extract_strided_slice %331 {offsets = [0, 16], sizes = [8, 8], strides = [1, 1]} : vector<8x32xbf16> to vector<8x8xbf16>
    %cst_132 = arith.constant dense<0.000000e+00> : vector<8x8xf32>
    %387 = tpu.matmul %385, %386, %cst_132 {dimension_numbers = #tpu.dot_dimension_numbers<[1], [0], [0], [1], [0, 0, 1, 1], [], []>} : vector<8x8xbf16>, vector<8x8xbf16>, vector<8x8xf32> -> vector<8x8xf32>
    %388 = vector.extract_strided_slice %329 {offsets = [0, 24], sizes = [8, 8], strides = [1, 1]} : vector<8x32xbf16> to vector<8x8xbf16>
    %389 = vector.extract_strided_slice %330 {offsets = [0, 24], sizes = [8, 8], strides = [1, 1]} : vector<8x32xbf16> to vector<8x8xbf16>
    %cst_133 = arith.constant dense<0.000000e+00> : vector<8x8xf32>
    %390 = tpu.matmul %388, %389, %cst_133 {dimension_numbers = #tpu.dot_dimension_numbers<[1], [1], [0], [0], [0, 0, 1, 0], [], []>} : vector<8x8xbf16>, vector<8x8xbf16>, vector<8x8xf32> -> vector<8x8xf32>
    %cst_134 = arith.constant 0.353553385 : f32
    %391 = vector.broadcast %cst_134 : f32 to vector<8x8xf32>
    %392 = arith.mulf %390, %391 : vector<8x8xf32>
    %393 = arith.addf %392, %333 : vector<8x8xf32>
    %cst_135 = arith.constant dense<0xFF800000> : vector<8xf32>
    %394 = vector.multi_reduction <maximumf>, %393, %cst_135 [1] : vector<8x8xf32> to vector<8xf32>
    %395 = vector.shape_cast %394 : vector<8xf32> to vector<8x1xf32>
    %396 = vector.broadcast %395 : vector<8x1xf32> to vector<8x8xf32>
    %397 = arith.subf %393, %396 : vector<8x8xf32>
    %398 = math.exp %397 : vector<8x8xf32>
    %cst_136 = arith.constant dense<0.000000e+00> : vector<8xf32>
    %399 = vector.multi_reduction <add>, %398, %cst_136 [1] : vector<8x8xf32> to vector<8xf32>
    %400 = vector.shape_cast %399 : vector<8xf32> to vector<8x1xf32>
    %401 = vector.broadcast %400 : vector<8x1xf32> to vector<8x8xf32>
    %402 = arith.divf %398, %401 : vector<8x8xf32>
    %403 = arith.truncf %402 : vector<8x8xf32> to vector<8x8xbf16>
    %404 = vector.extract_strided_slice %331 {offsets = [0, 24], sizes = [8, 8], strides = [1, 1]} : vector<8x32xbf16> to vector<8x8xbf16>
    %cst_137 = arith.constant dense<0.000000e+00> : vector<8x8xf32>
    %405 = tpu.matmul %403, %404, %cst_137 {dimension_numbers = #tpu.dot_dimension_numbers<[1], [0], [0], [1], [0, 0, 1, 1], [], []>} : vector<8x8xbf16>, vector<8x8xbf16>, vector<8x8xf32> -> vector<8x8xf32>
    %406 = tpu.concatenate %351, %369, %387, %405 in 1 : vector<8x8xf32>, vector<8x8xf32>, vector<8x8xf32>, vector<8x8xf32> -> vector<8x32xf32>
    %407 = tpu.concatenate %328, %406 in 0 : vector<8x32xf32>, vector<8x32xf32> -> vector<16x32xf32>
    %408 = arith.truncf %407 : vector<16x32xf32> to vector<16x32xbf16>
    %c0_138 = arith.constant 0 : index
    %c0_139 = arith.constant 0 : index
    %c0_140 = arith.constant 0 : index
    %409 = vector.load %arg16[%c0_138, %c0_139, %c0_140] : memref<1x32x32xbf16, #tpu.memory_space<vmem>>, vector<1x32x32xbf16>
    %410 = vector.shape_cast %409 : vector<1x32x32xbf16> to vector<32x32xbf16>
    %cst_141 = arith.constant dense<0.000000e+00> : vector<16x32xf32>
    %411 = tpu.matmul %408, %410, %cst_141 {dimension_numbers = #tpu.dot_dimension_numbers<[1], [0], [0], [1], [0, 0, 1, 1], [], []>} : vector<16x32xbf16>, vector<32x32xbf16>, vector<16x32xf32> -> vector<16x32xf32>
    %c0_142 = arith.constant 0 : index
    %c0_143 = arith.constant 0 : index
    %c0_144 = arith.constant 0 : index
    %412 = vector.load %arg17[%c0_142, %c0_143, %c0_144] : memref<1x1x32xf32, #tpu.memory_space<vmem>>, vector<1x1x32xf32>
    %413 = vector.shape_cast %412 : vector<1x1x32xf32> to vector<1x32xf32>
    %414 = vector.broadcast %413 : vector<1x32xf32> to vector<16x32xf32>
    %415 = arith.addf %411, %414 : vector<16x32xf32>
    %416 = arith.addf %207, %415 : vector<16x32xf32>
    %417 = vector.extract_strided_slice %5 {offsets = [2, 0], sizes = [1, 32], strides = [1, 1]} : vector<3x32xf32> to vector<1x32xf32>
    %418 = vector.extract_strided_slice %7 {offsets = [2, 0], sizes = [1, 32], strides = [1, 1]} : vector<3x32xf32> to vector<1x32xf32>
    %cst_145 = arith.constant dense<0.000000e+00> : vector<16xf32>
    %419 = vector.multi_reduction <add>, %416, %cst_145 [1] : vector<16x32xf32> to vector<16xf32>
    %420 = vector.shape_cast %419 : vector<16xf32> to vector<16x1xf32>
    %cst_146 = arith.constant 3.200000e+01 : f32
    %421 = vector.broadcast %cst_146 : f32 to vector<16x1xf32>
    %422 = arith.divf %420, %421 : vector<16x1xf32>
    %423 = vector.broadcast %422 : vector<16x1xf32> to vector<16x32xf32>
    %424 = arith.subf %416, %423 : vector<16x32xf32>
    %425 = arith.mulf %424, %424 : vector<16x32xf32>
    %cst_147 = arith.constant dense<0.000000e+00> : vector<16xf32>
    %426 = vector.multi_reduction <add>, %425, %cst_147 [1] : vector<16x32xf32> to vector<16xf32>
    %427 = vector.shape_cast %426 : vector<16xf32> to vector<16x1xf32>
    %cst_148 = arith.constant 3.200000e+01 : f32
    %428 = vector.broadcast %cst_148 : f32 to vector<16x1xf32>
    %429 = arith.divf %427, %428 : vector<16x1xf32>
    %cst_149 = arith.constant 9.99999974E-6 : f32
    %430 = vector.broadcast %cst_149 : f32 to vector<16x1xf32>
    %431 = arith.addf %429, %430 : vector<16x1xf32>
    %432 = math.rsqrt %431 : vector<16x1xf32>
    %433 = vector.broadcast %432 : vector<16x1xf32> to vector<16x32xf32>
    %434 = arith.mulf %424, %433 : vector<16x32xf32>
    %435 = vector.broadcast %417 : vector<1x32xf32> to vector<16x32xf32>
    %436 = arith.mulf %434, %435 : vector<16x32xf32>
    %437 = vector.broadcast %418 : vector<1x32xf32> to vector<16x32xf32>
    %438 = arith.addf %436, %437 : vector<16x32xf32>
    %439 = arith.truncf %438 : vector<16x32xf32> to vector<16x32xbf16>
    %c0_150 = arith.constant 0 : index
    %c0_151 = arith.constant 0 : index
    %c0_152 = arith.constant 0 : index
    %440 = vector.load %arg18[%c0_150, %c0_151, %c0_152] : memref<1x32x128xbf16, #tpu.memory_space<vmem>>, vector<1x32x128xbf16>
    %441 = vector.shape_cast %440 : vector<1x32x128xbf16> to vector<32x128xbf16>
    %cst_153 = arith.constant dense<0.000000e+00> : vector<16x128xf32>
    %442 = tpu.matmul %439, %441, %cst_153 {dimension_numbers = #tpu.dot_dimension_numbers<[1], [0], [0], [1], [0, 0, 1, 1], [], []>} : vector<16x32xbf16>, vector<32x128xbf16>, vector<16x128xf32> -> vector<16x128xf32>
    %c0_154 = arith.constant 0 : index
    %c0_155 = arith.constant 0 : index
    %c0_156 = arith.constant 0 : index
    %443 = vector.load %arg19[%c0_154, %c0_155, %c0_156] : memref<1x1x128xf32, #tpu.memory_space<vmem>>, vector<1x1x128xf32>
    %444 = vector.shape_cast %443 : vector<1x1x128xf32> to vector<1x128xf32>
    %445 = vector.broadcast %444 : vector<1x128xf32> to vector<16x128xf32>
    %446 = arith.addf %442, %445 : vector<16x128xf32>
    %447 = arith.negf %446 : vector<16x128xf32>
    %448 = math.exp %447 : vector<16x128xf32>
    %cst_157 = arith.constant 1.000000e+00 : f32
    %449 = vector.broadcast %cst_157 : f32 to vector<16x128xf32>
    %450 = arith.addf %449, %448 : vector<16x128xf32>
    %451 = arith.divf %449, %450 : vector<16x128xf32>
    %452 = arith.mulf %446, %451 : vector<16x128xf32>
    %453 = arith.truncf %452 : vector<16x128xf32> to vector<16x128xbf16>
    %c0_158 = arith.constant 0 : index
    %c0_159 = arith.constant 0 : index
    %c0_160 = arith.constant 0 : index
    %454 = vector.load %arg20[%c0_158, %c0_159, %c0_160] : memref<1x128x32xbf16, #tpu.memory_space<vmem>>, vector<1x128x32xbf16>
    %455 = vector.shape_cast %454 : vector<1x128x32xbf16> to vector<128x32xbf16>
    %cst_161 = arith.constant dense<0.000000e+00> : vector<16x32xf32>
    %456 = tpu.matmul %453, %455, %cst_161 {dimension_numbers = #tpu.dot_dimension_numbers<[1], [0], [0], [1], [0, 0, 1, 1], [], []>} : vector<16x128xbf16>, vector<128x32xbf16>, vector<16x32xf32> -> vector<16x32xf32>
    %c0_162 = arith.constant 0 : index
    %c0_163 = arith.constant 0 : index
    %c0_164 = arith.constant 0 : index
    %457 = vector.load %arg21[%c0_162, %c0_163, %c0_164] : memref<1x1x32xf32, #tpu.memory_space<vmem>>, vector<1x1x32xf32>
    %458 = vector.shape_cast %457 : vector<1x1x32xf32> to vector<1x32xf32>
    %459 = vector.broadcast %458 : vector<1x32xf32> to vector<16x32xf32>
    %460 = arith.addf %456, %459 : vector<16x32xf32>
    %461 = arith.addf %416, %460 : vector<16x32xf32>
    %c0_165 = arith.constant 0 : index
    %c0_166 = arith.constant 0 : index
    %462 = vector.load %arg25[%c0_165, %c0_166] : memref<16x32xf32, #tpu.memory_space<vmem>>, vector<16x32xf32>
    tpu.vector_store %arg25[%c0_165, %c0_166], %461 {strides = array<i32>} : memref<16x32xf32, #tpu.memory_space<vmem>>, vector<16x32xf32>,
    %c1_i32 = arith.constant 1 : i32
    %463 = arith.cmpi eq, %arg1, %c1_i32 : i32
    %464 = arith.extui %463 : i1 to i32
    %c0_i32_167 = arith.constant 0 : i32
    %465 = arith.cmpi ne, %464, %c0_i32_167 : i32
    scf.if %465 {
      %c0_168 = arith.constant 0 : index
      %c0_169 = arith.constant 0 : index
      %466 = vector.load %arg22[%c0_168, %c0_169] : memref<1x32xf32, #tpu.memory_space<vmem>>, vector<1x32xf32>
      %c0_170 = arith.constant 0 : index
      %c0_171 = arith.constant 0 : index
      %467 = vector.load %arg23[%c0_170, %c0_171] : memref<1x32xf32, #tpu.memory_space<vmem>>, vector<1x32xf32>
      %cst_172 = arith.constant dense<0.000000e+00> : vector<16xf32>
      %468 = vector.multi_reduction <add>, %461, %cst_172 [1] : vector<16x32xf32> to vector<16xf32>
      %469 = vector.shape_cast %468 : vector<16xf32> to vector<16x1xf32>
      %cst_173 = arith.constant 3.200000e+01 : f32
      %470 = vector.broadcast %cst_173 : f32 to vector<16x1xf32>
      %471 = arith.divf %469, %470 : vector<16x1xf32>
      %472 = vector.broadcast %471 : vector<16x1xf32> to vector<16x32xf32>
      %473 = arith.subf %461, %472 : vector<16x32xf32>
      %474 = arith.mulf %473, %473 : vector<16x32xf32>
      %cst_174 = arith.constant dense<0.000000e+00> : vector<16xf32>
      %475 = vector.multi_reduction <add>, %474, %cst_174 [1] : vector<16x32xf32> to vector<16xf32>
      %476 = vector.shape_cast %475 : vector<16xf32> to vector<16x1xf32>
      %cst_175 = arith.constant 3.200000e+01 : f32
      %477 = vector.broadcast %cst_175 : f32 to vector<16x1xf32>
      %478 = arith.divf %476, %477 : vector<16x1xf32>
      %cst_176 = arith.constant 9.99999974E-6 : f32
      %479 = vector.broadcast %cst_176 : f32 to vector<16x1xf32>
      %480 = arith.addf %478, %479 : vector<16x1xf32>
      %481 = math.rsqrt %480 : vector<16x1xf32>
      %482 = vector.broadcast %481 : vector<16x1xf32> to vector<16x32xf32>
      %483 = arith.mulf %473, %482 : vector<16x32xf32>
      %484 = vector.broadcast %466 : vector<1x32xf32> to vector<16x32xf32>
      %485 = arith.mulf %483, %484 : vector<16x32xf32>
      %486 = vector.broadcast %467 : vector<1x32xf32> to vector<16x32xf32>
      %487 = arith.addf %485, %486 : vector<16x32xf32>
      %c0_177 = arith.constant 0 : index
      %c0_178 = arith.constant 0 : index
      %488 = vector.load %arg24[%c0_177, %c0_178] : memref<16x32xf32, #tpu.memory_space<vmem>>, vector<16x32xf32>
      tpu.vector_store %arg24[%c0_177, %c0_178], %487 {strides = array<i32>} : memref<16x32xf32, #tpu.memory_space<vmem>>, vector<16x32xf32>,
    } else {
    }
    return
  }
  func.func @transform_0(%arg0: i32, %arg1: i32) -> (i32, i32) {
    %c0_i32 = arith.constant 0 : i32
    %c0_i32_0 = arith.constant 0 : i32
    return %arg0, %c0_i32 : i32, i32
  }
  func.func @transform_1(%arg0: i32, %arg1: i32) -> (i32, i32) {
    %c0_i32 = arith.constant 0 : i32
    %c0_i32_0 = arith.constant 0 : i32
    return %arg0, %c0_i32 : i32, i32
  }
  func.func @transform_2(%arg0: i32, %arg1: i32) -> (i32, i32, i32) {
    %c0_i32 = arith.constant 0 : i32
    %c0_i32_0 = arith.constant 0 : i32
    %c0_i32_1 = arith.constant 0 : i32
    return %arg0, %c0_i32, %c0_i32_0 : i32, i32, i32
  }
  func.func @transform_3(%arg0: i32, %arg1: i32) -> (i32, i32, i32) {
    %c0_i32 = arith.constant 0 : i32
    %c0_i32_0 = arith.constant 0 : i32
    %c0_i32_1 = arith.constant 0 : i32
    return %arg0, %c0_i32, %c0_i32_0 : i32, i32, i32
  }
  func.func @transform_4(%arg0: i32, %arg1: i32) -> (i32, i32, i32) {
    %c0_i32 = arith.constant 0 : i32
    %c0_i32_0 = arith.constant 0 : i32
    %c0_i32_1 = arith.constant 0 : i32
    return %arg1, %c0_i32, %c0_i32_0 : i32, i32, i32
  }
  func.func @transform_5(%arg0: i32, %arg1: i32) -> (i32, i32, i32) {
    %c0_i32 = arith.constant 0 : i32
    %c0_i32_0 = arith.constant 0 : i32
    %c0_i32_1 = arith.constant 0 : i32
    return %arg1, %c0_i32, %c0_i32_0 : i32, i32, i32
  }
  func.func @transform_6(%arg0: i32, %arg1: i32) -> (i32, i32, i32) {
    %c0_i32 = arith.constant 0 : i32
    %c0_i32_0 = arith.constant 0 : i32
    %c0_i32_1 = arith.constant 0 : i32
    return %arg1, %c0_i32, %c0_i32_0 : i32, i32, i32
  }
  func.func @transform_7(%arg0: i32, %arg1: i32) -> (i32, i32, i32) {
    %c0_i32 = arith.constant 0 : i32
    %c0_i32_0 = arith.constant 0 : i32
    %c0_i32_1 = arith.constant 0 : i32
    return %arg1, %c0_i32, %c0_i32_0 : i32, i32, i32
  }
  func.func @transform_8(%arg0: i32, %arg1: i32) -> (i32, i32, i32) {
    %c0_i32 = arith.constant 0 : i32
    %c0_i32_0 = arith.constant 0 : i32
    %c0_i32_1 = arith.constant 0 : i32
    return %arg1, %c0_i32, %c0_i32_0 : i32, i32, i32
  }
  func.func @transform_9(%arg0: i32, %arg1: i32) -> (i32, i32, i32) {
    %c0_i32 = arith.constant 0 : i32
    %c0_i32_0 = arith.constant 0 : i32
    %c0_i32_1 = arith.constant 0 : i32
    return %arg1, %c0_i32, %c0_i32_0 : i32, i32, i32
  }
  func.func @transform_10(%arg0: i32, %arg1: i32) -> (i32, i32, i32) {
    %c0_i32 = arith.constant 0 : i32
    %c0_i32_0 = arith.constant 0 : i32
    %c0_i32_1 = arith.constant 0 : i32
    return %arg1, %c0_i32, %c0_i32_0 : i32, i32, i32
  }
  func.func @transform_11(%arg0: i32, %arg1: i32) -> (i32, i32, i32) {
    %c0_i32 = arith.constant 0 : i32
    %c0_i32_0 = arith.constant 0 : i32
    %c0_i32_1 = arith.constant 0 : i32
    return %arg1, %c0_i32, %c0_i32_0 : i32, i32, i32
  }
  func.func @transform_12(%arg0: i32, %arg1: i32) -> (i32, i32, i32) {
    %c0_i32 = arith.constant 0 : i32
    %c0_i32_0 = arith.constant 0 : i32
    %c0_i32_1 = arith.constant 0 : i32
    return %arg1, %c0_i32, %c0_i32_0 : i32, i32, i32
  }
  func.func @transform_13(%arg0: i32, %arg1: i32) -> (i32, i32, i32) {
    %c0_i32 = arith.constant 0 : i32
    %c0_i32_0 = arith.constant 0 : i32
    %c0_i32_1 = arith.constant 0 : i32
    return %arg1, %c0_i32, %c0_i32_0 : i32, i32, i32
  }
  func.func @transform_14(%arg0: i32, %arg1: i32) -> (i32, i32, i32) {
    %c0_i32 = arith.constant 0 : i32
    %c0_i32_0 = arith.constant 0 : i32
    %c0_i32_1 = arith.constant 0 : i32
    return %arg1, %c0_i32, %c0_i32_0 : i32, i32, i32
  }
  func.func @transform_15(%arg0: i32, %arg1: i32) -> (i32, i32, i32) {
    %c0_i32 = arith.constant 0 : i32
    %c0_i32_0 = arith.constant 0 : i32
    %c0_i32_1 = arith.constant 0 : i32
    return %arg1, %c0_i32, %c0_i32_0 : i32, i32, i32
  }
  func.func @transform_16(%arg0: i32, %arg1: i32) -> (i32, i32, i32) {
    %c0_i32 = arith.constant 0 : i32
    %c0_i32_0 = arith.constant 0 : i32
    %c0_i32_1 = arith.constant 0 : i32
    return %arg1, %c0_i32, %c0_i32_0 : i32, i32, i32
  }
  func.func @transform_17(%arg0: i32, %arg1: i32) -> (i32, i32, i32) {
    %c0_i32 = arith.constant 0 : i32
    %c0_i32_0 = arith.constant 0 : i32
    %c0_i32_1 = arith.constant 0 : i32
    return %arg1, %c0_i32, %c0_i32_0 : i32, i32, i32
  }
  func.func @transform_18(%arg0: i32, %arg1: i32) -> (i32, i32, i32) {
    %c0_i32 = arith.constant 0 : i32
    %c0_i32_0 = arith.constant 0 : i32
    %c0_i32_1 = arith.constant 0 : i32
    return %arg1, %c0_i32, %c0_i32_0 : i32, i32, i32
  }
  func.func @transform_19(%arg0: i32, %arg1: i32) -> (i32, i32, i32) {
    %c0_i32 = arith.constant 0 : i32
    %c0_i32_0 = arith.constant 0 : i32
    %c0_i32_1 = arith.constant 0 : i32
    return %arg1, %c0_i32, %c0_i32_0 : i32, i32, i32
  }
  func.func @transform_20(%arg0: i32, %arg1: i32) -> (i32, i32) {
    %c0_i32 = arith.constant 0 : i32
    %c0_i32_0 = arith.constant 0 : i32
    %c0_i32_1 = arith.constant 0 : i32
    return %c0_i32, %c0_i32_0 : i32, i32
  }
  func.func @transform_21(%arg0: i32, %arg1: i32) -> (i32, i32) {
    %c0_i32 = arith.constant 0 : i32
    %c0_i32_0 = arith.constant 0 : i32
    %c0_i32_1 = arith.constant 0 : i32
    return %c0_i32, %c0_i32_0 : i32, i32
  }
  func.func @transform_22(%arg0: i32, %arg1: i32) -> (i32, i32) {
    %c0_i32 = arith.constant 0 : i32
    %c0_i32_0 = arith.constant 0 : i32
    return %arg0, %c0_i32 : i32, i32
  }
}

</mosaic_0001>

<llo_original>
// kernel: transformer_decoder.1
$region0: #{transformer_decoder.1}
  #allocation0 [shape = 'u32[]', space=smem, size = 0x4, offset = 0x4, fixed_abs, tag = 'smem constant byte address 0x4 - core index']
  #allocation1 [shape = 'u32[144,128]{1,0:T(1,128)}', space=vmem, size = 0x12000, scoped, tag = 'internal scratch']
  #allocation2 [shape = 'f32[16,32]{1,0:T(8,128)}', space=vmem, size = 0x2000, scoped, tag = 'scratch operand']
  #allocation3 [shape = 'f32[2,8,8]{2,1,0:T(8,128)}', space=vmem, size = 0x2000, scoped, tag = 'scratch operand']
  #allocation4 [shape = 'f32[2,8,8]{2,1,0:T(8,128)}', space=vmem, size = 0x2000, scoped, tag = 'scratch operand']
  %s0 = inlined_call_operand.vmem [shape: f32[16,32], index: 0, kind: input, shape index: {}]
  %s1 = inlined_call_operand.vmem [shape: f32[16,32], index: 1, kind: input, shape index: {}]
  %s2 = inlined_call_operand.vmem [shape: f32[2,1,8], index: 2, kind: input, shape index: {}]
  %s3 = inlined_call_operand.vmem [shape: f32[2,1,8], index: 3, kind: input, shape index: {}]
  %s4 = inlined_call_operand.vmem [shape: f32[2,3,32], index: 4, kind: input, shape index: {}]
  %s5 = inlined_call_operand.vmem [shape: f32[2,3,32], index: 5, kind: input, shape index: {}]
  %s6 = inlined_call_operand.vmem [shape: bf16[2,32,96], index: 6, kind: input, shape index: {}]
  %s7 = inlined_call_operand.hbm [shape: f32[2,1,96], index: 7, kind: input, shape index: {}]
  %s8 = inlined_call_operand.vmem [shape: bf16[2,32,32], index: 8, kind: input, shape index: {}]
  %s9 = inlined_call_operand.hbm [shape: f32[2,1,32], index: 9, kind: input, shape index: {}]
  %s10 = inlined_call_operand.vmem [shape: bf16[2,32,32], index: 10, kind: input, shape index: {}]
  %s11 = inlined_call_operand.hbm [shape: f32[2,1,32], index: 11, kind: input, shape index: {}]
  %s12 = inlined_call_operand.vmem [shape: bf16[2,32,64], index: 12, kind: input, shape index: {}]
  %s13 = inlined_call_operand.hbm [shape: f32[2,1,64], index: 13, kind: input, shape index: {}]
  %s14 = inlined_call_operand.vmem [shape: bf16[2,32,32], index: 14, kind: input, shape index: {}]
  %s15 = inlined_call_operand.hbm [shape: f32[2,1,32], index: 15, kind: input, shape index: {}]
  %s16 = inlined_call_operand.vmem [shape: bf16[2,32,128], index: 16, kind: input, shape index: {}]
  %s17 = inlined_call_operand.hbm [shape: f32[2,1,128], index: 17, kind: input, shape index: {}]
  %s18 = inlined_call_operand.vmem [shape: bf16[2,128,32], index: 18, kind: input, shape index: {}]
  %s19 = inlined_call_operand.hbm [shape: f32[2,1,32], index: 19, kind: input, shape index: {}]
  %s20 = inlined_call_operand.vmem [shape: f32[1,32], index: 20, kind: input, shape index: {}]
  %s21 = inlined_call_operand.vmem [shape: f32[1,32], index: 21, kind: input, shape index: {}]
  %s22 = inlined_call_operand.hbm [shape: f32[16,32], index: 22, kind: output, shape index: {}]
  %s23 = sld [smem:[#allocation0]]
  $region157: #{transformer_decoder.1} parent=0
    _
  %s25 = ssub.s32 1, %s23
  %s26 = scalar_select 0, %s25, %s23
  $region1: #{transformer_decoder.1} parent=0
    #allocation5 [shape = 'u8[1024]{0}', space=vmem, size = 0x400, scoped, tag = 'input window, operand 7']
    #allocation6 [shape = 's32[2]{0}', space=sflag, size = 0x8, scoped, tag = 'scoped memory for transformer_decoder.1']
    #allocation7 [shape = 's32[2]{0}', space=sflag, size = 0x8, scoped, tag = 'scoped memory for transformer_decoder.1']
    #allocation8 [shape = 'u8[1024]{0}', space=vmem, size = 0x400, scoped, tag = 'input window, operand 9']
    #allocation9 [shape = 's32[2]{0}', space=sflag, size = 0x8, scoped, tag = 'scoped memory for transformer_decoder.1']
    #allocation10 [shape = 'u8[1024]{0}', space=vmem, size = 0x400, scoped, tag = 'input window, operand 11']
    #allocation11 [shape = 'u8[1024]{0}', space=vmem, size = 0x400, scoped, tag = 'input window, operand 13']
    #allocation12 [shape = 's32[2]{0}', space=sflag, size = 0x8, scoped, tag = 'scoped memory for transformer_decoder.1']
    #allocation13 [shape = 'u8[1024]{0}', space=vmem, size = 0x400, scoped, tag = 'input window, operand 15']
    #allocation14 [shape = 'u8[1024]{0}', space=vmem, size = 0x400, scoped, tag = 'input window, operand 17']
    #allocation15 [shape = 's32[2]{0}', space=sflag, size = 0x8, scoped, tag = 'scoped memory for transformer_decoder.1']
    #allocation16 [shape = 'u8[1024]{0}', space=vmem, size = 0x400, scoped, tag = 'input window, operand 19']
    #allocation17 [shape = 'u8[8192]{0}', space=vmem, size = 0x2000, scoped, tag = 'output window, operand 0, single buffered']
    %27 = vsyncpa [#allocation6], 0
    %s28 = scalar_lea.sflag [#allocation6], 1
    %29 = vsyncpa %s28, 0
    %30 = vsyncpa [#allocation9], 0
    %s31 = scalar_lea.sflag [#allocation9], 1
    %32 = vsyncpa %s31, 0
    %33 = vsyncpa [#allocation12], 0
    %s34 = scalar_lea.sflag [#allocation12], 1
    %35 = vsyncpa %s34, 0
    %36 = vsyncpa [#allocation15], 0
    %s37 = scalar_lea.sflag [#allocation15], 1
    %38 = vsyncpa %s37, 0
    %39 = vsyncpa [#allocation7], 0
    loop: start=0, step=1, limit=4
    $region2: #{transformer_decoder.1} parent=1 // loop_pre_header
      _
    $region3: #{transformer_decoder.1} parent=1 // loop_header
      %s41 = sphi 0, %s45
      %p42 = scmp.ge.s32.totalorder %s41, 4
      %s48 = sphi 0, %s60
      %s49 = sphi 0, %s56
      %s50 = sphi 0, %s48
      %s51 = sphi 0, %s49
      %s52 = sphi 0, %s50
      %s53 = sphi 0, %s51
      %s63 = sphi 0, %s65
      %s66 = sphi 0, %s63
      %s67 = sphi 0, %s66
      %s83 = sphi 0, %s67
      %s89 = sphi 0, %s91
      %s92 = sphi 0, %s89
      %s93 = sphi 0, %s92
      %s109 = sphi 0, %s93
      %s115 = sphi 0, %s117
      %s118 = sphi 0, %s115
      %s119 = sphi 0, %s118
      %s135 = sphi 0, %s119
      %s141 = sphi 0, %s143
      %s144 = sphi 0, %s141
      %s145 = sphi 0, %s144
      %s161 = sphi 0, %s145
      %s167 = sphi 0, %s169
      %s170 = sphi 0, %s167
      %s171 = sphi 0, %s170
      %s187 = sphi 0, %s171
      %s193 = sphi 0, %s195
      %s196 = sphi 0, %s193
      %s197 = sphi 0, %s196
      %s213 = sphi 0, %s197
      %s219 = sphi 0, %s221
      %s222 = sphi 0, %s219
      %s223 = sphi 0, %s222
      %s239 = sphi 0, %s223
      %s245 = sphi 0, %s247
      %s248 = sphi 0, %s245
      %s249 = sphi 0, %s248
      %s265 = sphi 0, %s249
      %s271 = sphi 0, %s273
      %s274 = sphi 0, %s271
      %s275 = sphi 0, %s274
      %s291 = sphi 0, %s275
      %s297 = sphi 0, %s299
      %s300 = sphi 0, %s297
      %s301 = sphi 0, %s300
      %s317 = sphi 0, %s301
      %s323 = sphi 0, %s325
      %s326 = sphi 0, %s323
      %s327 = sphi 0, %s326
      %s343 = sphi 0, %s327
      %s349 = sphi 0, %s351
      %s352 = sphi 0, %s349
      %s353 = sphi 0, %s352
      %s369 = sphi 0, %s353
      %s375 = sphi 0, %s377
      %s378 = sphi 0, %s375
      %s379 = sphi 0, %s378
      %s395 = sphi 0, %s379
      %s401 = sphi 0, %s403
      %s404 = sphi 0, %s401
      %s405 = sphi 0, %s404
      %s421 = sphi 0, %s405
      %s427 = sphi 0, %s429
      %s430 = sphi 0, %s427
      %s431 = sphi 0, %s430
      %s447 = sphi 0, %s431
      %s453 = sphi 0, %s455
      %s456 = sphi 0, %s453
      %s457 = sphi 0, %s456
      %s473 = sphi 0, %s457
      %s479 = sphi 0, %s481
      %s482 = sphi 0, %s479
      %s483 = sphi 0, %s482
      %s499 = sphi 0, %s483
      %s505 = sphi 0, %s507
      %s508 = sphi 0, %s505
      %s509 = sphi 0, %s508
      %s525 = sphi 0, %s509
      %s531 = sphi 0, %s533
      %s534 = sphi 0, %s531
      %s535 = sphi 0, %s534
      %s551 = sphi 0, %s535
      %s557 = sphi 0, %s559
      %s560 = sphi 0, %s557
      %s561 = sphi 0, %s560
      %s577 = sphi 0, %s561
      %s581 = sphi 0, %s581
      %s583 = sphi 0, %s581
      %s584 = sphi 0, %s583
      %s598 = sphi 0, %s584
      %s602 = sphi 0, %s602
      %s604 = sphi 0, %s602
      %s605 = sphi 0, %s604
      %s619 = sphi 0, %s605
      %s625 = sphi 0, %s627
      %s628 = sphi 0, %s625
      %s629 = sphi 0, %s628
      %s645 = sphi 0, %s629
    $region4: #{transformer_decoder.1} parent=1 // loop_header_branch
      %44 = sbr.rel (%p42) target = $region8
    $region5: #{transformer_decoder.1} parent=1 // loop_body
      %s46 = ssub.s32 %s41, 1
      %s47 = ssub.s32 %s41, 2
      %s54 = sadd.s32 1, %s49
      %p55 = scmp.ge.s32.totalorder %s54, 2
      %s56 = scalar_select %p55, 0, %s54
      %s57 = sadd.s32 1, %s48
      %s58 = scalar_select %p55, %s57, %s48
      %p59 = scmp.ge.s32.totalorder %s58, 1
      %s60 = scalar_select %p59, 0, %s58
      %s61 = ssub.s32 %s48, %s60
      %p62 = scmp.eq.s32.totalorder %s61, 0
      %s64 = sadd.s32 %s63, 1
      %s65 = scalar_select %p62, %s63, %s64
      %p68 = pneg %p62
      %p69 = scmp.eq.s32.totalorder %s41, 1
      %p70 = por %p68, %p69
      %p71 = scmp.ne.s32.totalorder %s63, %s66
      %p72 = scmp.eq.s32.totalorder %s41, 0
      %p73 = por %p71, %p72
      %p74 = scmp.ne.s32.totalorder %s63, %s66
      %p75 = scmp.eq.s32.totalorder %s46, 1
      %p76 = por %p74, %p75
      %p77 = scmp.ne.s32.totalorder %s66, %s67
      %p78 = scmp.eq.s32.totalorder %s46, 0
      %p79 = por %p77, %p78
      %p80 = scmp.ne.s32.totalorder %s66, %s67
      %p81 = scmp.eq.s32.totalorder %s47, 1
      %p82 = por %p80, %p81
      %p84 = scmp.ne.s32.totalorder %s67, %s83
      %p85 = scmp.eq.s32.totalorder %s47, 0
      %p86 = por %p84, %p85
      %s87 = ssub.s32 %s48, %s60
      %p88 = scmp.eq.s32.totalorder %s87, 0
      %s90 = sadd.s32 %s89, 1
      %s91 = scalar_select %p88, %s89, %s90
      %p94 = pneg %p88
      %p95 = scmp.eq.s32.totalorder %s41, 1
      %p96 = por %p94, %p95
      %p97 = scmp.ne.s32.totalorder %s89, %s92
      %p98 = scmp.eq.s32.totalorder %s41, 0
      %p99 = por %p97, %p98
      %p100 = scmp.ne.s32.totalorder %s89, %s92
      %p101 = scmp.eq.s32.totalorder %s46, 1
      %p102 = por %p100, %p101
      %p103 = scmp.ne.s32.totalorder %s92, %s93
      %p104 = scmp.eq.s32.totalorder %s46, 0
      %p105 = por %p103, %p104
      %p106 = scmp.ne.s32.totalorder %s92, %s93
      %p107 = scmp.eq.s32.totalorder %s47, 1
      %p108 = por %p106, %p107
      %p110 = scmp.ne.s32.totalorder %s93, %s109
      %p111 = scmp.eq.s32.totalorder %s47, 0
      %p112 = por %p110, %p111
      %s113 = ssub.s32 %s48, %s60
      %p114 = scmp.eq.s32.totalorder %s113, 0
      %s116 = sadd.s32 %s115, 1
      %s117 = scalar_select %p114, %s115, %s116
      %p120 = pneg %p114
      %p121 = scmp.eq.s32.totalorder %s41, 1
      %p122 = por %p120, %p121
      %p123 = scmp.ne.s32.totalorder %s115, %s118
      %p124 = scmp.eq.s32.totalorder %s41, 0
      %p125 = por %p123, %p124
      %p126 = scmp.ne.s32.totalorder %s115, %s118
      %p127 = scmp.eq.s32.totalorder %s46, 1
      %p128 = por %p126, %p127
      %p129 = scmp.ne.s32.totalorder %s118, %s119
      %p130 = scmp.eq.s32.totalorder %s46, 0
      %p131 = por %p129, %p130
      %p132 = scmp.ne.s32.totalorder %s118, %s119
      %p133 = scmp.eq.s32.totalorder %s47, 1
      %p134 = por %p132, %p133
      %p136 = scmp.ne.s32.totalorder %s119, %s135
      %p137 = scmp.eq.s32.totalorder %s47, 0
      %p138 = por %p136, %p137
      %s139 = ssub.s32 %s48, %s60
      %p140 = scmp.eq.s32.totalorder %s139, 0
      %s142 = sadd.s32 %s141, 1
      %s143 = scalar_select %p140, %s141, %s142
      %p146 = pneg %p140
      %p147 = scmp.eq.s32.totalorder %s41, 1
      %p148 = por %p146, %p147
      %p149 = scmp.ne.s32.totalorder %s141, %s144
      %p150 = scmp.eq.s32.totalorder %s41, 0
      %p151 = por %p149, %p150
      %p152 = scmp.ne.s32.totalorder %s141, %s144
      %p153 = scmp.eq.s32.totalorder %s46, 1
      %p154 = por %p152, %p153
      %p155 = scmp.ne.s32.totalorder %s144, %s145
      %p156 = scmp.eq.s32.totalorder %s46, 0
      %p157 = por %p155, %p156
      %p158 = scmp.ne.s32.totalorder %s144, %s145
      %p159 = scmp.eq.s32.totalorder %s47, 1
      %p160 = por %p158, %p159
      %p162 = scmp.ne.s32.totalorder %s145, %s161
      %p163 = scmp.eq.s32.totalorder %s47, 0
      %p164 = por %p162, %p163
      %s165 = ssub.s32 %s49, %s56
      %p166 = scmp.eq.s32.totalorder %s165, 0
      %s168 = sadd.s32 %s167, 1
      %s169 = scalar_select %p166, %s167, %s168
      %p172 = pneg %p166
      %p173 = scmp.eq.s32.totalorder %s41, 1
      %p174 = por %p172, %p173
      %p175 = scmp.ne.s32.totalorder %s167, %s170
      %p176 = scmp.eq.s32.totalorder %s41, 0
      %p177 = por %p175, %p176
      %p178 = scmp.ne.s32.totalorder %s167, %s170
      %p179 = scmp.eq.s32.totalorder %s46, 1
      %p180 = por %p178, %p179
      %p181 = scmp.ne.s32.totalorder %s170, %s171
      %p182 = scmp.eq.s32.totalorder %s46, 0
      %p183 = por %p181, %p182
      %p184 = scmp.ne.s32.totalorder %s170, %s171
      %p185 = scmp.eq.s32.totalorder %s47, 1
      %p186 = por %p184, %p185
      %p188 = scmp.ne.s32.totalorder %s171, %s187
      %p189 = scmp.eq.s32.totalorder %s47, 0
      %p190 = por %p188, %p189
      %s191 = ssub.s32 %s49, %s56
      %p192 = scmp.eq.s32.totalorder %s191, 0
      %s194 = sadd.s32 %s193, 1
      %s195 = scalar_select %p192, %s193, %s194
      %p198 = pneg %p192
      %p199 = scmp.eq.s32.totalorder %s41, 1
      %p200 = por %p198, %p199
      %p201 = scmp.ne.s32.totalorder %s193, %s196
      %p202 = scmp.eq.s32.totalorder %s41, 0
      %p203 = por %p201, %p202
      %p204 = scmp.ne.s32.totalorder %s193, %s196
      %p205 = scmp.eq.s32.totalorder %s46, 1
      %p206 = por %p204, %p205
      %p207 = scmp.ne.s32.totalorder %s196, %s197
      %p208 = scmp.eq.s32.totalorder %s46, 0
      %p209 = por %p207, %p208
      %p210 = scmp.ne.s32.totalorder %s196, %s197
      %p211 = scmp.eq.s32.totalorder %s47, 1
      %p212 = por %p210, %p211
      %p214 = scmp.ne.s32.totalorder %s197, %s213
      %p215 = scmp.eq.s32.totalorder %s47, 0
      %p216 = por %p214, %p215
      %s217 = ssub.s32 %s49, %s56
      %p218 = scmp.eq.s32.totalorder %s217, 0
      %s220 = sadd.s32 %s219, 1
      %s221 = scalar_select %p218, %s219, %s220
      %p224 = pneg %p218
      %p225 = scmp.eq.s32.totalorder %s41, 1
      %p226 = por %p224, %p225
      %p227 = scmp.ne.s32.totalorder %s219, %s222
      %p228 = scmp.eq.s32.totalorder %s41, 0
      %p229 = por %p227, %p228
      %p230 = scmp.ne.s32.totalorder %s219, %s222
      %p231 = scmp.eq.s32.totalorder %s46, 1
      %p232 = por %p230, %p231
      %p233 = scmp.ne.s32.totalorder %s222, %s223
      %p234 = scmp.eq.s32.totalorder %s46, 0
      %p235 = por %p233, %p234
      %p236 = scmp.ne.s32.totalorder %s222, %s223
      %p237 = scmp.eq.s32.totalorder %s47, 1
      %p238 = por %p236, %p237
      %p240 = scmp.ne.s32.totalorder %s223, %s239
      %p241 = scmp.eq.s32.totalorder %s47, 0
      %p242 = por %p240, %p241
      %s243 = ssub.s32 %s49, %s56
      %p244 = scmp.eq.s32.totalorder %s243, 0
      %s246 = sadd.s32 %s245, 1
      %s247 = scalar_select %p244, %s245, %s246
      %p250 = pneg %p244
      %p251 = scmp.eq.s32.totalorder %s41, 1
      %p252 = por %p250, %p251
      %p253 = scmp.ne.s32.totalorder %s245, %s248
      %p254 = scmp.eq.s32.totalorder %s41, 0
      %p255 = por %p253, %p254
      %p256 = scmp.ne.s32.totalorder %s245, %s248
      %p257 = scmp.eq.s32.totalorder %s46, 1
      %p258 = por %p256, %p257
      %p259 = scmp.ne.s32.totalorder %s248, %s249
      %p260 = scmp.eq.s32.totalorder %s46, 0
      %p261 = por %p259, %p260
      %p262 = scmp.ne.s32.totalorder %s248, %s249
      %p263 = scmp.eq.s32.totalorder %s47, 1
      %p264 = por %p262, %p263
      %p266 = scmp.ne.s32.totalorder %s249, %s265
      %p267 = scmp.eq.s32.totalorder %s47, 0
      %p268 = por %p266, %p267
      %s269 = ssub.s32 %s49, %s56
      %p270 = scmp.eq.s32.totalorder %s269, 0
      %s272 = sadd.s32 %s271, 1
      %s273 = scalar_select %p270, %s271, %s272
      %p276 = pneg %p270
      %p277 = scmp.eq.s32.totalorder %s41, 1
      %p278 = por %p276, %p277
      %p279 = scmp.ne.s32.totalorder %s271, %s274
      %p280 = scmp.eq.s32.totalorder %s41, 0
      %p281 = por %p279, %p280
      %p282 = scmp.ne.s32.totalorder %s271, %s274
      %p283 = scmp.eq.s32.totalorder %s46, 1
      %p284 = por %p282, %p283
      %p285 = scmp.ne.s32.totalorder %s274, %s275
      %p286 = scmp.eq.s32.totalorder %s46, 0
      %p287 = por %p285, %p286
      %p288 = scmp.ne.s32.totalorder %s274, %s275
      %p289 = scmp.eq.s32.totalorder %s47, 1
      %p290 = por %p288, %p289
      %p292 = scmp.ne.s32.totalorder %s275, %s291
      %p293 = scmp.eq.s32.totalorder %s47, 0
      %p294 = por %p292, %p293
      %s295 = ssub.s32 %s49, %s56
      %p296 = scmp.eq.s32.totalorder %s295, 0
      %s298 = sadd.s32 %s297, 1
      %s299 = scalar_select %p296, %s297, %s298
      %p302 = pneg %p296
      %p303 = scmp.eq.s32.totalorder %s41, 1
      %p304 = por %p302, %p303
      %p305 = scmp.ne.s32.totalorder %s297, %s300
      %p306 = scmp.eq.s32.totalorder %s41, 0
      %p307 = por %p305, %p306
      %p308 = scmp.ne.s32.totalorder %s297, %s300
      %p309 = scmp.eq.s32.totalorder %s46, 1
      %p310 = por %p308, %p309
      %p311 = scmp.ne.s32.totalorder %s300, %s301
      %p312 = scmp.eq.s32.totalorder %s46, 0
      %p313 = por %p311, %p312
      %p314 = scmp.ne.s32.totalorder %s300, %s301
      %p315 = scmp.eq.s32.totalorder %s47, 1
      %p316 = por %p314, %p315
      %p318 = scmp.ne.s32.totalorder %s301, %s317
      %p319 = scmp.eq.s32.totalorder %s47, 0
      %p320 = por %p318, %p319
      %s321 = ssub.s32 %s49, %s56
      %p322 = scmp.eq.s32.totalorder %s321, 0
      %s324 = sadd.s32 %s323, 1
      %s325 = scalar_select %p322, %s323, %s324
      %p328 = pneg %p322
      %p329 = scmp.eq.s32.totalorder %s41, 1
      %p330 = por %p328, %p329
      %p331 = scmp.ne.s32.totalorder %s323, %s326
      %p332 = scmp.eq.s32.totalorder %s41, 0
      %p333 = por %p331, %p332
      %p334 = scmp.ne.s32.totalorder %s323, %s326
      %p335 = scmp.eq.s32.totalorder %s46, 1
      %p336 = por %p334, %p335
      %p337 = scmp.ne.s32.totalorder %s326, %s327
      %p338 = scmp.eq.s32.totalorder %s46, 0
      %p339 = por %p337, %p338
      %p340 = scmp.ne.s32.totalorder %s326, %s327
      %p341 = scmp.eq.s32.totalorder %s47, 1
      %p342 = por %p340, %p341
      %p344 = scmp.ne.s32.totalorder %s327, %s343
      %p345 = scmp.eq.s32.totalorder %s47, 0
      %p346 = por %p344, %p345
      %s347 = ssub.s32 %s49, %s56
      %p348 = scmp.eq.s32.totalorder %s347, 0
      %s350 = sadd.s32 %s349, 1
      %s351 = scalar_select %p348, %s349, %s350
      %p354 = pneg %p348
      %p355 = scmp.eq.s32.totalorder %s41, 1
      %p356 = por %p354, %p355
      %p357 = scmp.ne.s32.totalorder %s349, %s352
      %p358 = scmp.eq.s32.totalorder %s41, 0
      %p359 = por %p357, %p358
      %p360 = scmp.ne.s32.totalorder %s349, %s352
      %p361 = scmp.eq.s32.totalorder %s46, 1
      %p362 = por %p360, %p361
      %p363 = scmp.ne.s32.totalorder %s352, %s353
      %p364 = scmp.eq.s32.totalorder %s46, 0
      %p365 = por %p363, %p364
      %p366 = scmp.ne.s32.totalorder %s352, %s353
      %p367 = scmp.eq.s32.totalorder %s47, 1
      %p368 = por %p366, %p367
      %p370 = scmp.ne.s32.totalorder %s353, %s369
      %p371 = scmp.eq.s32.totalorder %s47, 0
      %p372 = por %p370, %p371
      %s373 = ssub.s32 %s49, %s56
      %p374 = scmp.eq.s32.totalorder %s373, 0
      %s376 = sadd.s32 %s375, 1
      %s377 = scalar_select %p374, %s375, %s376
      %p380 = pneg %p374
      %p381 = scmp.eq.s32.totalorder %s41, 1
      %p382 = por %p380, %p381
      %p383 = scmp.ne.s32.totalorder %s375, %s378
      %p384 = scmp.eq.s32.totalorder %s41, 0
      %p385 = por %p383, %p384
      %p386 = scmp.ne.s32.totalorder %s375, %s378
      %p387 = scmp.eq.s32.totalorder %s46, 1
      %p388 = por %p386, %p387
      %p389 = scmp.ne.s32.totalorder %s378, %s379
      %p390 = scmp.eq.s32.totalorder %s46, 0
      %p391 = por %p389, %p390
      %p392 = scmp.ne.s32.totalorder %s378, %s379
      %p393 = scmp.eq.s32.totalorder %s47, 1
      %p394 = por %p392, %p393
      %p396 = scmp.ne.s32.totalorder %s379, %s395
      %p397 = scmp.eq.s32.totalorder %s47, 0
      %p398 = por %p396, %p397
      %s399 = ssub.s32 %s49, %s56
      %p400 = scmp.eq.s32.totalorder %s399, 0
      %s402 = sadd.s32 %s401, 1
      %s403 = scalar_select %p400, %s401, %s402
      %p406 = pneg %p400
      %p407 = scmp.eq.s32.totalorder %s41, 1
      %p408 = por %p406, %p407
      %p409 = scmp.ne.s32.totalorder %s401, %s404
      %p410 = scmp.eq.s32.totalorder %s41, 0
      %p411 = por %p409, %p410
      %p412 = scmp.ne.s32.totalorder %s401, %s404
      %p413 = scmp.eq.s32.totalorder %s46, 1
      %p414 = por %p412, %p413
      %p415 = scmp.ne.s32.totalorder %s404, %s405
      %p416 = scmp.eq.s32.totalorder %s46, 0
      %p417 = por %p415, %p416
      %p418 = scmp.ne.s32.totalorder %s404, %s405
      %p419 = scmp.eq.s32.totalorder %s47, 1
      %p420 = por %p418, %p419
      %p422 = scmp.ne.s32.totalorder %s405, %s421
      %p423 = scmp.eq.s32.totalorder %s47, 0
      %p424 = por %p422, %p423
      %s425 = ssub.s32 %s49, %s56
      %p426 = scmp.eq.s32.totalorder %s425, 0
      %s428 = sadd.s32 %s427, 1
      %s429 = scalar_select %p426, %s427, %s428
      %p432 = pneg %p426
      %p433 = scmp.eq.s32.totalorder %s41, 1
      %p434 = por %p432, %p433
      %p435 = scmp.ne.s32.totalorder %s427, %s430
      %p436 = scmp.eq.s32.totalorder %s41, 0
      %p437 = por %p435, %p436
      %p438 = scmp.ne.s32.totalorder %s427, %s430
      %p439 = scmp.eq.s32.totalorder %s46, 1
      %p440 = por %p438, %p439
      %p441 = scmp.ne.s32.totalorder %s430, %s431
      %p442 = scmp.eq.s32.totalorder %s46, 0
      %p443 = por %p441, %p442
      %p444 = scmp.ne.s32.totalorder %s430, %s431
      %p445 = scmp.eq.s32.totalorder %s47, 1
      %p446 = por %p444, %p445
      %p448 = scmp.ne.s32.totalorder %s431, %s447
      %p449 = scmp.eq.s32.totalorder %s47, 0
      %p450 = por %p448, %p449
      %s451 = ssub.s32 %s49, %s56
      %p452 = scmp.eq.s32.totalorder %s451, 0
      %s454 = sadd.s32 %s453, 1
      %s455 = scalar_select %p452, %s453, %s454
      %p458 = pneg %p452
      %p459 = scmp.eq.s32.totalorder %s41, 1
      %p460 = por %p458, %p459
      %p461 = scmp.ne.s32.totalorder %s453, %s456
      %p462 = scmp.eq.s32.totalorder %s41, 0
      %p463 = por %p461, %p462
      %p464 = scmp.ne.s32.totalorder %s453, %s456
      %p465 = scmp.eq.s32.totalorder %s46, 1
      %p466 = por %p464, %p465
      %p467 = scmp.ne.s32.totalorder %s456, %s457
      %p468 = scmp.eq.s32.totalorder %s46, 0
      %p469 = por %p467, %p468
      %p470 = scmp.ne.s32.totalorder %s456, %s457
      %p471 = scmp.eq.s32.totalorder %s47, 1
      %p472 = por %p470, %p471
      %p474 = scmp.ne.s32.totalorder %s457, %s473
      %p475 = scmp.eq.s32.totalorder %s47, 0
      %p476 = por %p474, %p475
      %s477 = ssub.s32 %s49, %s56
      %p478 = scmp.eq.s32.totalorder %s477, 0
      %s480 = sadd.s32 %s479, 1
      %s481 = scalar_select %p478, %s479, %s480
      %p484 = pneg %p478
      %p485 = scmp.eq.s32.totalorder %s41, 1
      %p486 = por %p484, %p485
      %p487 = scmp.ne.s32.totalorder %s479, %s482
      %p488 = scmp.eq.s32.totalorder %s41, 0
      %p489 = por %p487, %p488
      %p490 = scmp.ne.s32.totalorder %s479, %s482
      %p491 = scmp.eq.s32.totalorder %s46, 1
      %p492 = por %p490, %p491
      %p493 = scmp.ne.s32.totalorder %s482, %s483
      %p494 = scmp.eq.s32.totalorder %s46, 0
      %p495 = por %p493, %p494
      %p496 = scmp.ne.s32.totalorder %s482, %s483
      %p497 = scmp.eq.s32.totalorder %s47, 1
      %p498 = por %p496, %p497
      %p500 = scmp.ne.s32.totalorder %s483, %s499
      %p501 = scmp.eq.s32.totalorder %s47, 0
      %p502 = por %p500, %p501
      %s503 = ssub.s32 %s49, %s56
      %p504 = scmp.eq.s32.totalorder %s503, 0
      %s506 = sadd.s32 %s505, 1
      %s507 = scalar_select %p504, %s505, %s506
      %p510 = pneg %p504
      %p511 = scmp.eq.s32.totalorder %s41, 1
      %p512 = por %p510, %p511
      %p513 = scmp.ne.s32.totalorder %s505, %s508
      %p514 = scmp.eq.s32.totalorder %s41, 0
      %p515 = por %p513, %p514
      %p516 = scmp.ne.s32.totalorder %s505, %s508
      %p517 = scmp.eq.s32.totalorder %s46, 1
      %p518 = por %p516, %p517
      %p519 = scmp.ne.s32.totalorder %s508, %s509
      %p520 = scmp.eq.s32.totalorder %s46, 0
      %p521 = por %p519, %p520
      %p522 = scmp.ne.s32.totalorder %s508, %s509
      %p523 = scmp.eq.s32.totalorder %s47, 1
      %p524 = por %p522, %p523
      %p526 = scmp.ne.s32.totalorder %s509, %s525
      %p527 = scmp.eq.s32.totalorder %s47, 0
      %p528 = por %p526, %p527
      %s529 = ssub.s32 %s49, %s56
      %p530 = scmp.eq.s32.totalorder %s529, 0
      %s532 = sadd.s32 %s531, 1
      %s533 = scalar_select %p530, %s531, %s532
      %p536 = pneg %p530
      %p537 = scmp.eq.s32.totalorder %s41, 1
      %p538 = por %p536, %p537
      %p539 = scmp.ne.s32.totalorder %s531, %s534
      %p540 = scmp.eq.s32.totalorder %s41, 0
      %p541 = por %p539, %p540
      %p542 = scmp.ne.s32.totalorder %s531, %s534
      %p543 = scmp.eq.s32.totalorder %s46, 1
      %p544 = por %p542, %p543
      %p545 = scmp.ne.s32.totalorder %s534, %s535
      %p546 = scmp.eq.s32.totalorder %s46, 0
      %p547 = por %p545, %p546
      %p548 = scmp.ne.s32.totalorder %s534, %s535
      %p549 = scmp.eq.s32.totalorder %s47, 1
      %p550 = por %p548, %p549
      %p552 = scmp.ne.s32.totalorder %s535, %s551
      %p553 = scmp.eq.s32.totalorder %s47, 0
      %p554 = por %p552, %p553
      %s555 = ssub.s32 %s49, %s56
      %p556 = scmp.eq.s32.totalorder %s555, 0
      %s558 = sadd.s32 %s557, 1
      %s559 = scalar_select %p556, %s557, %s558
      %p562 = pneg %p556
      %p563 = scmp.eq.s32.totalorder %s41, 1
      %p564 = por %p562, %p563
      %p565 = scmp.ne.s32.totalorder %s557, %s560
      %p566 = scmp.eq.s32.totalorder %s41, 0
      %p567 = por %p565, %p566
      %p568 = scmp.ne.s32.totalorder %s557, %s560
      %p569 = scmp.eq.s32.totalorder %s46, 1
      %p570 = por %p568, %p569
      %p571 = scmp.ne.s32.totalorder %s560, %s561
      %p572 = scmp.eq.s32.totalorder %s46, 0
      %p573 = por %p571, %p572
      %p574 = scmp.ne.s32.totalorder %s560, %s561
      %p575 = scmp.eq.s32.totalorder %s47, 1
      %p576 = por %p574, %p575
      %p578 = scmp.ne.s32.totalorder %s561, %s577
      %p579 = scmp.eq.s32.totalorder %s47, 0
      %p580 = por %p578, %p579
      %s582 = sadd.s32 %s581, 1
      %p585 = scmp.eq.s32.totalorder %s41, 1
      %p586 = scmp.ne.s32.totalorder %s581, %s583
      %p587 = scmp.eq.s32.totalorder %s41, 0
      %p588 = por %p586, %p587
      %p589 = scmp.ne.s32.totalorder %s581, %s583
      %p590 = scmp.eq.s32.totalorder %s46, 1
      %p591 = por %p589, %p590
      %p592 = scmp.ne.s32.totalorder %s583, %s584
      %p593 = scmp.eq.s32.totalorder %s46, 0
      %p594 = por %p592, %p593
      %p595 = scmp.ne.s32.totalorder %s583, %s584
      %p596 = scmp.eq.s32.totalorder %s47, 1
      %p597 = por %p595, %p596
      %p599 = scmp.ne.s32.totalorder %s584, %s598
      %p600 = scmp.eq.s32.totalorder %s47, 0
      %p601 = por %p599, %p600
      %s603 = sadd.s32 %s602, 1
      %p606 = scmp.eq.s32.totalorder %s41, 1
      %p607 = scmp.ne.s32.totalorder %s602, %s604
      %p608 = scmp.eq.s32.totalorder %s41, 0
      %p609 = por %p607, %p608
      %p610 = scmp.ne.s32.totalorder %s602, %s604
      %p611 = scmp.eq.s32.totalorder %s46, 1
      %p612 = por %p610, %p611
      %p613 = scmp.ne.s32.totalorder %s604, %s605
      %p614 = scmp.eq.s32.totalorder %s46, 0
      %p615 = por %p613, %p614
      %p616 = scmp.ne.s32.totalorder %s604, %s605
      %p617 = scmp.eq.s32.totalorder %s47, 1
      %p618 = por %p616, %p617
      %p620 = scmp.ne.s32.totalorder %s605, %s619
      %p621 = scmp.eq.s32.totalorder %s47, 0
      %p622 = por %p620, %p621
      %s623 = ssub.s32 %s48, %s60
      %p624 = scmp.eq.s32.totalorder %s623, 0
      %s626 = sadd.s32 %s625, 1
      %s627 = scalar_select %p624, %s625, %s626
      %p630 = pneg %p624
      %p631 = scmp.eq.s32.totalorder %s41, 1
      %p632 = por %p630, %p631
      %p633 = scmp.ne.s32.totalorder %s625, %s628
      %p634 = scmp.eq.s32.totalorder %s41, 0
      %p635 = por %p633, %p634
      %p636 = scmp.ne.s32.totalorder %s625, %s628
      %p637 = scmp.eq.s32.totalorder %s46, 1
      %p638 = por %p636, %p637
      %p639 = scmp.ne.s32.totalorder %s628, %s629
      %p640 = scmp.eq.s32.totalorder %s46, 0
      %p641 = por %p639, %p640
      %p642 = scmp.ne.s32.totalorder %s628, %s629
      %p643 = scmp.eq.s32.totalorder %s47, 1
      %p644 = por %p642, %p643
      %p646 = scmp.ne.s32.totalorder %s629, %s645
      %p647 = scmp.eq.s32.totalorder %s47, 0
      %p648 = por %p646, %p647
      %p649 = scmp.le.s32.totalorder 1, %s41
      %p650 = scmp.lt.s32.totalorder %s41, 3
      %p651 = pnand %p649, %p650
      %p652 = pneg %p651
      // Predicated region
      $region9: #{transformer_decoder.1} parent=5 // pred_check
        _
      $region10: #{transformer_decoder.1} parent=5 // pred_check_branch
        %654 = sbr.rel (%p651) target = $region12
      $region11: #{transformer_decoder.1} parent=5 // pred_region
        %s655 = ssub.s32 %s41, 1
        // Predicated region
        $region13: #{transformer_decoder.1} parent=11 // pred_check
          %p656 = pneg %p79
        $region14: #{transformer_decoder.1} parent=11 // pred_check_branch
          %658 = sbr.rel (%p656) target = $region16
        $region15: #{transformer_decoder.1} parent=11 // pred_region
          %s659 = smul.u32 2, %s50
          %p660 = scmp.lt.s32.totalorder %s659, 1
          %s661 = scalar_select %p660, %s659, 1
          %s662 = smul.addr %s661, 8
          %s663 = scalar_lea.vmem %s0, %s662
          %s664 = smul.u32 2, %s50
        $region16: #{transformer_decoder.1} parent=11 // pred_fallthru
          _
        // Predicated region
        $region17: #{transformer_decoder.1} parent=11 // pred_check
          %p665 = pneg %p105
        $region18: #{transformer_decoder.1} parent=11 // pred_check_branch
          %667 = sbr.rel (%p665) target = $region20
        $region19: #{transformer_decoder.1} parent=11 // pred_region
          %s668 = smul.u32 2, %s50
          %p669 = scmp.lt.s32.totalorder %s668, 1
          %s670 = scalar_select %p669, %s668, 1
          %s671 = smul.addr %s670, 8
          %s672 = scalar_lea.vmem %s1, %s671
          %s673 = smul.u32 2, %s50
        $region20: #{transformer_decoder.1} parent=11 // pred_fallthru
          _
        // Predicated region
        $region21: #{transformer_decoder.1} parent=11 // pred_check
          %p674 = pneg %p131
        $region22: #{transformer_decoder.1} parent=11 // pred_check_branch
          %676 = sbr.rel (%p674) target = $region24
        $region23: #{transformer_decoder.1} parent=11 // pred_region
          %s677 = smul.u32 2, %s50
          %p678 = scmp.lt.s32.totalorder %s677, 1
          %s679 = scalar_select %p678, %s677, 1
          %s680 = scalar_lea.vmem %s2, %s679
          %s681 = smul.u32 2, %s50
        $region24: #{transformer_decoder.1} parent=11 // pred_fallthru
          _
        // Predicated region
        $region25: #{transformer_decoder.1} parent=11 // pred_check
          %p682 = pneg %p157
        $region26: #{transformer_decoder.1} parent=11 // pred_check_branch
          %684 = sbr.rel (%p682) target = $region28
        $region27: #{transformer_decoder.1} parent=11 // pred_region
          %s685 = smul.u32 2, %s50
          %p686 = scmp.lt.s32.totalorder %s685, 1
          %s687 = scalar_select %p686, %s685, 1
          %s688 = scalar_lea.vmem %s3, %s687
          %s689 = smul.u32 2, %s50
        $region28: #{transformer_decoder.1} parent=11 // pred_fallthru
          _
        // Predicated region
        $region29: #{transformer_decoder.1} parent=11 // pred_check
          %p690 = pneg %p594
        $region30: #{transformer_decoder.1} parent=11 // pred_check_branch
          %692 = sbr.rel (%p690) target = $region32
        $region31: #{transformer_decoder.1} parent=11 // pred_region
          _
        $region32: #{transformer_decoder.1} parent=11 // pred_fallthru
          _
        // Predicated region
        $region33: #{transformer_decoder.1} parent=11 // pred_check
          %p693 = pneg %p615
        $region34: #{transformer_decoder.1} parent=11 // pred_check_branch
          %695 = sbr.rel (%p693) target = $region36
        $region35: #{transformer_decoder.1} parent=11 // pred_region
          _
        $region36: #{transformer_decoder.1} parent=11 // pred_fallthru
          _
      $region12: #{transformer_decoder.1} parent=5 // pred_fallthru
        _
      %p696 = scmp.lt.s32.totalorder %s41, 2
      // Predicated region
      $region37: #{transformer_decoder.1} parent=5 // pred_check
        %p697 = pneg %p696
      $region38: #{transformer_decoder.1} parent=5 // pred_check_branch
        %699 = sbr.rel (%p697) target = $region40
      $region39: #{transformer_decoder.1} parent=5 // pred_region
        // Predicated region
        $region41: #{transformer_decoder.1} parent=39 // pred_check
          %p700 = pneg %p177
        $region42: #{transformer_decoder.1} parent=39 // pred_check_branch
          %702 = sbr.rel (%p700) target = $region44
        $region43: #{transformer_decoder.1} parent=39 // pred_region
          %p703 = scmp.lt.s32.totalorder %s49, 1
          %s704 = scalar_select %p703, %s49, 1
          %s705 = smul.addr %s704, 4
          %s706 = scalar_lea.vmem %s4, %s705
        $region44: #{transformer_decoder.1} parent=39 // pred_fallthru
          _
        // Predicated region
        $region45: #{transformer_decoder.1} parent=39 // pred_check
          %p707 = pneg %p203
        $region46: #{transformer_decoder.1} parent=39 // pred_check_branch
          %709 = sbr.rel (%p707) target = $region48
        $region47: #{transformer_decoder.1} parent=39 // pred_region
          %p710 = scmp.lt.s32.totalorder %s49, 1
          %s711 = scalar_select %p710, %s49, 1
          %s712 = smul.addr %s711, 4
          %s713 = scalar_lea.vmem %s5, %s712
        $region48: #{transformer_decoder.1} parent=39 // pred_fallthru
          _
        // Predicated region
        $region49: #{transformer_decoder.1} parent=39 // pred_check
          %p714 = pneg %p229
        $region50: #{transformer_decoder.1} parent=39 // pred_check_branch
          %716 = sbr.rel (%p714) target = $region52
        $region51: #{transformer_decoder.1} parent=39 // pred_region
          %p717 = scmp.lt.s32.totalorder %s49, 1
          %s718 = scalar_select %p717, %s49, 1
          %s719 = smul.addr %s718, 4
          %s720 = smul.addr %s719, 4
          %s721 = scalar_lea.vmem %s6, %s720
        $region52: #{transformer_decoder.1} parent=39 // pred_fallthru
          _
        // Predicated region
        $region53: #{transformer_decoder.1} parent=39 // pred_check
          %p722 = pneg %p255
        $region54: #{transformer_decoder.1} parent=39 // pred_check_branch
          %724 = sbr.rel (%p722) target = $region56
        $region55: #{transformer_decoder.1} parent=39 // pred_region
          %s725 = sand.u32 %s245, 1
          %s726 = scalar_lea.sflag [#allocation6], %s725
          %s727 = sand.u32 %s245, 1
          %s728 = scalar_lea.vmem [#allocation5], %s727
          %s730 = ssub.s32 16, 16
          %731 = vsyncadd %s726, %s730
          %s732 = smul.addr %s49, 16
          %s733 = scalar_lea.hbm %s7, %s732
          %s735 = sshll.u32 %s728, 4
          %s736 = int_to_ptr.vmem [resolvable:$true] %s735
          %738 = dma.hbm_to_vmem [thread:$0]  %s733, 16, %s736, %s726
        $region56: #{transformer_decoder.1} parent=39 // pred_fallthru
          _
        // Predicated region
        $region57: #{transformer_decoder.1} parent=39 // pred_check
          %p739 = pneg %p281
        $region58: #{transformer_decoder.1} parent=39 // pred_check_branch
          %741 = sbr.rel (%p739) target = $region60
        $region59: #{transformer_decoder.1} parent=39 // pred_region
          %p742 = scmp.lt.s32.totalorder %s49, 1
          %s743 = scalar_select %p742, %s49, 1
          %s744 = smul.addr %s743, 4
          %s745 = smul.addr %s744, 4
          %s746 = scalar_lea.vmem %s8, %s745
        $region60: #{transformer_decoder.1} parent=39 // pred_fallthru
          _
        // Predicated region
        $region61: #{transformer_decoder.1} parent=39 // pred_check
          %p747 = pneg %p307
        $region62: #{transformer_decoder.1} parent=39 // pred_check_branch
          %749 = sbr.rel (%p747) target = $region64
        $region63: #{transformer_decoder.1} parent=39 // pred_region
          %s750 = sand.u32 %s41, 1
          %s751 = scalar_lea.sflag [#allocation9], %s750
          %s752 = sand.u32 %s297, 1
          %s753 = scalar_lea.vmem [#allocation8], %s752
          %s755 = ssub.s32 16, 16
          %756 = vsyncadd %s751, %s755
          %s757 = smul.addr %s49, 16
          %s758 = scalar_lea.hbm %s9, %s757
          %s760 = sshll.u32 %s753, 4
          %s761 = int_to_ptr.vmem [resolvable:$true] %s760
          %763 = dma.hbm_to_vmem [thread:$0]  %s758, 16, %s761, %s751
        $region64: #{transformer_decoder.1} parent=39 // pred_fallthru
          _
        // Predicated region
        $region65: #{transformer_decoder.1} parent=39 // pred_check
          %p764 = pneg %p333
        $region66: #{transformer_decoder.1} parent=39 // pred_check_branch
          %766 = sbr.rel (%p764) target = $region68
        $region67: #{transformer_decoder.1} parent=39 // pred_region
          %p767 = scmp.lt.s32.totalorder %s49, 1
          %s768 = scalar_select %p767, %s49, 1
          %s769 = smul.addr %s768, 4
          %s770 = smul.addr %s769, 4
          %s771 = scalar_lea.vmem %s10, %s770
        $region68: #{transformer_decoder.1} parent=39 // pred_fallthru
          _
        // Predicated region
        $region69: #{transformer_decoder.1} parent=39 // pred_check
          %p772 = pneg %p359
        $region70: #{transformer_decoder.1} parent=39 // pred_check_branch
          %774 = sbr.rel (%p772) target = $region72
        $region71: #{transformer_decoder.1} parent=39 // pred_region
          %s775 = sand.u32 %s41, 1
          %s776 = scalar_lea.sflag [#allocation9], %s775
          %s777 = sand.u32 %s349, 1
          %s778 = scalar_lea.vmem [#allocation10], %s777
          %s780 = ssub.s32 16, 16
          %781 = vsyncadd %s776, %s780
          %s782 = smul.addr %s49, 16
          %s783 = scalar_lea.hbm %s11, %s782
          %s785 = sshll.u32 %s778, 4
          %s786 = int_to_ptr.vmem [resolvable:$true] %s785
          %788 = dma.hbm_to_vmem [thread:$0]  %s783, 16, %s786, %s776
        $region72: #{transformer_decoder.1} parent=39 // pred_fallthru
          _
        // Predicated region
        $region73: #{transformer_decoder.1} parent=39 // pred_check
          %p789 = pneg %p385
        $region74: #{transformer_decoder.1} parent=39 // pred_check_branch
          %791 = sbr.rel (%p789) target = $region76
        $region75: #{transformer_decoder.1} parent=39 // pred_region
          %p792 = scmp.lt.s32.totalorder %s49, 1
          %s793 = scalar_select %p792, %s49, 1
          %s794 = smul.addr %s793, 4
          %s795 = smul.addr %s794, 4
          %s796 = scalar_lea.vmem %s12, %s795
        $region76: #{transformer_decoder.1} parent=39 // pred_fallthru
          _
        // Predicated region
        $region77: #{transformer_decoder.1} parent=39 // pred_check
          %p797 = pneg %p411
        $region78: #{transformer_decoder.1} parent=39 // pred_check_branch
          %799 = sbr.rel (%p797) target = $region80
        $region79: #{transformer_decoder.1} parent=39 // pred_region
          %s800 = sand.u32 %s41, 1
          %s801 = scalar_lea.sflag [#allocation12], %s800
          %s802 = sand.u32 %s401, 1
          %s803 = scalar_lea.vmem [#allocation11], %s802
          %s805 = ssub.s32 16, 16
          %806 = vsyncadd %s801, %s805
          %s807 = smul.addr %s49, 16
          %s808 = scalar_lea.hbm %s13, %s807
          %s810 = sshll.u32 %s803, 4
          %s811 = int_to_ptr.vmem [resolvable:$true] %s810
          %813 = dma.hbm_to_vmem [thread:$0]  %s808, 16, %s811, %s801
        $region80: #{transformer_decoder.1} parent=39 // pred_fallthru
          _
        // Predicated region
        $region81: #{transformer_decoder.1} parent=39 // pred_check
          %p814 = pneg %p437
        $region82: #{transformer_decoder.1} parent=39 // pred_check_branch
          %816 = sbr.rel (%p814) target = $region84
        $region83: #{transformer_decoder.1} parent=39 // pred_region
          %p817 = scmp.lt.s32.totalorder %s49, 1
          %s818 = scalar_select %p817, %s49, 1
          %s819 = smul.addr %s818, 4
          %s820 = smul.addr %s819, 4
          %s821 = scalar_lea.vmem %s14, %s820
        $region84: #{transformer_decoder.1} parent=39 // pred_fallthru
          _
        // Predicated region
        $region85: #{transformer_decoder.1} parent=39 // pred_check
          %p822 = pneg %p463
        $region86: #{transformer_decoder.1} parent=39 // pred_check_branch
          %824 = sbr.rel (%p822) target = $region88
        $region87: #{transformer_decoder.1} parent=39 // pred_region
          %s825 = sand.u32 %s41, 1
          %s826 = scalar_lea.sflag [#allocation12], %s825
          %s827 = sand.u32 %s453, 1
          %s828 = scalar_lea.vmem [#allocation13], %s827
          %s830 = ssub.s32 16, 16
          %831 = vsyncadd %s826, %s830
          %s832 = smul.addr %s49, 16
          %s833 = scalar_lea.hbm %s15, %s832
          %s835 = sshll.u32 %s828, 4
          %s836 = int_to_ptr.vmem [resolvable:$true] %s835
          %838 = dma.hbm_to_vmem [thread:$0]  %s833, 16, %s836, %s826
        $region88: #{transformer_decoder.1} parent=39 // pred_fallthru
          _
        // Predicated region
        $region89: #{transformer_decoder.1} parent=39 // pred_check
          %p839 = pneg %p489
        $region90: #{transformer_decoder.1} parent=39 // pred_check_branch
          %841 = sbr.rel (%p839) target = $region92
        $region91: #{transformer_decoder.1} parent=39 // pred_region
          %p842 = scmp.lt.s32.totalorder %s49, 1
          %s843 = scalar_select %p842, %s49, 1
          %s844 = smul.addr %s843, 4
          %s845 = smul.addr %s844, 4
          %s846 = scalar_lea.vmem %s16, %s845
        $region92: #{transformer_decoder.1} parent=39 // pred_fallthru
          _
        // Predicated region
        $region93: #{transformer_decoder.1} parent=39 // pred_check
          %p847 = pneg %p515
        $region94: #{transformer_decoder.1} parent=39 // pred_check_branch
          %849 = sbr.rel (%p847) target = $region96
        $region95: #{transformer_decoder.1} parent=39 // pred_region
          %s850 = sand.u32 %s41, 1
          %s851 = scalar_lea.sflag [#allocation15], %s850
          %s852 = sand.u32 %s505, 1
          %s853 = scalar_lea.vmem [#allocation14], %s852
          %s855 = ssub.s32 16, 16
          %856 = vsyncadd %s851, %s855
          %s857 = smul.addr %s49, 16
          %s858 = scalar_lea.hbm %s17, %s857
          %s860 = sshll.u32 %s853, 4
          %s861 = int_to_ptr.vmem [resolvable:$true] %s860
          %863 = dma.hbm_to_vmem [thread:$0]  %s858, 16, %s861, %s851
        $region96: #{transformer_decoder.1} parent=39 // pred_fallthru
          _
        // Predicated region
        $region97: #{transformer_decoder.1} parent=39 // pred_check
          %p864 = pneg %p541
        $region98: #{transformer_decoder.1} parent=39 // pred_check_branch
          %866 = sbr.rel (%p864) target = $region100
        $region99: #{transformer_decoder.1} parent=39 // pred_region
          %p867 = scmp.lt.s32.totalorder %s49, 1
          %s868 = scalar_select %p867, %s49, 1
          %s869 = smul.addr %s868, 16
          %s870 = smul.addr %s869, 4
          %s871 = scalar_lea.vmem %s18, %s870
        $region100: #{transformer_decoder.1} parent=39 // pred_fallthru
          _
        // Predicated region
        $region101: #{transformer_decoder.1} parent=39 // pred_check
          %p872 = pneg %p567
        $region102: #{transformer_decoder.1} parent=39 // pred_check_branch
          %874 = sbr.rel (%p872) target = $region104
        $region103: #{transformer_decoder.1} parent=39 // pred_region
          %s875 = sand.u32 %s41, 1
          %s876 = scalar_lea.sflag [#allocation15], %s875
          %s877 = sand.u32 %s557, 1
          %s878 = scalar_lea.vmem [#allocation16], %s877
          %s880 = ssub.s32 16, 16
          %881 = vsyncadd %s876, %s880
          %s882 = smul.addr %s49, 16
          %s883 = scalar_lea.hbm %s19, %s882
          %s885 = sshll.u32 %s878, 4
          %s886 = int_to_ptr.vmem [resolvable:$true] %s885
          %888 = dma.hbm_to_vmem [thread:$0]  %s883, 16, %s886, %s876
        $region104: #{transformer_decoder.1} parent=39 // pred_fallthru
          _
      $region40: #{transformer_decoder.1} parent=5 // pred_fallthru
        _
      %p889 = scmp.le.s32.totalorder 1, %s41
      %p890 = scmp.lt.s32.totalorder %s41, 3
      %p891 = pnand %p889, %p890
      %p892 = pneg %p891
      // Predicated region
      $region105: #{transformer_decoder.1} parent=5 // pred_check
        _
      $region106: #{transformer_decoder.1} parent=5 // pred_check_branch
        %894 = sbr.rel (%p891) target = $region108
      $region107: #{transformer_decoder.1} parent=5 // pred_region
        %s895 = ssub.s32 %s41, 1
        %s896 = sand.u32 %s248, 1
        %s897 = scalar_lea.sflag [#allocation6], %s896
        %s898 = sand.u32 %s248, 1
        %s899 = scalar_lea.vmem [#allocation5], %s898
        // Predicated region
        $region109: #{transformer_decoder.1} parent=107 // pred_check
          %p900 = pneg %p261
        $region110: #{transformer_decoder.1} parent=107 // pred_check_branch
          %902 = sbr.rel (%p900) target = $region112
        $region111: #{transformer_decoder.1} parent=107 // pred_region
          %903 = dma.done %s897, 16
        $region112: #{transformer_decoder.1} parent=107 // pred_fallthru
          _
        %s904 = sand.u32 %s46, 1
        %s905 = scalar_lea.sflag [#allocation9], %s904
        %s906 = sand.u32 %s300, 1
        %s907 = scalar_lea.vmem [#allocation8], %s906
        // Predicated region
        $region113: #{transformer_decoder.1} parent=107 // pred_check
          %p908 = pneg %p313
        $region114: #{transformer_decoder.1} parent=107 // pred_check_branch
          %910 = sbr.rel (%p908) target = $region116
        $region115: #{transformer_decoder.1} parent=107 // pred_region
          %911 = dma.done %s905, 16
        $region116: #{transformer_decoder.1} parent=107 // pred_fallthru
          _
        %s912 = sand.u32 %s46, 1
        %s913 = scalar_lea.sflag [#allocation9], %s912
        %s914 = sand.u32 %s352, 1
        %s915 = scalar_lea.vmem [#allocation10], %s914
        // Predicated region
        $region117: #{transformer_decoder.1} parent=107 // pred_check
          %p916 = pneg %p365
        $region118: #{transformer_decoder.1} parent=107 // pred_check_branch
          %918 = sbr.rel (%p916) target = $region120
        $region119: #{transformer_decoder.1} parent=107 // pred_region
          %919 = dma.done %s913, 16
        $region120: #{transformer_decoder.1} parent=107 // pred_fallthru
          _
        %s920 = sand.u32 %s46, 1
        %s921 = scalar_lea.sflag [#allocation12], %s920
        %s922 = sand.u32 %s404, 1
        %s923 = scalar_lea.vmem [#allocation11], %s922
        // Predicated region
        $region121: #{transformer_decoder.1} parent=107 // pred_check
          %p924 = pneg %p417
        $region122: #{transformer_decoder.1} parent=107 // pred_check_branch
          %926 = sbr.rel (%p924) target = $region124
        $region123: #{transformer_decoder.1} parent=107 // pred_region
          %927 = dma.done %s921, 16
        $region124: #{transformer_decoder.1} parent=107 // pred_fallthru
          _
        %s928 = sand.u32 %s46, 1
        %s929 = scalar_lea.sflag [#allocation12], %s928
        %s930 = sand.u32 %s456, 1
        %s931 = scalar_lea.vmem [#allocation13], %s930
        // Predicated region
        $region125: #{transformer_decoder.1} parent=107 // pred_check
          %p932 = pneg %p469
        $region126: #{transformer_decoder.1} parent=107 // pred_check_branch
          %934 = sbr.rel (%p932) target = $region128
        $region127: #{transformer_decoder.1} parent=107 // pred_region
          %935 = dma.done %s929, 16
        $region128: #{transformer_decoder.1} parent=107 // pred_fallthru
          _
        %s936 = sand.u32 %s46, 1
        %s937 = scalar_lea.sflag [#allocation15], %s936
        %s938 = sand.u32 %s508, 1
        %s939 = scalar_lea.vmem [#allocation14], %s938
        // Predicated region
        $region129: #{transformer_decoder.1} parent=107 // pred_check
          %p940 = pneg %p521
        $region130: #{transformer_decoder.1} parent=107 // pred_check_branch
          %942 = sbr.rel (%p940) target = $region132
        $region131: #{transformer_decoder.1} parent=107 // pred_region
          %943 = dma.done %s937, 16
        $region132: #{transformer_decoder.1} parent=107 // pred_fallthru
          _
        %s944 = sand.u32 %s46, 1
        %s945 = scalar_lea.sflag [#allocation15], %s944
        %s946 = sand.u32 %s560, 1
        %s947 = scalar_lea.vmem [#allocation16], %s946
        // Predicated region
        $region133: #{transformer_decoder.1} parent=107 // pred_check
          %p948 = pneg %p573
        $region134: #{transformer_decoder.1} parent=107 // pred_check_branch
          %950 = sbr.rel (%p948) target = $region136
        $region135: #{transformer_decoder.1} parent=107 // pred_region
          %951 = dma.done %s945, 16
        $region136: #{transformer_decoder.1} parent=107 // pred_fallthru
          _
        %s952 = smul.u32 2, %s50
        %p953 = scmp.lt.s32.totalorder %s952, 1
        %s954 = scalar_select %p953, %s952, 1
        %s955 = smul.addr %s954, 8
        %s956 = scalar_lea.vmem %s0, %s955
        %p957 = pneg %p79
        %p958 = pneg %p76
        %s959 = smul.u32 2, %s50
        %p960 = scmp.lt.s32.totalorder %s959, 1
        %s961 = scalar_select %p960, %s959, 1
        %s962 = smul.addr %s961, 8
        %s963 = scalar_lea.vmem %s1, %s962
        %p964 = pneg %p105
        %p965 = pneg %p102
        %s966 = smul.u32 2, %s50
        %p967 = scmp.lt.s32.totalorder %s966, 1
        %s968 = scalar_select %p967, %s966, 1
        %s969 = scalar_lea.vmem %s2, %s968
        %p970 = pneg %p131
        %p971 = pneg %p128
        %s972 = smul.u32 2, %s50
        %p973 = scmp.lt.s32.totalorder %s972, 1
        %s974 = scalar_select %p973, %s972, 1
        %s975 = scalar_lea.vmem %s3, %s974
        %p976 = pneg %p157
        %p977 = pneg %p154
        %p978 = scmp.lt.s32.totalorder %s51, 1
        %s979 = scalar_select %p978, %s51, 1
        %s980 = smul.addr %s979, 4
        %s981 = scalar_lea.vmem %s4, %s980
        %p982 = pneg %p183
        %p983 = pneg %p180
        %p984 = scmp.lt.s32.totalorder %s51, 1
        %s985 = scalar_select %p984, %s51, 1
        %s986 = smul.addr %s985, 4
        %s987 = scalar_lea.vmem %s5, %s986
        %p988 = pneg %p209
        %p989 = pneg %p206
        %p990 = scmp.lt.s32.totalorder %s51, 1
        %s991 = scalar_select %p990, %s51, 1
        %s992 = smul.addr %s991, 4
        %s993 = smul.addr %s992, 4
        %s994 = scalar_lea.vmem %s6, %s993
        %p995 = pneg %p235
        %p996 = pneg %p232
        %s997 = sand.u32 %s248, 1
        %s998 = scalar_lea.sflag [#allocation6], %s997
        %s999 = sand.u32 %s248, 1
        %s1000 = scalar_lea.vmem [#allocation5], %s999
        %p1001 = pneg %p261
        %p1002 = pneg %p258
        %p1003 = scmp.lt.s32.totalorder %s51, 1
        %s1004 = scalar_select %p1003, %s51, 1
        %s1005 = smul.addr %s1004, 4
        %s1006 = smul.addr %s1005, 4
        %s1007 = scalar_lea.vmem %s8, %s1006
        %p1008 = pneg %p287
        %p1009 = pneg %p284
        %s1010 = sand.u32 %s46, 1
        %s1011 = scalar_lea.sflag [#allocation9], %s1010
        %s1012 = sand.u32 %s300, 1
        %s1013 = scalar_lea.vmem [#allocation8], %s1012
        %p1014 = pneg %p313
        %p1015 = pneg %p310
        %p1016 = scmp.lt.s32.totalorder %s51, 1
        %s1017 = scalar_select %p1016, %s51, 1
        %s1018 = smul.addr %s1017, 4
        %s1019 = smul.addr %s1018, 4
        %s1020 = scalar_lea.vmem %s10, %s1019
        %p1021 = pneg %p339
        %p1022 = pneg %p336
        %s1023 = sand.u32 %s46, 1
        %s1024 = scalar_lea.sflag [#allocation9], %s1023
        %s1025 = sand.u32 %s352, 1
        %s1026 = scalar_lea.vmem [#allocation10], %s1025
        %p1027 = pneg %p365
        %p1028 = pneg %p362
        %p1029 = scmp.lt.s32.totalorder %s51, 1
        %s1030 = scalar_select %p1029, %s51, 1
        %s1031 = smul.addr %s1030, 4
        %s1032 = smul.addr %s1031, 4
        %s1033 = scalar_lea.vmem %s12, %s1032
        %p1034 = pneg %p391
        %p1035 = pneg %p388
        %s1036 = sand.u32 %s46, 1
        %s1037 = scalar_lea.sflag [#allocation12], %s1036
        %s1038 = sand.u32 %s404, 1
        %s1039 = scalar_lea.vmem [#allocation11], %s1038
        %p1040 = pneg %p417
        %p1041 = pneg %p414
        %p1042 = scmp.lt.s32.totalorder %s51, 1
        %s1043 = scalar_select %p1042, %s51, 1
        %s1044 = smul.addr %s1043, 4
        %s1045 = smul.addr %s1044, 4
        %s1046 = scalar_lea.vmem %s14, %s1045
        %p1047 = pneg %p443
        %p1048 = pneg %p440
        %s1049 = sand.u32 %s46, 1
        %s1050 = scalar_lea.sflag [#allocation12], %s1049
        %s1051 = sand.u32 %s456, 1
        %s1052 = scalar_lea.vmem [#allocation13], %s1051
        %p1053 = pneg %p469
        %p1054 = pneg %p466
        %p1055 = scmp.lt.s32.totalorder %s51, 1
        %s1056 = scalar_select %p1055, %s51, 1
        %s1057 = smul.addr %s1056, 4
        %s1058 = smul.addr %s1057, 4
        %s1059 = scalar_lea.vmem %s16, %s1058
        %p1060 = pneg %p495
        %p1061 = pneg %p492
        %s1062 = sand.u32 %s46, 1
        %s1063 = scalar_lea.sflag [#allocation15], %s1062
        %s1064 = sand.u32 %s508, 1
        %s1065 = scalar_lea.vmem [#allocation14], %s1064
        %p1066 = pneg %p521
        %p1067 = pneg %p518
        %p1068 = scmp.lt.s32.totalorder %s51, 1
        %s1069 = scalar_select %p1068, %s51, 1
        %s1070 = smul.addr %s1069, 16
        %s1071 = smul.addr %s1070, 4
        %s1072 = scalar_lea.vmem %s18, %s1071
        %p1073 = pneg %p547
        %p1074 = pneg %p544
        %s1075 = sand.u32 %s46, 1
        %s1076 = scalar_lea.sflag [#allocation15], %s1075
        %s1077 = sand.u32 %s560, 1
        %s1078 = scalar_lea.vmem [#allocation16], %s1077
        %p1079 = pneg %p573
        %p1080 = pneg %p570
        %p1081 = pneg %p594
        %p1082 = pneg %p591
        %p1083 = pneg %p615
        %p1084 = pneg %p612
        %p1085 = pneg %p641
        %p1086 = pneg %p638
        %s1087 = smul.u32 2, %s50
        %p1088 = scmp.lt.s32.totalorder %s1087, 1
        %s1089 = scalar_select %p1088, %s1087, 1
        %s1090 = smul.addr %s1089, 8
        %s1091 = scalar_lea.vmem %s0, %s1090
        %s1092 = smul.u32 2, %s50
        %s1093 = smul.u32 2, %s50
        %p1094 = scmp.lt.s32.totalorder %s1093, 1
        %s1095 = scalar_select %p1094, %s1093, 1
        %s1096 = smul.addr %s1095, 8
        %s1097 = scalar_lea.vmem %s1, %s1096
        %s1098 = smul.u32 2, %s50
        %s1099 = smul.u32 2, %s50
        %p1100 = scmp.lt.s32.totalorder %s1099, 1
        %s1101 = scalar_select %p1100, %s1099, 1
        %s1102 = scalar_lea.vmem %s2, %s1101
        %s1103 = smul.u32 2, %s50
        %s1104 = smul.u32 2, %s50
        %p1105 = scmp.lt.s32.totalorder %s1104, 1
        %s1106 = scalar_select %p1105, %s1104, 1
        %s1107 = scalar_lea.vmem %s3, %s1106
        %s1108 = smul.u32 2, %s50
        %p1109 = scmp.lt.s32.totalorder %s51, 1
        %s1110 = scalar_select %p1109, %s51, 1
        %s1111 = smul.addr %s1110, 4
        %s1112 = scalar_lea.vmem %s4, %s1111
        %p1113 = scmp.lt.s32.totalorder %s51, 1
        %s1114 = scalar_select %p1113, %s51, 1
        %s1115 = smul.addr %s1114, 4
        %s1116 = scalar_lea.vmem %s5, %s1115
        %p1117 = scmp.lt.s32.totalorder %s51, 1
        %s1118 = scalar_select %p1117, %s51, 1
        %s1119 = smul.addr %s1118, 4
        %s1120 = smul.addr %s1119, 4
        %s1121 = scalar_lea.vmem %s6, %s1120
        %p1122 = scmp.lt.s32.totalorder %s51, 1
        %s1123 = scalar_select %p1122, %s51, 1
        %s1124 = smul.addr %s1123, 4
        %s1125 = smul.addr %s1124, 4
        %s1126 = scalar_lea.vmem %s8, %s1125
        %p1127 = scmp.lt.s32.totalorder %s51, 1
        %s1128 = scalar_select %p1127, %s51, 1
        %s1129 = smul.addr %s1128, 4
        %s1130 = smul.addr %s1129, 4
        %s1131 = scalar_lea.vmem %s10, %s1130
        %p1132 = scmp.lt.s32.totalorder %s51, 1
        %s1133 = scalar_select %p1132, %s51, 1
        %s1134 = smul.addr %s1133, 4
        %s1135 = smul.addr %s1134, 4
        %s1136 = scalar_lea.vmem %s12, %s1135
        %p1137 = scmp.lt.s32.totalorder %s51, 1
        %s1138 = scalar_select %p1137, %s51, 1
        %s1139 = smul.addr %s1138, 4
        %s1140 = smul.addr %s1139, 4
        %s1141 = scalar_lea.vmem %s14, %s1140
        %p1142 = scmp.lt.s32.totalorder %s51, 1
        %s1143 = scalar_select %p1142, %s51, 1
        %s1144 = smul.addr %s1143, 4
        %s1145 = smul.addr %s1144, 4
        %s1146 = scalar_lea.vmem %s16, %s1145
        %p1147 = scmp.lt.s32.totalorder %s51, 1
        %s1148 = scalar_select %p1147, %s51, 1
        %s1149 = smul.addr %s1148, 16
        %s1150 = smul.addr %s1149, 4
        %s1151 = scalar_lea.vmem %s18, %s1150
        %s1152 = smul.u32 2, %s50
        %p1154 = scmp.eq.s32.totalorder %s51, 0
        // Predicated region
        $region137: #{transformer_decoder.1} parent=107 // pred_check
          %p1155 = pneg %p1154
        $region138: #{transformer_decoder.1} parent=107 // pred_check_branch
          %1157 = sbr.rel (%p1155) target = $region140
        $region139: #{transformer_decoder.1} parent=107 // pred_region
          %v1158 = vld [vmem:[%s1091] sm:$0xff]
          %v1159 = vld [vmem:[%s1091 + $0x8] sm:$0xff]
          %vm1160 = vcmask 261120
          %1161 = vst.msk [vmem:[#allocation2] sm:$0xff] %vm1160, %v1158
          %1162 = vst.msk [vmem:[#allocation2 + $0x8] sm:$0xff] %vm1160, %v1159
          %v1163 = vlaneseq
          %v1164 = vshrl.u32 %v1163, 7
          %v1165 = vlaneseq
          %v1166 = vand.u32 %v1165, 127
          %vm1167 = vcmp.gt.s32.totalorder %v1166, %v1164
          %v1168 = vsel %vm1167, -1e+09, 0.0
          %v1169 = vld [vmem:[%s1102] sm:$0x1]
          %v1170 = vld [vmem:[%s1102 + $0x1] sm:$0x1]
          %v1173 = vlaneseq
          %v1174 = vshrl.u32 %v1173, 7
          %v1175 = vsub.s32 0, %v1174
          %v1176 = vrot.slane %v1169, %v1175
          %v1177 = vlaneseq
          %v1178 = vshrl.u32 %v1177, 7
          %v1179 = vsub.s32 0, %v1178
          %v1180 = vrot.slane %v1170, %v1179
          %v1183 = vadd.f32 %v1168, %v1176
          %v1184 = vadd.f32 %v1168, %v1180
          %vm1185 = vcmask 64512
          %1186 = vst.msk [vmem:[#allocation3] sm:$0xff] %vm1185, %v1183
          %1187 = vst.msk [vmem:[#allocation3 + $0x8] sm:$0xff] %vm1185, %v1184
          %v1188 = vld [vmem:[%s1107] sm:$0x1]
          %v1189 = vld [vmem:[%s1107 + $0x1] sm:$0x1]
          %v1192 = vlaneseq
          %v1193 = vshrl.u32 %v1192, 7
          %v1194 = vsub.s32 0, %v1193
          %v1195 = vrot.slane %v1188, %v1194
          %v1196 = vlaneseq
          %v1197 = vshrl.u32 %v1196, 7
          %v1198 = vsub.s32 0, %v1197
          %v1199 = vrot.slane %v1189, %v1198
          %1202 = vst.msk [vmem:[#allocation4] sm:$0xff] %vm1185, %v1195
          %1203 = vst.msk [vmem:[#allocation4 + $0x8] sm:$0xff] %vm1185, %v1199
        $region140: #{transformer_decoder.1} parent=107 // pred_fallthru
          _
        %v1204 = vld [vmem:[#allocation2] sm:$0xff]
        %v1205 = vld [vmem:[#allocation2 + $0x8] sm:$0xff]
        %v1206 = vld [vmem:[%s1112] sm:$0x7]
        %v1207 = vld [vmem:[%s1116] sm:$0x7]
        %vm1208 = vcmask 261120
        %v1209 = vsel %vm1208, %v1204, 0.0
        %1210 = vadd.xlane.f32.xlu0 %v1209
        %v1211 = vpop.xlane.xlu0 %1210
        %v1212 = vsel %vm1208, %v1205, 0.0
        %1213 = vadd.xlane.f32.xlu0 %v1212
        %v1214 = vpop.xlane.xlu0 %1213
        %v1215 = vrcp.pop 32.0
        %v1216 = vmul.f32 %v1211, %v1215
        %v1217 = vmul.f32 %v1214, %v1215
        %v1218 = vsub.f32 %v1204, %v1216
        %v1219 = vsub.f32 %v1205, %v1217
        %v1220 = vmul.f32 %v1218, %v1218
        %v1221 = vmul.f32 %v1219, %v1219
        %v1222 = vsel %vm1208, %v1220, 0.0
        %1223 = vadd.xlane.f32.xlu0 %v1222
        %v1224 = vpop.xlane.xlu0 %1223
        %v1225 = vsel %vm1208, %v1221, 0.0
        %1226 = vadd.xlane.f32.xlu0 %v1225
        %v1227 = vpop.xlane.xlu0 %1226
        %v1228 = vmul.f32 %v1224, %v1215
        %v1229 = vmul.f32 %v1227, %v1215
        %v1230 = vadd.f32 %v1228, 1e-05
        %v1231 = vadd.f32 %v1229, 1e-05
        %v1232 = vrsqrt.pop %v1230
        %v1233 = vrsqrt.pop %v1231
        %v1234 = vmul.f32 %v1218, %v1232
        %v1235 = vmul.f32 %v1219, %v1233
        %v1236 = vlaneseq
        %v1237 = vshrl.u32 %v1236, 7
        %v1238 = vsub.s32 0, %v1237
        %v1239 = vrot.slane %v1206, %v1238
        %v1240 = vmul.f32 %v1234, %v1239
        %v1241 = vmul.f32 %v1235, %v1239
        %v1242 = vlaneseq
        %v1243 = vshrl.u32 %v1242, 7
        %v1244 = vsub.s32 0, %v1243
        %v1245 = vrot.slane %v1207, %v1244
        %v1246 = vadd.f32 %v1240, %v1245
        %v1247 = vadd.f32 %v1241, %v1245
        %v1248 = vpack.c.bf16 %v1247, %v1246
        %v1249 = vld [vmem:[%s1121] sm:$0xf]
        %v1250 = vld [vmem:[%s1121 + $0x4] sm:$0xf]
        %v1251 = vld [vmem:[%s1121 + $0x8] sm:$0xf]
        %v1252 = vld [vmem:[%s1121 + $0xc] sm:$0xf]
        %v1253 = vld [vmem:[%s899] sm:$0x1]
        %v1255 = vlaneseq
        %v1256 = vshrl.u32 %v1255, 7
        %v1257 = vsub.s32 0, %v1256
        %v1258 = vrot.slane %v1253, %v1257
        %v1264 = vunpack.c.l.b16 %v1249
        %v1265 = vunpack.c.l.b16 %v1250
        %v1266 = vunpack.c.l.b16 %v1251
        %v1267 = vunpack.c.l.b16 %v1252
        %v1268 = vpack.c.b16 %v1265, %v1264
        %v1269 = vpack.c.b16 %v1267, %v1266
        %v1273 = vsel %vm1208, %v1248, 0
        %1275 = vmatprep.subr.bf16.mxu0 0
        %1276 = vmatpush1.bf16.msra.mxu0 %v1268
        %1277 = vmatprep.subr.bf16.mxu0 0
        %1278 = vmatpush1.bf16.msra.mxu0 %v1269
        %1279 = vmatprep.subr.bf16.mxu0 0
        %1280 = vmatpush1.bf16.msra.mxu0 0
        %1281 = vmatprep.subr.bf16.mxu0 0
        %1282 = vmatpush1.bf16.msra.mxu0 0
        %1283 = vmatprep.subr.bf16.mxu0 0
        %1284 = vmatpush1.bf16.msra.mxu0 0
        %1285 = vmatprep.subr.bf16.mxu0 0
        %1286 = vmatpush1.bf16.msra.mxu0 0
        %1287 = vmatprep.subr.bf16.mxu0 0
        %1288 = vmatpush1.bf16.msra.mxu0 0
        %1289 = vmatprep.subr.bf16.mxu0 0
        %1290 = vmatpush1.bf16.msra.mxu0 0
        %1291 = vmatprep.subr.bf16.mxu0 0
        %1292 = vmatpush1.bf16.msra.mxu0 0
        %1293 = vmatprep.subr.bf16.mxu0 0
        %1294 = vmatpush1.bf16.msra.mxu0 0
        %1295 = vmatprep.subr.bf16.mxu0 0
        %1296 = vmatpush1.bf16.msra.mxu0 0
        %1297 = vmatprep.subr.bf16.mxu0 0
        %1298 = vmatpush1.bf16.msra.mxu0 0
        %1299 = vmatprep.subr.bf16.mxu0 0
        %1300 = vmatpush1.bf16.msra.mxu0 0
        %1301 = vmatprep.subr.bf16.mxu0 0
        %1302 = vmatpush1.bf16.msra.mxu0 0
        %1303 = vmatprep.subr.bf16.mxu0 0
        %1304 = vmatpush1.bf16.msra.mxu0 0
        %1305 = vmatprep.subr.bf16.mxu0 0
        %1306 = vmatpush1.bf16.msra.mxu0 0
        %1307 = vmatprep.mubr.bf16.mxu0 0
        %1308 = vmatmul.mubr.bf16.gmra.mrb[0].mxu0 %v1273
        %v1309 = vpop.f32.mrb[0].mxu0
        %v1310 = vadd.f32 %v1258, %v1309
        %v1311 = vpop.f32.mrb[0].mxu0
        %v1312 = vpop.f32.mrb[0].mxu0
        %v1313 = vadd.f32 %v1258, %v1312
        %v1314 = vpop.f32.mrb[0].mxu0
        %1315 = vdwg.mxu0
        %v1316 = vpack.c.bf16 %v1313, %v1310
        %v1317 = vld [vmem:[#allocation3] sm:$0xff]
        %1319 = vrot.lane.b32.xlu0 %v1316, 96
        %v1320 = vpop.permute.xlu0 %1319
        %vm1321 = vcmask 64512
        %v1323 = vsel %vm1321, %v1316, 0
        %v1326 = vsel %vm1321, %v1320, 0
        %1328 = vmatprep.subr.bf16.mxu0 0
        %1329 = vmatpush1.bf16.xpose.msra.mxu0 %v1326
        %1330 = vmatprep.subr.bf16.mxu0 0
        %1331 = vmatpush1.bf16.xpose.msra.mxu0 0
        %1332 = vmatprep.subr.bf16.mxu0 0
        %1333 = vmatpush1.bf16.xpose.msra.mxu0 0
        %1334 = vmatprep.subr.bf16.mxu0 0
        %1335 = vmatpush1.bf16.xpose.msra.mxu0 0
        %1336 = vmatprep.subr.bf16.mxu0 0
        %1337 = vmatpush1.bf16.xpose.msra.mxu0 0
        %1338 = vmatprep.subr.bf16.mxu0 0
        %1339 = vmatpush1.bf16.xpose.msra.mxu0 0
        %1340 = vmatprep.subr.bf16.mxu0 0
        %1341 = vmatpush1.bf16.xpose.msra.mxu0 0
        %1342 = vmatprep.subr.bf16.mxu0 0
        %1343 = vmatpush1.bf16.xpose.msra.mxu0 0
        %1344 = vmatprep.subr.bf16.mxu0 0
        %1345 = vmatpush1.bf16.xpose.msra.mxu0 0
        %1346 = vmatprep.subr.bf16.mxu0 0
        %1347 = vmatpush1.bf16.xpose.msra.mxu0 0
        %1348 = vmatprep.subr.bf16.mxu0 0
        %1349 = vmatpush1.bf16.xpose.msra.mxu0 0
        %1350 = vmatprep.subr.bf16.mxu0 0
        %1351 = vmatpush1.bf16.xpose.msra.mxu0 0
        %1352 = vmatprep.subr.bf16.mxu0 0
        %1353 = vmatpush1.bf16.xpose.msra.mxu0 0
        %1354 = vmatprep.subr.bf16.mxu0 0
        %1355 = vmatpush1.bf16.xpose.msra.mxu0 0
        %1356 = vmatprep.subr.bf16.mxu0 0
        %1357 = vmatpush1.bf16.xpose.msra.mxu0 0
        %1358 = vmatprep.subr.bf16.mxu0 0
        %1359 = vmatpush1.bf16.xpose.msra.mxu0 0
        %1360 = vmatprep.mubr.bf16.mxu0 0
        %1361 = vmatmul.mubr.bf16.gmra.mrb[0].mxu0 %v1323
        %v1362 = vpop.f32.mrb[0].mxu0
        %v1363 = vadd.f32 0.0, %v1362
        %v1364 = vpop.f32.mrb[0].mxu0
        %v1365 = vpop.f32.mrb[0].mxu0
        %v1366 = vpop.f32.mrb[0].mxu0
        %1367 = vdwg.mxu0
        %v1368 = vmul.f32 %v1363, 0.35355338
        %v1369 = vadd.f32 %v1368, %v1317
        %v1370 = vsel %vm1321, %v1369, -inf
        %1371 = vmax.xlane.f32.xlu0 %v1370
        %v1372 = vpop.xlane.xlu0 %1371
        %v1373 = vsub.f32 %v1369, %v1372
        %v1374 = vmul.f32 %v1373, 1.442695
        %v1375 = vpow.pop %v1374
        %v1376 = vsel %vm1321, %v1375, 0.0
        %1377 = vadd.xlane.f32.xlu0 %v1376
        %v1378 = vpop.xlane.xlu0 %1377
        %v1379 = vrcp.pop %v1378
        %v1380 = vmul.f32 %v1375, %v1379
        %v1381 = vpack.c.bf16 %v1380, %v1380
        %1382 = vrot.lane.b32.xlu0 %v1316, 64
        %v1383 = vpop.permute.xlu0 %1382
        %v1385 = vsel %vm1321, %v1381, 0
        %vm1387 = vcmask 1043456
        %v1389 = vsel %vm1387, %v1383, 0
        %1391 = vmatprep.subr.bf16.mxu0 0
        %1392 = vmatpush1.bf16.msra.mxu0 %v1389
        %1393 = vmatprep.subr.bf16.mxu0 0
        %1394 = vmatpush1.bf16.msra.mxu0 0
        %1395 = vmatprep.subr.bf16.mxu0 0
        %1396 = vmatpush1.bf16.msra.mxu0 0
        %1397 = vmatprep.subr.bf16.mxu0 0
        %1398 = vmatpush1.bf16.msra.mxu0 0
        %1399 = vmatprep.subr.bf16.mxu0 0
        %1400 = vmatpush1.bf16.msra.mxu0 0
        %1401 = vmatprep.subr.bf16.mxu0 0
        %1402 = vmatpush1.bf16.msra.mxu0 0
        %1403 = vmatprep.subr.bf16.mxu0 0
        %1404 = vmatpush1.bf16.msra.mxu0 0
        %1405 = vmatprep.subr.bf16.mxu0 0
        %1406 = vmatpush1.bf16.msra.mxu0 0
        %1407 = vmatprep.subr.bf16.mxu0 0
        %1408 = vmatpush1.bf16.msra.mxu0 0
        %1409 = vmatprep.subr.bf16.mxu0 0
        %1410 = vmatpush1.bf16.msra.mxu0 0
        %1411 = vmatprep.subr.bf16.mxu0 0
        %1412 = vmatpush1.bf16.msra.mxu0 0
        %1413 = vmatprep.subr.bf16.mxu0 0
        %1414 = vmatpush1.bf16.msra.mxu0 0
        %1415 = vmatprep.subr.bf16.mxu0 0
        %1416 = vmatpush1.bf16.msra.mxu0 0
        %1417 = vmatprep.subr.bf16.mxu0 0
        %1418 = vmatpush1.bf16.msra.mxu0 0
        %1419 = vmatprep.subr.bf16.mxu0 0
        %1420 = vmatpush1.bf16.msra.mxu0 0
        %1421 = vmatprep.subr.bf16.mxu0 0
        %1422 = vmatpush1.bf16.msra.mxu0 0
        %1423 = vmatprep.mubr.bf16.mxu0 0
        %1424 = vmatmul.mubr.bf16.gmra.mrb[0].mxu0 %v1385
        %v1425 = vpop.f32.mrb[0].mxu0
        %v1426 = vadd.f32 0.0, %v1425
        %v1427 = vpop.f32.mrb[0].mxu0
        %v1428 = vpop.f32.mrb[0].mxu0
        %v1429 = vpop.f32.mrb[0].mxu0
        %1430 = vdwg.mxu0
        %1431 = vrot.lane.b32.xlu0 %v1316, 120
        %v1432 = vpop.permute.xlu0 %1431
        %1433 = vrot.lane.b32.xlu0 %v1316, 88
        %v1434 = vpop.permute.xlu0 %1433
        %v1436 = vsel %vm1321, %v1432, 0
        %v1439 = vsel %vm1321, %v1434, 0
        %1441 = vmatprep.subr.bf16.mxu0 0
        %1442 = vmatpush1.bf16.xpose.msra.mxu0 %v1439
        %1443 = vmatprep.subr.bf16.mxu0 0
        %1444 = vmatpush1.bf16.xpose.msra.mxu0 0
        %1445 = vmatprep.subr.bf16.mxu0 0
        %1446 = vmatpush1.bf16.xpose.msra.mxu0 0
        %1447 = vmatprep.subr.bf16.mxu0 0
        %1448 = vmatpush1.bf16.xpose.msra.mxu0 0
        %1449 = vmatprep.subr.bf16.mxu0 0
        %1450 = vmatpush1.bf16.xpose.msra.mxu0 0
        %1451 = vmatprep.subr.bf16.mxu0 0
        %1452 = vmatpush1.bf16.xpose.msra.mxu0 0
        %1453 = vmatprep.subr.bf16.mxu0 0
        %1454 = vmatpush1.bf16.xpose.msra.mxu0 0
        %1455 = vmatprep.subr.bf16.mxu0 0
        %1456 = vmatpush1.bf16.xpose.msra.mxu0 0
        %1457 = vmatprep.subr.bf16.mxu0 0
        %1458 = vmatpush1.bf16.xpose.msra.mxu0 0
        %1459 = vmatprep.subr.bf16.mxu0 0
        %1460 = vmatpush1.bf16.xpose.msra.mxu0 0
        %1461 = vmatprep.subr.bf16.mxu0 0
        %1462 = vmatpush1.bf16.xpose.msra.mxu0 0
        %1463 = vmatprep.subr.bf16.mxu0 0
        %1464 = vmatpush1.bf16.xpose.msra.mxu0 0
        %1465 = vmatprep.subr.bf16.mxu0 0
        %1466 = vmatpush1.bf16.xpose.msra.mxu0 0
        %1467 = vmatprep.subr.bf16.mxu0 0
        %1468 = vmatpush1.bf16.xpose.msra.mxu0 0
        %1469 = vmatprep.subr.bf16.mxu0 0
        %1470 = vmatpush1.bf16.xpose.msra.mxu0 0
        %1471 = vmatprep.subr.bf16.mxu0 0
        %1472 = vmatpush1.bf16.xpose.msra.mxu0 0
        %1473 = vmatprep.mubr.bf16.mxu0 0
        %1474 = vmatmul.mubr.bf16.gmra.mrb[0].mxu0 %v1436
        %v1475 = vpop.f32.mrb[0].mxu0
        %v1476 = vadd.f32 0.0, %v1475
        %v1477 = vpop.f32.mrb[0].mxu0
        %v1478 = vpop.f32.mrb[0].mxu0
        %v1479 = vpop.f32.mrb[0].mxu0
        %1480 = vdwg.mxu0
        %v1481 = vmul.f32 %v1476, 0.35355338
        %v1482 = vadd.f32 %v1481, %v1317
        %v1483 = vsel %vm1321, %v1482, -inf
        %1484 = vmax.xlane.f32.xlu0 %v1483
        %v1485 = vpop.xlane.xlu0 %1484
        %v1486 = vsub.f32 %v1482, %v1485
        %v1487 = vmul.f32 %v1486, 1.442695
        %v1488 = vpow.pop %v1487
        %v1489 = vsel %vm1321, %v1488, 0.0
        %1490 = vadd.xlane.f32.xlu0 %v1489
        %v1491 = vpop.xlane.xlu0 %1490
        %v1492 = vrcp.pop %v1491
        %v1493 = vmul.f32 %v1488, %v1492
        %v1494 = vpack.c.bf16 %v1493, %v1493
        %1495 = vrot.lane.b32.xlu0 %v1316, 56
        %v1496 = vpop.permute.xlu0 %1495
        %v1498 = vsel %vm1321, %v1494, 0
        %v1501 = vsel %vm1387, %v1496, 0
        %1503 = vmatprep.subr.bf16.mxu0 0
        %1504 = vmatpush1.bf16.msra.mxu0 %v1501
        %1505 = vmatprep.subr.bf16.mxu0 0
        %1506 = vmatpush1.bf16.msra.mxu0 0
        %1507 = vmatprep.subr.bf16.mxu0 0
        %1508 = vmatpush1.bf16.msra.mxu0 0
        %1509 = vmatprep.subr.bf16.mxu0 0
        %1510 = vmatpush1.bf16.msra.mxu0 0
        %1511 = vmatprep.subr.bf16.mxu0 0
        %1512 = vmatpush1.bf16.msra.mxu0 0
        %1513 = vmatprep.subr.bf16.mxu0 0
        %1514 = vmatpush1.bf16.msra.mxu0 0
        %1515 = vmatprep.subr.bf16.mxu0 0
        %1516 = vmatpush1.bf16.msra.mxu0 0
        %1517 = vmatprep.subr.bf16.mxu0 0
        %1518 = vmatpush1.bf16.msra.mxu0 0
        %1519 = vmatprep.subr.bf16.mxu0 0
        %1520 = vmatpush1.bf16.msra.mxu0 0
        %1521 = vmatprep.subr.bf16.mxu0 0
        %1522 = vmatpush1.bf16.msra.mxu0 0
        %1523 = vmatprep.subr.bf16.mxu0 0
        %1524 = vmatpush1.bf16.msra.mxu0 0
        %1525 = vmatprep.subr.bf16.mxu0 0
        %1526 = vmatpush1.bf16.msra.mxu0 0
        %1527 = vmatprep.subr.bf16.mxu0 0
        %1528 = vmatpush1.bf16.msra.mxu0 0
        %1529 = vmatprep.subr.bf16.mxu0 0
        %1530 = vmatpush1.bf16.msra.mxu0 0
        %1531 = vmatprep.subr.bf16.mxu0 0
        %1532 = vmatpush1.bf16.msra.mxu0 0
        %1533 = vmatprep.subr.bf16.mxu0 0
        %1534 = vmatpush1.bf16.msra.mxu0 0
        %1535 = vmatprep.mubr.bf16.mxu0 0
        %1536 = vmatmul.mubr.bf16.gmra.mrb[0].mxu0 %v1498
        %v1537 = vpop.f32.mrb[0].mxu0
        %v1538 = vadd.f32 0.0, %v1537
        %v1539 = vpop.f32.mrb[0].mxu0
        %v1540 = vpop.f32.mrb[0].mxu0
        %v1541 = vpop.f32.mrb[0].mxu0
        %1542 = vdwg.mxu0
        %1543 = vrot.lane.b32.xlu0 %v1316, 112
        %v1544 = vpop.permute.xlu0 %1543
        %1545 = vrot.lane.b32.xlu0 %v1316, 80
        %v1546 = vpop.permute.xlu0 %1545
        %v1548 = vsel %vm1321, %v1544, 0
        %v1551 = vsel %vm1321, %v1546, 0
        %1553 = vmatprep.subr.bf16.mxu0 0
        %1554 = vmatpush1.bf16.xpose.msra.mxu0 %v1551
        %1555 = vmatprep.subr.bf16.mxu0 0
        %1556 = vmatpush1.bf16.xpose.msra.mxu0 0
        %1557 = vmatprep.subr.bf16.mxu0 0
        %1558 = vmatpush1.bf16.xpose.msra.mxu0 0
        %1559 = vmatprep.subr.bf16.mxu0 0
        %1560 = vmatpush1.bf16.xpose.msra.mxu0 0
        %1561 = vmatprep.subr.bf16.mxu0 0
        %1562 = vmatpush1.bf16.xpose.msra.mxu0 0
        %1563 = vmatprep.subr.bf16.mxu0 0
        %1564 = vmatpush1.bf16.xpose.msra.mxu0 0
        %1565 = vmatprep.subr.bf16.mxu0 0
        %1566 = vmatpush1.bf16.xpose.msra.mxu0 0
        %1567 = vmatprep.subr.bf16.mxu0 0
        %1568 = vmatpush1.bf16.xpose.msra.mxu0 0
        %1569 = vmatprep.subr.bf16.mxu0 0
        %1570 = vmatpush1.bf16.xpose.msra.mxu0 0
        %1571 = vmatprep.subr.bf16.mxu0 0
        %1572 = vmatpush1.bf16.xpose.msra.mxu0 0
        %1573 = vmatprep.subr.bf16.mxu0 0
        %1574 = vmatpush1.bf16.xpose.msra.mxu0 0
        %1575 = vmatprep.subr.bf16.mxu0 0
        %1576 = vmatpush1.bf16.xpose.msra.mxu0 0
        %1577 = vmatprep.subr.bf16.mxu0 0
        %1578 = vmatpush1.bf16.xpose.msra.mxu0 0
        %1579 = vmatprep.subr.bf16.mxu0 0
        %1580 = vmatpush1.bf16.xpose.msra.mxu0 0
        %1581 = vmatprep.subr.bf16.mxu0 0
        %1582 = vmatpush1.bf16.xpose.msra.mxu0 0
        %1583 = vmatprep.subr.bf16.mxu0 0
        %1584 = vmatpush1.bf16.xpose.msra.mxu0 0
        %1585 = vmatprep.mubr.bf16.mxu0 0
        %1586 = vmatmul.mubr.bf16.gmra.mrb[0].mxu0 %v1548
        %v1587 = vpop.f32.mrb[0].mxu0
        %v1588 = vadd.f32 0.0, %v1587
        %v1589 = vpop.f32.mrb[0].mxu0
        %v1590 = vpop.f32.mrb[0].mxu0
        %v1591 = vpop.f32.mrb[0].mxu0
        %1592 = vdwg.mxu0
        %v1593 = vmul.f32 %v1588, 0.35355338
        %v1594 = vadd.f32 %v1593, %v1317
        %v1595 = vsel %vm1321, %v1594, -inf
        %1596 = vmax.xlane.f32.xlu0 %v1595
        %v1597 = vpop.xlane.xlu0 %1596
        %v1598 = vsub.f32 %v1594, %v1597
        %v1599 = vmul.f32 %v1598, 1.442695
        %v1600 = vpow.pop %v1599
        %v1601 = vsel %vm1321, %v1600, 0.0
        %1602 = vadd.xlane.f32.xlu0 %v1601
        %v1603 = vpop.xlane.xlu0 %1602
        %v1604 = vrcp.pop %v1603
        %v1605 = vmul.f32 %v1600, %v1604
        %v1606 = vpack.c.bf16 %v1605, %v1605
        %1607 = vrot.lane.b32.xlu0 %v1316, 48
        %v1608 = vpop.permute.xlu0 %1607
        %v1610 = vsel %vm1321, %v1606, 0
        %v1613 = vsel %vm1387, %v1608, 0
        %1615 = vmatprep.subr.bf16.mxu0 0
        %1616 = vmatpush1.bf16.msra.mxu0 %v1613
        %1617 = vmatprep.subr.bf16.mxu0 0
        %1618 = vmatpush1.bf16.msra.mxu0 0
        %1619 = vmatprep.subr.bf16.mxu0 0
        %1620 = vmatpush1.bf16.msra.mxu0 0
        %1621 = vmatprep.subr.bf16.mxu0 0
        %1622 = vmatpush1.bf16.msra.mxu0 0
        %1623 = vmatprep.subr.bf16.mxu0 0
        %1624 = vmatpush1.bf16.msra.mxu0 0
        %1625 = vmatprep.subr.bf16.mxu0 0
        %1626 = vmatpush1.bf16.msra.mxu0 0
        %1627 = vmatprep.subr.bf16.mxu0 0
        %1628 = vmatpush1.bf16.msra.mxu0 0
        %1629 = vmatprep.subr.bf16.mxu0 0
        %1630 = vmatpush1.bf16.msra.mxu0 0
        %1631 = vmatprep.subr.bf16.mxu0 0
        %1632 = vmatpush1.bf16.msra.mxu0 0
        %1633 = vmatprep.subr.bf16.mxu0 0
        %1634 = vmatpush1.bf16.msra.mxu0 0
        %1635 = vmatprep.subr.bf16.mxu0 0
        %1636 = vmatpush1.bf16.msra.mxu0 0
        %1637 = vmatprep.subr.bf16.mxu0 0
        %1638 = vmatpush1.bf16.msra.mxu0 0
        %1639 = vmatprep.subr.bf16.mxu0 0
        %1640 = vmatpush1.bf16.msra.mxu0 0
        %1641 = vmatprep.subr.bf16.mxu0 0
        %1642 = vmatpush1.bf16.msra.mxu0 0
        %1643 = vmatprep.subr.bf16.mxu0 0
        %1644 = vmatpush1.bf16.msra.mxu0 0
        %1645 = vmatprep.subr.bf16.mxu0 0
        %1646 = vmatpush1.bf16.msra.mxu0 0
        %1647 = vmatprep.mubr.bf16.mxu0 0
        %1648 = vmatmul.mubr.bf16.gmra.mrb[0].mxu0 %v1610
        %v1649 = vpop.f32.mrb[0].mxu0
        %v1650 = vadd.f32 0.0, %v1649
        %v1651 = vpop.f32.mrb[0].mxu0
        %v1652 = vpop.f32.mrb[0].mxu0
        %v1653 = vpop.f32.mrb[0].mxu0
        %1654 = vdwg.mxu0
        %1655 = vrot.lane.b32.xlu0 %v1316, 104
        %v1656 = vpop.permute.xlu0 %1655
        %1657 = vrot.lane.b32.xlu0 %v1316, 72
        %v1658 = vpop.permute.xlu0 %1657
        %v1660 = vsel %vm1321, %v1656, 0
        %v1663 = vsel %vm1321, %v1658, 0
        %1665 = vmatprep.subr.bf16.mxu0 0
        %1666 = vmatpush1.bf16.xpose.msra.mxu0 %v1663
        %1667 = vmatprep.subr.bf16.mxu0 0
        %1668 = vmatpush1.bf16.xpose.msra.mxu0 0
        %1669 = vmatprep.subr.bf16.mxu0 0
        %1670 = vmatpush1.bf16.xpose.msra.mxu0 0
        %1671 = vmatprep.subr.bf16.mxu0 0
        %1672 = vmatpush1.bf16.xpose.msra.mxu0 0
        %1673 = vmatprep.subr.bf16.mxu0 0
        %1674 = vmatpush1.bf16.xpose.msra.mxu0 0
        %1675 = vmatprep.subr.bf16.mxu0 0
        %1676 = vmatpush1.bf16.xpose.msra.mxu0 0
        %1677 = vmatprep.subr.bf16.mxu0 0
        %1678 = vmatpush1.bf16.xpose.msra.mxu0 0
        %1679 = vmatprep.subr.bf16.mxu0 0
        %1680 = vmatpush1.bf16.xpose.msra.mxu0 0
        %1681 = vmatprep.subr.bf16.mxu0 0
        %1682 = vmatpush1.bf16.xpose.msra.mxu0 0
        %1683 = vmatprep.subr.bf16.mxu0 0
        %1684 = vmatpush1.bf16.xpose.msra.mxu0 0
        %1685 = vmatprep.subr.bf16.mxu0 0
        %1686 = vmatpush1.bf16.xpose.msra.mxu0 0
        %1687 = vmatprep.subr.bf16.mxu0 0
        %1688 = vmatpush1.bf16.xpose.msra.mxu0 0
        %1689 = vmatprep.subr.bf16.mxu0 0
        %1690 = vmatpush1.bf16.xpose.msra.mxu0 0
        %1691 = vmatprep.subr.bf16.mxu0 0
        %1692 = vmatpush1.bf16.xpose.msra.mxu0 0
        %1693 = vmatprep.subr.bf16.mxu0 0
        %1694 = vmatpush1.bf16.xpose.msra.mxu0 0
        %1695 = vmatprep.subr.bf16.mxu0 0
        %1696 = vmatpush1.bf16.xpose.msra.mxu0 0
        %1697 = vmatprep.mubr.bf16.mxu0 0
        %1698 = vmatmul.mubr.bf16.gmra.mrb[0].mxu0 %v1660
        %v1699 = vpop.f32.mrb[0].mxu0
        %v1700 = vadd.f32 0.0, %v1699
        %v1701 = vpop.f32.mrb[0].mxu0
        %v1702 = vpop.f32.mrb[0].mxu0
        %v1703 = vpop.f32.mrb[0].mxu0
        %1704 = vdwg.mxu0
        %v1705 = vmul.f32 %v1700, 0.35355338
        %v1706 = vadd.f32 %v1705, %v1317
        %v1707 = vsel %vm1321, %v1706, -inf
        %1708 = vmax.xlane.f32.xlu0 %v1707
        %v1709 = vpop.xlane.xlu0 %1708
        %v1710 = vsub.f32 %v1706, %v1709
        %v1711 = vmul.f32 %v1710, 1.442695
        %v1712 = vpow.pop %v1711
        %v1713 = vsel %vm1321, %v1712, 0.0
        %1714 = vadd.xlane.f32.xlu0 %v1713
        %v1715 = vpop.xlane.xlu0 %1714
        %v1716 = vrcp.pop %v1715
        %v1717 = vmul.f32 %v1712, %v1716
        %v1718 = vpack.c.bf16 %v1717, %v1717
        %1719 = vrot.lane.b32.xlu0 %v1316, 40
        %v1720 = vpop.permute.xlu0 %1719
        %v1722 = vsel %vm1321, %v1718, 0
        %v1725 = vsel %vm1387, %v1720, 0
        %1727 = vmatprep.subr.bf16.mxu0 0
        %1728 = vmatpush1.bf16.msra.mxu0 %v1725
        %1729 = vmatprep.subr.bf16.mxu0 0
        %1730 = vmatpush1.bf16.msra.mxu0 0
        %1731 = vmatprep.subr.bf16.mxu0 0
        %1732 = vmatpush1.bf16.msra.mxu0 0
        %1733 = vmatprep.subr.bf16.mxu0 0
        %1734 = vmatpush1.bf16.msra.mxu0 0
        %1735 = vmatprep.subr.bf16.mxu0 0
        %1736 = vmatpush1.bf16.msra.mxu0 0
        %1737 = vmatprep.subr.bf16.mxu0 0
        %1738 = vmatpush1.bf16.msra.mxu0 0
        %1739 = vmatprep.subr.bf16.mxu0 0
        %1740 = vmatpush1.bf16.msra.mxu0 0
        %1741 = vmatprep.subr.bf16.mxu0 0
        %1742 = vmatpush1.bf16.msra.mxu0 0
        %1743 = vmatprep.subr.bf16.mxu0 0
        %1744 = vmatpush1.bf16.msra.mxu0 0
        %1745 = vmatprep.subr.bf16.mxu0 0
        %1746 = vmatpush1.bf16.msra.mxu0 0
        %1747 = vmatprep.subr.bf16.mxu0 0
        %1748 = vmatpush1.bf16.msra.mxu0 0
        %1749 = vmatprep.subr.bf16.mxu0 0
        %1750 = vmatpush1.bf16.msra.mxu0 0
        %1751 = vmatprep.subr.bf16.mxu0 0
        %1752 = vmatpush1.bf16.msra.mxu0 0
        %1753 = vmatprep.subr.bf16.mxu0 0
        %1754 = vmatpush1.bf16.msra.mxu0 0
        %1755 = vmatprep.subr.bf16.mxu0 0
        %1756 = vmatpush1.bf16.msra.mxu0 0
        %1757 = vmatprep.subr.bf16.mxu0 0
        %1758 = vmatpush1.bf16.msra.mxu0 0
        %1759 = vmatprep.mubr.bf16.mxu0 0
        %1760 = vmatmul.mubr.bf16.gmra.mrb[0].mxu0 %v1722
        %v1761 = vpop.f32.mrb[0].mxu0
        %v1762 = vadd.f32 0.0, %v1761
        %v1763 = vpop.f32.mrb[0].mxu0
        %v1764 = vpop.f32.mrb[0].mxu0
        %v1765 = vpop.f32.mrb[0].mxu0
        %1766 = vdwg.mxu0
        %1768 = vrot.lane.b32.xlu0 %v1538, 8
        %v1769 = vpop.permute.xlu0 %1768
        %1772 = vrot.lane.b32.xlu0 %v1650, 16
        %v1773 = vpop.permute.xlu0 %1772
        %1776 = vrot.lane.b32.xlu0 %v1762, 24
        %v1777 = vpop.permute.xlu0 %1776
        %v1779 = vsel %vm1321, %v1426, %v1769
        %vm1780 = vcmask 130048
        %v1781 = vsel %vm1780, %v1779, %v1773
        %vm1782 = vcmask 195584
        %v1783 = vsel %vm1782, %v1781, %v1777
        %s1784 = scalar_lea.vmem [#allocation3], 8
        %v1785 = vld [vmem:[%s1784] sm:$0xff]
        %v1786 = vrot.slane %v1316, 4
        %1787 = vrot.lane.b32.xlu0 %v1786, 96
        %v1788 = vpop.permute.xlu0 %1787
        %v1790 = vsel %vm1321, %v1786, 0
        %v1793 = vsel %vm1321, %v1788, 0
        %1795 = vmatprep.subr.bf16.mxu0 0
        %1796 = vmatpush1.bf16.xpose.msra.mxu0 %v1793
        %1797 = vmatprep.subr.bf16.mxu0 0
        %1798 = vmatpush1.bf16.xpose.msra.mxu0 0
        %1799 = vmatprep.subr.bf16.mxu0 0
        %1800 = vmatpush1.bf16.xpose.msra.mxu0 0
        %1801 = vmatprep.subr.bf16.mxu0 0
        %1802 = vmatpush1.bf16.xpose.msra.mxu0 0
        %1803 = vmatprep.subr.bf16.mxu0 0
        %1804 = vmatpush1.bf16.xpose.msra.mxu0 0
        %1805 = vmatprep.subr.bf16.mxu0 0
        %1806 = vmatpush1.bf16.xpose.msra.mxu0 0
        %1807 = vmatprep.subr.bf16.mxu0 0
        %1808 = vmatpush1.bf16.xpose.msra.mxu0 0
        %1809 = vmatprep.subr.bf16.mxu0 0
        %1810 = vmatpush1.bf16.xpose.msra.mxu0 0
        %1811 = vmatprep.subr.bf16.mxu0 0
        %1812 = vmatpush1.bf16.xpose.msra.mxu0 0
        %1813 = vmatprep.subr.bf16.mxu0 0
        %1814 = vmatpush1.bf16.xpose.msra.mxu0 0
        %1815 = vmatprep.subr.bf16.mxu0 0
        %1816 = vmatpush1.bf16.xpose.msra.mxu0 0
        %1817 = vmatprep.subr.bf16.mxu0 0
        %1818 = vmatpush1.bf16.xpose.msra.mxu0 0
        %1819 = vmatprep.subr.bf16.mxu0 0
        %1820 = vmatpush1.bf16.xpose.msra.mxu0 0
        %1821 = vmatprep.subr.bf16.mxu0 0
        %1822 = vmatpush1.bf16.xpose.msra.mxu0 0
        %1823 = vmatprep.subr.bf16.mxu0 0
        %1824 = vmatpush1.bf16.xpose.msra.mxu0 0
        %1825 = vmatprep.subr.bf16.mxu0 0
        %1826 = vmatpush1.bf16.xpose.msra.mxu0 0
        %1827 = vmatprep.mubr.bf16.mxu0 0
        %1828 = vmatmul.mubr.bf16.gmra.mrb[0].mxu0 %v1790
        %v1829 = vpop.f32.mrb[0].mxu0
        %v1830 = vadd.f32 0.0, %v1829
        %v1831 = vpop.f32.mrb[0].mxu0
        %v1832 = vpop.f32.mrb[0].mxu0
        %v1833 = vpop.f32.mrb[0].mxu0
        %1834 = vdwg.mxu0
        %v1835 = vmul.f32 %v1830, 0.35355338
        %v1836 = vadd.f32 %v1835, %v1785
        %v1837 = vsel %vm1321, %v1836, -inf
        %1838 = vmax.xlane.f32.xlu0 %v1837
        %v1839 = vpop.xlane.xlu0 %1838
        %v1840 = vsub.f32 %v1836, %v1839
        %v1841 = vmul.f32 %v1840, 1.442695
        %v1842 = vpow.pop %v1841
        %v1843 = vsel %vm1321, %v1842, 0.0
        %1844 = vadd.xlane.f32.xlu0 %v1843
        %v1845 = vpop.xlane.xlu0 %1844
        %v1846 = vrcp.pop %v1845
        %v1847 = vmul.f32 %v1842, %v1846
        %v1848 = vpack.c.bf16 %v1847, %v1847
        %1849 = vrot.lane.b32.xlu0 %v1786, 64
        %v1850 = vpop.permute.xlu0 %1849
        %v1852 = vsel %vm1321, %v1848, 0
        %v1855 = vsel %vm1387, %v1850, 0
        %1857 = vmatprep.subr.bf16.mxu0 0
        %1858 = vmatpush1.bf16.msra.mxu0 %v1855
        %1859 = vmatprep.subr.bf16.mxu0 0
        %1860 = vmatpush1.bf16.msra.mxu0 0
        %1861 = vmatprep.subr.bf16.mxu0 0
        %1862 = vmatpush1.bf16.msra.mxu0 0
        %1863 = vmatprep.subr.bf16.mxu0 0
        %1864 = vmatpush1.bf16.msra.mxu0 0
        %1865 = vmatprep.subr.bf16.mxu0 0
        %1866 = vmatpush1.bf16.msra.mxu0 0
        %1867 = vmatprep.subr.bf16.mxu0 0
        %1868 = vmatpush1.bf16.msra.mxu0 0
        %1869 = vmatprep.subr.bf16.mxu0 0
        %1870 = vmatpush1.bf16.msra.mxu0 0
        %1871 = vmatprep.subr.bf16.mxu0 0
        %1872 = vmatpush1.bf16.msra.mxu0 0
        %1873 = vmatprep.subr.bf16.mxu0 0
        %1874 = vmatpush1.bf16.msra.mxu0 0
        %1875 = vmatprep.subr.bf16.mxu0 0
        %1876 = vmatpush1.bf16.msra.mxu0 0
        %1877 = vmatprep.subr.bf16.mxu0 0
        %1878 = vmatpush1.bf16.msra.mxu0 0
        %1879 = vmatprep.subr.bf16.mxu0 0
        %1880 = vmatpush1.bf16.msra.mxu0 0
        %1881 = vmatprep.subr.bf16.mxu0 0
        %1882 = vmatpush1.bf16.msra.mxu0 0
        %1883 = vmatprep.subr.bf16.mxu0 0
        %1884 = vmatpush1.bf16.msra.mxu0 0
        %1885 = vmatprep.subr.bf16.mxu0 0
        %1886 = vmatpush1.bf16.msra.mxu0 0
        %1887 = vmatprep.subr.bf16.mxu0 0
        %1888 = vmatpush1.bf16.msra.mxu0 0
        %1889 = vmatprep.mubr.bf16.mxu0 0
        %1890 = vmatmul.mubr.bf16.gmra.mrb[0].mxu0 %v1852
        %v1891 = vpop.f32.mrb[0].mxu0
        %v1892 = vadd.f32 0.0, %v1891
        %v1893 = vpop.f32.mrb[0].mxu0
        %v1894 = vpop.f32.mrb[0].mxu0
        %v1895 = vpop.f32.mrb[0].mxu0
        %1896 = vdwg.mxu0
        %1897 = vrot.lane.b32.xlu0 %v1786, 120
        %v1898 = vpop.permute.xlu0 %1897
        %1899 = vrot.lane.b32.xlu0 %v1786, 88
        %v1900 = vpop.permute.xlu0 %1899
        %v1902 = vsel %vm1321, %v1898, 0
        %v1905 = vsel %vm1321, %v1900, 0
        %1907 = vmatprep.subr.bf16.mxu0 0
        %1908 = vmatpush1.bf16.xpose.msra.mxu0 %v1905
        %1909 = vmatprep.subr.bf16.mxu0 0
        %1910 = vmatpush1.bf16.xpose.msra.mxu0 0
        %1911 = vmatprep.subr.bf16.mxu0 0
        %1912 = vmatpush1.bf16.xpose.msra.mxu0 0
        %1913 = vmatprep.subr.bf16.mxu0 0
        %1914 = vmatpush1.bf16.xpose.msra.mxu0 0
        %1915 = vmatprep.subr.bf16.mxu0 0
        %1916 = vmatpush1.bf16.xpose.msra.mxu0 0
        %1917 = vmatprep.subr.bf16.mxu0 0
        %1918 = vmatpush1.bf16.xpose.msra.mxu0 0
        %1919 = vmatprep.subr.bf16.mxu0 0
        %1920 = vmatpush1.bf16.xpose.msra.mxu0 0
        %1921 = vmatprep.subr.bf16.mxu0 0
        %1922 = vmatpush1.bf16.xpose.msra.mxu0 0
        %1923 = vmatprep.subr.bf16.mxu0 0
        %1924 = vmatpush1.bf16.xpose.msra.mxu0 0
        %1925 = vmatprep.subr.bf16.mxu0 0
        %1926 = vmatpush1.bf16.xpose.msra.mxu0 0
        %1927 = vmatprep.subr.bf16.mxu0 0
        %1928 = vmatpush1.bf16.xpose.msra.mxu0 0
        %1929 = vmatprep.subr.bf16.mxu0 0
        %1930 = vmatpush1.bf16.xpose.msra.mxu0 0
        %1931 = vmatprep.subr.bf16.mxu0 0
        %1932 = vmatpush1.bf16.xpose.msra.mxu0 0
        %1933 = vmatprep.subr.bf16.mxu0 0
        %1934 = vmatpush1.bf16.xpose.msra.mxu0 0
        %1935 = vmatprep.subr.bf16.mxu0 0
        %1936 = vmatpush1.bf16.xpose.msra.mxu0 0
        %1937 = vmatprep.subr.bf16.mxu0 0
        %1938 = vmatpush1.bf16.xpose.msra.mxu0 0
        %1939 = vmatprep.mubr.bf16.mxu0 0
        %1940 = vmatmul.mubr.bf16.gmra.mrb[0].mxu0 %v1902
        %v1941 = vpop.f32.mrb[0].mxu0
        %v1942 = vadd.f32 0.0, %v1941
        %v1943 = vpop.f32.mrb[0].mxu0
        %v1944 = vpop.f32.mrb[0].mxu0
        %v1945 = vpop.f32.mrb[0].mxu0
        %1946 = vdwg.mxu0
        %v1947 = vmul.f32 %v1942, 0.35355338
        %v1948 = vadd.f32 %v1947, %v1785
        %v1949 = vsel %vm1321, %v1948, -inf
        %1950 = vmax.xlane.f32.xlu0 %v1949
        %v1951 = vpop.xlane.xlu0 %1950
        %v1952 = vsub.f32 %v1948, %v1951
        %v1953 = vmul.f32 %v1952, 1.442695
        %v1954 = vpow.pop %v1953
        %v1955 = vsel %vm1321, %v1954, 0.0
        %1956 = vadd.xlane.f32.xlu0 %v1955
        %v1957 = vpop.xlane.xlu0 %1956
        %v1958 = vrcp.pop %v1957
        %v1959 = vmul.f32 %v1954, %v1958
        %v1960 = vpack.c.bf16 %v1959, %v1959
        %1961 = vrot.lane.b32.xlu0 %v1786, 56
        %v1962 = vpop.permute.xlu0 %1961
        %v1964 = vsel %vm1321, %v1960, 0
        %v1967 = vsel %vm1387, %v1962, 0
        %1969 = vmatprep.subr.bf16.mxu0 0
        %1970 = vmatpush1.bf16.msra.mxu0 %v1967
        %1971 = vmatprep.subr.bf16.mxu0 0
        %1972 = vmatpush1.bf16.msra.mxu0 0
        %1973 = vmatprep.subr.bf16.mxu0 0
        %1974 = vmatpush1.bf16.msra.mxu0 0
        %1975 = vmatprep.subr.bf16.mxu0 0
        %1976 = vmatpush1.bf16.msra.mxu0 0
        %1977 = vmatprep.subr.bf16.mxu0 0
        %1978 = vmatpush1.bf16.msra.mxu0 0
        %1979 = vmatprep.subr.bf16.mxu0 0
        %1980 = vmatpush1.bf16.msra.mxu0 0
        %1981 = vmatprep.subr.bf16.mxu0 0
        %1982 = vmatpush1.bf16.msra.mxu0 0
        %1983 = vmatprep.subr.bf16.mxu0 0
        %1984 = vmatpush1.bf16.msra.mxu0 0
        %1985 = vmatprep.subr.bf16.mxu0 0
        %1986 = vmatpush1.bf16.msra.mxu0 0
        %1987 = vmatprep.subr.bf16.mxu0 0
        %1988 = vmatpush1.bf16.msra.mxu0 0
        %1989 = vmatprep.subr.bf16.mxu0 0
        %1990 = vmatpush1.bf16.msra.mxu0 0
        %1991 = vmatprep.subr.bf16.mxu0 0
        %1992 = vmatpush1.bf16.msra.mxu0 0
        %1993 = vmatprep.subr.bf16.mxu0 0
        %1994 = vmatpush1.bf16.msra.mxu0 0
        %1995 = vmatprep.subr.bf16.mxu0 0
        %1996 = vmatpush1.bf16.msra.mxu0 0
        %1997 = vmatprep.subr.bf16.mxu0 0
        %1998 = vmatpush1.bf16.msra.mxu0 0
        %1999 = vmatprep.subr.bf16.mxu0 0
        %2000 = vmatpush1.bf16.msra.mxu0 0
        %2001 = vmatprep.mubr.bf16.mxu0 0
        %2002 = vmatmul.mubr.bf16.gmra.mrb[0].mxu0 %v1964
        %v2003 = vpop.f32.mrb[0].mxu0
        %v2004 = vadd.f32 0.0, %v2003
        %v2005 = vpop.f32.mrb[0].mxu0
        %v2006 = vpop.f32.mrb[0].mxu0
        %v2007 = vpop.f32.mrb[0].mxu0
        %2008 = vdwg.mxu0
        %2009 = vrot.lane.b32.xlu0 %v1786, 112
        %v2010 = vpop.permute.xlu0 %2009
        %2011 = vrot.lane.b32.xlu0 %v1786, 80
        %v2012 = vpop.permute.xlu0 %2011
        %v2014 = vsel %vm1321, %v2010, 0
        %v2017 = vsel %vm1321, %v2012, 0
        %2019 = vmatprep.subr.bf16.mxu0 0
        %2020 = vmatpush1.bf16.xpose.msra.mxu0 %v2017
        %2021 = vmatprep.subr.bf16.mxu0 0
        %2022 = vmatpush1.bf16.xpose.msra.mxu0 0
        %2023 = vmatprep.subr.bf16.mxu0 0
        %2024 = vmatpush1.bf16.xpose.msra.mxu0 0
        %2025 = vmatprep.subr.bf16.mxu0 0
        %2026 = vmatpush1.bf16.xpose.msra.mxu0 0
        %2027 = vmatprep.subr.bf16.mxu0 0
        %2028 = vmatpush1.bf16.xpose.msra.mxu0 0
        %2029 = vmatprep.subr.bf16.mxu0 0
        %2030 = vmatpush1.bf16.xpose.msra.mxu0 0
        %2031 = vmatprep.subr.bf16.mxu0 0
        %2032 = vmatpush1.bf16.xpose.msra.mxu0 0
        %2033 = vmatprep.subr.bf16.mxu0 0
        %2034 = vmatpush1.bf16.xpose.msra.mxu0 0
        %2035 = vmatprep.subr.bf16.mxu0 0
        %2036 = vmatpush1.bf16.xpose.msra.mxu0 0
        %2037 = vmatprep.subr.bf16.mxu0 0
        %2038 = vmatpush1.bf16.xpose.msra.mxu0 0
        %2039 = vmatprep.subr.bf16.mxu0 0
        %2040 = vmatpush1.bf16.xpose.msra.mxu0 0
        %2041 = vmatprep.subr.bf16.mxu0 0
        %2042 = vmatpush1.bf16.xpose.msra.mxu0 0
        %2043 = vmatprep.subr.bf16.mxu0 0
        %2044 = vmatpush1.bf16.xpose.msra.mxu0 0
        %2045 = vmatprep.subr.bf16.mxu0 0
        %2046 = vmatpush1.bf16.xpose.msra.mxu0 0
        %2047 = vmatprep.subr.bf16.mxu0 0
        %2048 = vmatpush1.bf16.xpose.msra.mxu0 0
        %2049 = vmatprep.subr.bf16.mxu0 0
        %2050 = vmatpush1.bf16.xpose.msra.mxu0 0
        %2051 = vmatprep.mubr.bf16.mxu0 0
        %2052 = vmatmul.mubr.bf16.gmra.mrb[0].mxu0 %v2014
        %v2053 = vpop.f32.mrb[0].mxu0
        %v2054 = vadd.f32 0.0, %v2053
        %v2055 = vpop.f32.mrb[0].mxu0
        %v2056 = vpop.f32.mrb[0].mxu0
        %v2057 = vpop.f32.mrb[0].mxu0
        %2058 = vdwg.mxu0
        %v2059 = vmul.f32 %v2054, 0.35355338
        %v2060 = vadd.f32 %v2059, %v1785
        %v2061 = vsel %vm1321, %v2060, -inf
        %2062 = vmax.xlane.f32.xlu0 %v2061
        %v2063 = vpop.xlane.xlu0 %2062
        %v2064 = vsub.f32 %v2060, %v2063
        %v2065 = vmul.f32 %v2064, 1.442695
        %v2066 = vpow.pop %v2065
        %v2067 = vsel %vm1321, %v2066, 0.0
        %2068 = vadd.xlane.f32.xlu0 %v2067
        %v2069 = vpop.xlane.xlu0 %2068
        %v2070 = vrcp.pop %v2069
        %v2071 = vmul.f32 %v2066, %v2070
        %v2072 = vpack.c.bf16 %v2071, %v2071
        %2073 = vrot.lane.b32.xlu0 %v1786, 48
        %v2074 = vpop.permute.xlu0 %2073
        %v2076 = vsel %vm1321, %v2072, 0
        %v2079 = vsel %vm1387, %v2074, 0
        %2081 = vmatprep.subr.bf16.mxu0 0
        %2082 = vmatpush1.bf16.msra.mxu0 %v2079
        %2083 = vmatprep.subr.bf16.mxu0 0
        %2084 = vmatpush1.bf16.msra.mxu0 0
        %2085 = vmatprep.subr.bf16.mxu0 0
        %2086 = vmatpush1.bf16.msra.mxu0 0
        %2087 = vmatprep.subr.bf16.mxu0 0
        %2088 = vmatpush1.bf16.msra.mxu0 0
        %2089 = vmatprep.subr.bf16.mxu0 0
        %2090 = vmatpush1.bf16.msra.mxu0 0
        %2091 = vmatprep.subr.bf16.mxu0 0
        %2092 = vmatpush1.bf16.msra.mxu0 0
        %2093 = vmatprep.subr.bf16.mxu0 0
        %2094 = vmatpush1.bf16.msra.mxu0 0
        %2095 = vmatprep.subr.bf16.mxu0 0
        %2096 = vmatpush1.bf16.msra.mxu0 0
        %2097 = vmatprep.subr.bf16.mxu0 0
        %2098 = vmatpush1.bf16.msra.mxu0 0
        %2099 = vmatprep.subr.bf16.mxu0 0
        %2100 = vmatpush1.bf16.msra.mxu0 0
        %2101 = vmatprep.subr.bf16.mxu0 0
        %2102 = vmatpush1.bf16.msra.mxu0 0
        %2103 = vmatprep.subr.bf16.mxu0 0
        %2104 = vmatpush1.bf16.msra.mxu0 0
        %2105 = vmatprep.subr.bf16.mxu0 0
        %2106 = vmatpush1.bf16.msra.mxu0 0
        %2107 = vmatprep.subr.bf16.mxu0 0
        %2108 = vmatpush1.bf16.msra.mxu0 0
        %2109 = vmatprep.subr.bf16.mxu0 0
        %2110 = vmatpush1.bf16.msra.mxu0 0
        %2111 = vmatprep.subr.bf16.mxu0 0
        %2112 = vmatpush1.bf16.msra.mxu0 0
        %2113 = vmatprep.mubr.bf16.mxu0 0
        %2114 = vmatmul.mubr.bf16.gmra.mrb[0].mxu0 %v2076
        %v2115 = vpop.f32.mrb[0].mxu0
        %v2116 = vadd.f32 0.0, %v2115
        %v2117 = vpop.f32.mrb[0].mxu0
        %v2118 = vpop.f32.mrb[0].mxu0
        %v2119 = vpop.f32.mrb[0].mxu0
        %2120 = vdwg.mxu0
        %2121 = vrot.lane.b32.xlu0 %v1786, 104
        %v2122 = vpop.permute.xlu0 %2121
        %2123 = vrot.lane.b32.xlu0 %v1786, 72
        %v2124 = vpop.permute.xlu0 %2123
        %v2126 = vsel %vm1321, %v2122, 0
        %v2129 = vsel %vm1321, %v2124, 0
        %2131 = vmatprep.subr.bf16.mxu0 0
        %2132 = vmatpush1.bf16.xpose.msra.mxu0 %v2129
        %2133 = vmatprep.subr.bf16.mxu0 0
        %2134 = vmatpush1.bf16.xpose.msra.mxu0 0
        %2135 = vmatprep.subr.bf16.mxu0 0
        %2136 = vmatpush1.bf16.xpose.msra.mxu0 0
        %2137 = vmatprep.subr.bf16.mxu0 0
        %2138 = vmatpush1.bf16.xpose.msra.mxu0 0
        %2139 = vmatprep.subr.bf16.mxu0 0
        %2140 = vmatpush1.bf16.xpose.msra.mxu0 0
        %2141 = vmatprep.subr.bf16.mxu0 0
        %2142 = vmatpush1.bf16.xpose.msra.mxu0 0
        %2143 = vmatprep.subr.bf16.mxu0 0
        %2144 = vmatpush1.bf16.xpose.msra.mxu0 0
        %2145 = vmatprep.subr.bf16.mxu0 0
        %2146 = vmatpush1.bf16.xpose.msra.mxu0 0
        %2147 = vmatprep.subr.bf16.mxu0 0
        %2148 = vmatpush1.bf16.xpose.msra.mxu0 0
        %2149 = vmatprep.subr.bf16.mxu0 0
        %2150 = vmatpush1.bf16.xpose.msra.mxu0 0
        %2151 = vmatprep.subr.bf16.mxu0 0
        %2152 = vmatpush1.bf16.xpose.msra.mxu0 0
        %2153 = vmatprep.subr.bf16.mxu0 0
        %2154 = vmatpush1.bf16.xpose.msra.mxu0 0
        %2155 = vmatprep.subr.bf16.mxu0 0
        %2156 = vmatpush1.bf16.xpose.msra.mxu0 0
        %2157 = vmatprep.subr.bf16.mxu0 0
        %2158 = vmatpush1.bf16.xpose.msra.mxu0 0
        %2159 = vmatprep.subr.bf16.mxu0 0
        %2160 = vmatpush1.bf16.xpose.msra.mxu0 0
        %2161 = vmatprep.subr.bf16.mxu0 0
        %2162 = vmatpush1.bf16.xpose.msra.mxu0 0
        %2163 = vmatprep.mubr.bf16.mxu0 0
        %2164 = vmatmul.mubr.bf16.gmra.mrb[0].mxu0 %v2126
        %v2165 = vpop.f32.mrb[0].mxu0
        %v2166 = vadd.f32 0.0, %v2165
        %v2167 = vpop.f32.mrb[0].mxu0
        %v2168 = vpop.f32.mrb[0].mxu0
        %v2169 = vpop.f32.mrb[0].mxu0
        %2170 = vdwg.mxu0
        %v2171 = vmul.f32 %v2166, 0.35355338
        %v2172 = vadd.f32 %v2171, %v1785
        %v2173 = vsel %vm1321, %v2172, -inf
        %2174 = vmax.xlane.f32.xlu0 %v2173
        %v2175 = vpop.xlane.xlu0 %2174
        %v2176 = vsub.f32 %v2172, %v2175
        %v2177 = vmul.f32 %v2176, 1.442695
        %v2178 = vpow.pop %v2177
        %v2179 = vsel %vm1321, %v2178, 0.0
        %2180 = vadd.xlane.f32.xlu0 %v2179
        %v2181 = vpop.xlane.xlu0 %2180
        %v2182 = vrcp.pop %v2181
        %v2183 = vmul.f32 %v2178, %v2182
        %v2184 = vpack.c.bf16 %v2183, %v2183
        %2185 = vrot.lane.b32.xlu0 %v1786, 40
        %v2186 = vpop.permute.xlu0 %2185
        %v2188 = vsel %vm1321, %v2184, 0
        %v2191 = vsel %vm1387, %v2186, 0
        %2193 = vmatprep.subr.bf16.mxu0 0
        %2194 = vmatpush1.bf16.msra.mxu0 %v2191
        %2195 = vmatprep.subr.bf16.mxu0 0
        %2196 = vmatpush1.bf16.msra.mxu0 0
        %2197 = vmatprep.subr.bf16.mxu0 0
        %2198 = vmatpush1.bf16.msra.mxu0 0
        %2199 = vmatprep.subr.bf16.mxu0 0
        %2200 = vmatpush1.bf16.msra.mxu0 0
        %2201 = vmatprep.subr.bf16.mxu0 0
        %2202 = vmatpush1.bf16.msra.mxu0 0
        %2203 = vmatprep.subr.bf16.mxu0 0
        %2204 = vmatpush1.bf16.msra.mxu0 0
        %2205 = vmatprep.subr.bf16.mxu0 0
        %2206 = vmatpush1.bf16.msra.mxu0 0
        %2207 = vmatprep.subr.bf16.mxu0 0
        %2208 = vmatpush1.bf16.msra.mxu0 0
        %2209 = vmatprep.subr.bf16.mxu0 0
        %2210 = vmatpush1.bf16.msra.mxu0 0
        %2211 = vmatprep.subr.bf16.mxu0 0
        %2212 = vmatpush1.bf16.msra.mxu0 0
        %2213 = vmatprep.subr.bf16.mxu0 0
        %2214 = vmatpush1.bf16.msra.mxu0 0
        %2215 = vmatprep.subr.bf16.mxu0 0
        %2216 = vmatpush1.bf16.msra.mxu0 0
        %2217 = vmatprep.subr.bf16.mxu0 0
        %2218 = vmatpush1.bf16.msra.mxu0 0
        %2219 = vmatprep.subr.bf16.mxu0 0
        %2220 = vmatpush1.bf16.msra.mxu0 0
        %2221 = vmatprep.subr.bf16.mxu0 0
        %2222 = vmatpush1.bf16.msra.mxu0 0
        %2223 = vmatprep.subr.bf16.mxu0 0
        %2224 = vmatpush1.bf16.msra.mxu0 0
        %2225 = vmatprep.mubr.bf16.mxu0 0
        %2226 = vmatmul.mubr.bf16.gmra.mrb[0].mxu0 %v2188
        %v2227 = vpop.f32.mrb[0].mxu0
        %v2228 = vadd.f32 0.0, %v2227
        %v2229 = vpop.f32.mrb[0].mxu0
        %v2230 = vpop.f32.mrb[0].mxu0
        %v2231 = vpop.f32.mrb[0].mxu0
        %2232 = vdwg.mxu0
        %2234 = vrot.lane.b32.xlu0 %v2004, 8
        %v2235 = vpop.permute.xlu0 %2234
        %2238 = vrot.lane.b32.xlu0 %v2116, 16
        %v2239 = vpop.permute.xlu0 %2238
        %2242 = vrot.lane.b32.xlu0 %v2228, 24
        %v2243 = vpop.permute.xlu0 %2242
        %v2245 = vsel %vm1321, %v1892, %v2235
        %v2246 = vsel %vm1780, %v2245, %v2239
        %v2247 = vsel %vm1782, %v2246, %v2243
        %v2248 = vpack.c.bf16 %v2247, %v1783
        %v2249 = vld [vmem:[%s1126] sm:$0xf]
        %v2250 = vld [vmem:[%s1126 + $0x4] sm:$0xf]
        %v2251 = vld [vmem:[%s1126 + $0x8] sm:$0xf]
        %v2252 = vld [vmem:[%s1126 + $0xc] sm:$0xf]
        %v2253 = vld [vmem:[%s907] sm:$0x1]
        %v2255 = vlaneseq
        %v2256 = vshrl.u32 %v2255, 7
        %v2257 = vsub.s32 0, %v2256
        %v2258 = vrot.slane %v2253, %v2257
        %v2264 = vunpack.c.l.b16 %v2249
        %v2265 = vunpack.c.l.b16 %v2250
        %v2266 = vunpack.c.l.b16 %v2251
        %v2267 = vunpack.c.l.b16 %v2252
        %v2268 = vpack.c.b16 %v2265, %v2264
        %v2269 = vpack.c.b16 %v2267, %v2266
        %v2273 = vsel %vm1208, %v2248, 0
        %2275 = vmatprep.subr.bf16.mxu0 0
        %2276 = vmatpush1.bf16.msra.mxu0 %v2268
        %2277 = vmatprep.subr.bf16.mxu0 0
        %2278 = vmatpush1.bf16.msra.mxu0 %v2269
        %2279 = vmatprep.subr.bf16.mxu0 0
        %2280 = vmatpush1.bf16.msra.mxu0 0
        %2281 = vmatprep.subr.bf16.mxu0 0
        %2282 = vmatpush1.bf16.msra.mxu0 0
        %2283 = vmatprep.subr.bf16.mxu0 0
        %2284 = vmatpush1.bf16.msra.mxu0 0
        %2285 = vmatprep.subr.bf16.mxu0 0
        %2286 = vmatpush1.bf16.msra.mxu0 0
        %2287 = vmatprep.subr.bf16.mxu0 0
        %2288 = vmatpush1.bf16.msra.mxu0 0
        %2289 = vmatprep.subr.bf16.mxu0 0
        %2290 = vmatpush1.bf16.msra.mxu0 0
        %2291 = vmatprep.subr.bf16.mxu0 0
        %2292 = vmatpush1.bf16.msra.mxu0 0
        %2293 = vmatprep.subr.bf16.mxu0 0
        %2294 = vmatpush1.bf16.msra.mxu0 0
        %2295 = vmatprep.subr.bf16.mxu0 0
        %2296 = vmatpush1.bf16.msra.mxu0 0
        %2297 = vmatprep.subr.bf16.mxu0 0
        %2298 = vmatpush1.bf16.msra.mxu0 0
        %2299 = vmatprep.subr.bf16.mxu0 0
        %2300 = vmatpush1.bf16.msra.mxu0 0
        %2301 = vmatprep.subr.bf16.mxu0 0
        %2302 = vmatpush1.bf16.msra.mxu0 0
        %2303 = vmatprep.subr.bf16.mxu0 0
        %2304 = vmatpush1.bf16.msra.mxu0 0
        %2305 = vmatprep.subr.bf16.mxu0 0
        %2306 = vmatpush1.bf16.msra.mxu0 0
        %2307 = vmatprep.mubr.bf16.mxu0 0
        %2308 = vmatmul.mubr.bf16.gmra.mrb[0].mxu0 %v2273
        %v2309 = vpop.f32.mrb[0].mxu0
        %v2310 = vadd.f32 %v2258, %v2309
        %v2311 = vpop.f32.mrb[0].mxu0
        %v2312 = vpop.f32.mrb[0].mxu0
        %v2313 = vadd.f32 %v2258, %v2312
        %v2314 = vpop.f32.mrb[0].mxu0
        %2315 = vdwg.mxu0
        %v2316 = vadd.f32 %v1204, %v2310
        %v2317 = vadd.f32 %v1205, %v2313
        %v2318 = vsel %vm1208, %v2316, 0.0
        %2319 = vadd.xlane.f32.xlu0 %v2318
        %v2320 = vpop.xlane.xlu0 %2319
        %v2321 = vsel %vm1208, %v2317, 0.0
        %2322 = vadd.xlane.f32.xlu0 %v2321
        %v2323 = vpop.xlane.xlu0 %2322
        %v2324 = vmul.f32 %v2320, %v1215
        %v2325 = vmul.f32 %v2323, %v1215
        %v2326 = vsub.f32 %v2316, %v2324
        %v2327 = vsub.f32 %v2317, %v2325
        %v2328 = vmul.f32 %v2326, %v2326
        %v2329 = vmul.f32 %v2327, %v2327
        %v2330 = vsel %vm1208, %v2328, 0.0
        %2331 = vadd.xlane.f32.xlu0 %v2330
        %v2332 = vpop.xlane.xlu0 %2331
        %v2333 = vsel %vm1208, %v2329, 0.0
        %2334 = vadd.xlane.f32.xlu0 %v2333
        %v2335 = vpop.xlane.xlu0 %2334
        %v2336 = vmul.f32 %v2332, %v1215
        %v2337 = vmul.f32 %v2335, %v1215
        %v2338 = vadd.f32 %v2336, 1e-05
        %v2339 = vadd.f32 %v2337, 1e-05
        %v2340 = vrsqrt.pop %v2338
        %v2341 = vrsqrt.pop %v2339
        %v2342 = vmul.f32 %v2326, %v2340
        %v2343 = vmul.f32 %v2327, %v2341
        %v2344 = vlaneseq
        %v2345 = vshrl.u32 %v2344, 7
        %v2346 = vsub.s32 1, %v2345
        %v2347 = vrot.slane %v1206, %v2346
        %v2348 = vmul.f32 %v2342, %v2347
        %v2349 = vmul.f32 %v2343, %v2347
        %v2350 = vlaneseq
        %v2351 = vshrl.u32 %v2350, 7
        %v2352 = vsub.s32 1, %v2351
        %v2353 = vrot.slane %v1207, %v2352
        %v2354 = vadd.f32 %v2348, %v2353
        %v2355 = vadd.f32 %v2349, %v2353
        %v2356 = vpack.c.bf16 %v2355, %v2354
        %v2357 = vld [vmem:[%s1131] sm:$0xf]
        %v2358 = vld [vmem:[%s1131 + $0x4] sm:$0xf]
        %v2359 = vld [vmem:[%s1131 + $0x8] sm:$0xf]
        %v2360 = vld [vmem:[%s1131 + $0xc] sm:$0xf]
        %v2361 = vld [vmem:[%s915] sm:$0x1]
        %v2363 = vlaneseq
        %v2364 = vshrl.u32 %v2363, 7
        %v2365 = vsub.s32 0, %v2364
        %v2366 = vrot.slane %v2361, %v2365
        %v2372 = vunpack.c.l.b16 %v2357
        %v2373 = vunpack.c.l.b16 %v2358
        %v2374 = vunpack.c.l.b16 %v2359
        %v2375 = vunpack.c.l.b16 %v2360
        %v2376 = vpack.c.b16 %v2373, %v2372
        %v2377 = vpack.c.b16 %v2375, %v2374
        %v2381 = vsel %vm1208, %v2356, 0
        %2383 = vmatprep.subr.bf16.mxu0 0
        %2384 = vmatpush1.bf16.msra.mxu0 %v2376
        %2385 = vmatprep.subr.bf16.mxu0 0
        %2386 = vmatpush1.bf16.msra.mxu0 %v2377
        %2387 = vmatprep.subr.bf16.mxu0 0
        %2388 = vmatpush1.bf16.msra.mxu0 0
        %2389 = vmatprep.subr.bf16.mxu0 0
        %2390 = vmatpush1.bf16.msra.mxu0 0
        %2391 = vmatprep.subr.bf16.mxu0 0
        %2392 = vmatpush1.bf16.msra.mxu0 0
        %2393 = vmatprep.subr.bf16.mxu0 0
        %2394 = vmatpush1.bf16.msra.mxu0 0
        %2395 = vmatprep.subr.bf16.mxu0 0
        %2396 = vmatpush1.bf16.msra.mxu0 0
        %2397 = vmatprep.subr.bf16.mxu0 0
        %2398 = vmatpush1.bf16.msra.mxu0 0
        %2399 = vmatprep.subr.bf16.mxu0 0
        %2400 = vmatpush1.bf16.msra.mxu0 0
        %2401 = vmatprep.subr.bf16.mxu0 0
        %2402 = vmatpush1.bf16.msra.mxu0 0
        %2403 = vmatprep.subr.bf16.mxu0 0
        %2404 = vmatpush1.bf16.msra.mxu0 0
        %2405 = vmatprep.subr.bf16.mxu0 0
        %2406 = vmatpush1.bf16.msra.mxu0 0
        %2407 = vmatprep.subr.bf16.mxu0 0
        %2408 = vmatpush1.bf16.msra.mxu0 0
        %2409 = vmatprep.subr.bf16.mxu0 0
        %2410 = vmatpush1.bf16.msra.mxu0 0
        %2411 = vmatprep.subr.bf16.mxu0 0
        %2412 = vmatpush1.bf16.msra.mxu0 0
        %2413 = vmatprep.subr.bf16.mxu0 0
        %2414 = vmatpush1.bf16.msra.mxu0 0
        %2415 = vmatprep.mubr.bf16.mxu0 0
        %2416 = vmatmul.mubr.bf16.gmra.mrb[0].mxu0 %v2381
        %v2417 = vpop.f32.mrb[0].mxu0
        %v2418 = vadd.f32 %v2366, %v2417
        %v2419 = vpop.f32.mrb[0].mxu0
        %v2420 = vpop.f32.mrb[0].mxu0
        %v2421 = vadd.f32 %v2366, %v2420
        %v2422 = vpop.f32.mrb[0].mxu0
        %2423 = vdwg.mxu0
        %v2424 = vpack.c.bf16 %v2421, %v2418
        %v2425 = vld [vmem:[%s1097] sm:$0xff]
        %v2426 = vld [vmem:[%s1097 + $0x8] sm:$0xff]
        %v2427 = vpack.c.bf16 %v2426, %v2425
        %v2428 = vld [vmem:[%s1136] sm:$0xf]
        %v2429 = vld [vmem:[%s1136 + $0x4] sm:$0xf]
        %v2430 = vld [vmem:[%s1136 + $0x8] sm:$0xf]
        %v2431 = vld [vmem:[%s1136 + $0xc] sm:$0xf]
        %v2432 = vld [vmem:[%s923] sm:$0x1]
        %v2434 = vlaneseq
        %v2435 = vshrl.u32 %v2434, 7
        %v2436 = vsub.s32 0, %v2435
        %v2437 = vrot.slane %v2432, %v2436
        %v2443 = vunpack.c.l.b16 %v2428
        %v2444 = vunpack.c.l.b16 %v2429
        %v2445 = vunpack.c.l.b16 %v2430
        %v2446 = vunpack.c.l.b16 %v2431
        %v2447 = vpack.c.b16 %v2444, %v2443
        %v2448 = vpack.c.b16 %v2446, %v2445
        %v2452 = vsel %vm1208, %v2427, 0
        %2454 = vmatprep.subr.bf16.mxu0 0
        %2455 = vmatpush1.bf16.msra.mxu0 %v2447
        %2456 = vmatprep.subr.bf16.mxu0 0
        %2457 = vmatpush1.bf16.msra.mxu0 %v2448
        %2458 = vmatprep.subr.bf16.mxu0 0
        %2459 = vmatpush1.bf16.msra.mxu0 0
        %2460 = vmatprep.subr.bf16.mxu0 0
        %2461 = vmatpush1.bf16.msra.mxu0 0
        %2462 = vmatprep.subr.bf16.mxu0 0
        %2463 = vmatpush1.bf16.msra.mxu0 0
        %2464 = vmatprep.subr.bf16.mxu0 0
        %2465 = vmatpush1.bf16.msra.mxu0 0
        %2466 = vmatprep.subr.bf16.mxu0 0
        %2467 = vmatpush1.bf16.msra.mxu0 0
        %2468 = vmatprep.subr.bf16.mxu0 0
        %2469 = vmatpush1.bf16.msra.mxu0 0
        %2470 = vmatprep.subr.bf16.mxu0 0
        %2471 = vmatpush1.bf16.msra.mxu0 0
        %2472 = vmatprep.subr.bf16.mxu0 0
        %2473 = vmatpush1.bf16.msra.mxu0 0
        %2474 = vmatprep.subr.bf16.mxu0 0
        %2475 = vmatpush1.bf16.msra.mxu0 0
        %2476 = vmatprep.subr.bf16.mxu0 0
        %2477 = vmatpush1.bf16.msra.mxu0 0
        %2478 = vmatprep.subr.bf16.mxu0 0
        %2479 = vmatpush1.bf16.msra.mxu0 0
        %2480 = vmatprep.subr.bf16.mxu0 0
        %2481 = vmatpush1.bf16.msra.mxu0 0
        %2482 = vmatprep.subr.bf16.mxu0 0
        %2483 = vmatpush1.bf16.msra.mxu0 0
        %2484 = vmatprep.subr.bf16.mxu0 0
        %2485 = vmatpush1.bf16.msra.mxu0 0
        %2486 = vmatprep.mubr.bf16.mxu0 0
        %2487 = vmatmul.mubr.bf16.gmra.mrb[0].mxu0 %v2452
        %v2488 = vpop.f32.mrb[0].mxu0
        %v2489 = vadd.f32 %v2437, %v2488
        %v2490 = vpop.f32.mrb[0].mxu0
        %v2491 = vpop.f32.mrb[0].mxu0
        %v2492 = vadd.f32 %v2437, %v2491
        %v2493 = vpop.f32.mrb[0].mxu0
        %2494 = vdwg.mxu0
        %v2495 = vpack.c.bf16 %v2492, %v2489
        %v2496 = vld [vmem:[#allocation4] sm:$0xff]
        %v2498 = vsel %vm1321, %v2424, 0
        %v2501 = vsel %vm1321, %v2495, 0
        %2503 = vmatprep.subr.bf16.mxu0 0
        %2504 = vmatpush1.bf16.xpose.msra.mxu0 %v2501
        %2505 = vmatprep.subr.bf16.mxu0 0
        %2506 = vmatpush1.bf16.xpose.msra.mxu0 0
        %2507 = vmatprep.subr.bf16.mxu0 0
        %2508 = vmatpush1.bf16.xpose.msra.mxu0 0
        %2509 = vmatprep.subr.bf16.mxu0 0
        %2510 = vmatpush1.bf16.xpose.msra.mxu0 0
        %2511 = vmatprep.subr.bf16.mxu0 0
        %2512 = vmatpush1.bf16.xpose.msra.mxu0 0
        %2513 = vmatprep.subr.bf16.mxu0 0
        %2514 = vmatpush1.bf16.xpose.msra.mxu0 0
        %2515 = vmatprep.subr.bf16.mxu0 0
        %2516 = vmatpush1.bf16.xpose.msra.mxu0 0
        %2517 = vmatprep.subr.bf16.mxu0 0
        %2518 = vmatpush1.bf16.xpose.msra.mxu0 0
        %2519 = vmatprep.subr.bf16.mxu0 0
        %2520 = vmatpush1.bf16.xpose.msra.mxu0 0
        %2521 = vmatprep.subr.bf16.mxu0 0
        %2522 = vmatpush1.bf16.xpose.msra.mxu0 0
        %2523 = vmatprep.subr.bf16.mxu0 0
        %2524 = vmatpush1.bf16.xpose.msra.mxu0 0
        %2525 = vmatprep.subr.bf16.mxu0 0
        %2526 = vmatpush1.bf16.xpose.msra.mxu0 0
        %2527 = vmatprep.subr.bf16.mxu0 0
        %2528 = vmatpush1.bf16.xpose.msra.mxu0 0
        %2529 = vmatprep.subr.bf16.mxu0 0
        %2530 = vmatpush1.bf16.xpose.msra.mxu0 0
        %2531 = vmatprep.subr.bf16.mxu0 0
        %2532 = vmatpush1.bf16.xpose.msra.mxu0 0
        %2533 = vmatprep.subr.bf16.mxu0 0
        %2534 = vmatpush1.bf16.xpose.msra.mxu0 0
        %2535 = vmatprep.mubr.bf16.mxu0 0
        %2536 = vmatmul.mubr.bf16.gmra.mrb[0].mxu0 %v2498
        %v2537 = vpop.f32.mrb[0].mxu0
        %v2538 = vadd.f32 0.0, %v2537
        %v2539 = vpop.f32.mrb[0].mxu0
        %v2540 = vpop.f32.mrb[0].mxu0
        %v2541 = vpop.f32.mrb[0].mxu0
        %2542 = vdwg.mxu0
        %v2543 = vmul.f32 %v2538, 0.35355338
        %v2544 = vadd.f32 %v2543, %v2496
        %v2545 = vsel %vm1321, %v2544, -inf
        %2546 = vmax.xlane.f32.xlu0 %v2545
        %v2547 = vpop.xlane.xlu0 %2546
        %v2548 = vsub.f32 %v2544, %v2547
        %v2549 = vmul.f32 %v2548, 1.442695
        %v2550 = vpow.pop %v2549
        %v2551 = vsel %vm1321, %v2550, 0.0
        %2552 = vadd.xlane.f32.xlu0 %v2551
        %v2553 = vpop.xlane.xlu0 %2552
        %v2554 = vrcp.pop %v2553
        %v2555 = vmul.f32 %v2550, %v2554
        %v2556 = vpack.c.bf16 %v2555, %v2555
        %2558 = vrot.lane.b32.xlu0 %v2495, 96
        %v2559 = vpop.permute.xlu0 %2558
        %v2561 = vsel %vm1321, %v2556, 0
        %v2564 = vsel %vm1387, %v2559, 0
        %2566 = vmatprep.subr.bf16.mxu0 0
        %2567 = vmatpush1.bf16.msra.mxu0 %v2564
        %2568 = vmatprep.subr.bf16.mxu0 0
        %2569 = vmatpush1.bf16.msra.mxu0 0
        %2570 = vmatprep.subr.bf16.mxu0 0
        %2571 = vmatpush1.bf16.msra.mxu0 0
        %2572 = vmatprep.subr.bf16.mxu0 0
        %2573 = vmatpush1.bf16.msra.mxu0 0
        %2574 = vmatprep.subr.bf16.mxu0 0
        %2575 = vmatpush1.bf16.msra.mxu0 0
        %2576 = vmatprep.subr.bf16.mxu0 0
        %2577 = vmatpush1.bf16.msra.mxu0 0
        %2578 = vmatprep.subr.bf16.mxu0 0
        %2579 = vmatpush1.bf16.msra.mxu0 0
        %2580 = vmatprep.subr.bf16.mxu0 0
        %2581 = vmatpush1.bf16.msra.mxu0 0
        %2582 = vmatprep.subr.bf16.mxu0 0
        %2583 = vmatpush1.bf16.msra.mxu0 0
        %2584 = vmatprep.subr.bf16.mxu0 0
        %2585 = vmatpush1.bf16.msra.mxu0 0
        %2586 = vmatprep.subr.bf16.mxu0 0
        %2587 = vmatpush1.bf16.msra.mxu0 0
        %2588 = vmatprep.subr.bf16.mxu0 0
        %2589 = vmatpush1.bf16.msra.mxu0 0
        %2590 = vmatprep.subr.bf16.mxu0 0
        %2591 = vmatpush1.bf16.msra.mxu0 0
        %2592 = vmatprep.subr.bf16.mxu0 0
        %2593 = vmatpush1.bf16.msra.mxu0 0
        %2594 = vmatprep.subr.bf16.mxu0 0
        %2595 = vmatpush1.bf16.msra.mxu0 0
        %2596 = vmatprep.subr.bf16.mxu0 0
        %2597 = vmatpush1.bf16.msra.mxu0 0
        %2598 = vmatprep.mubr.bf16.mxu0 0
        %2599 = vmatmul.mubr.bf16.gmra.mrb[0].mxu0 %v2561
        %v2600 = vpop.f32.mrb[0].mxu0
        %v2601 = vadd.f32 0.0, %v2600
        %v2602 = vpop.f32.mrb[0].mxu0
        %v2603 = vpop.f32.mrb[0].mxu0
        %v2604 = vpop.f32.mrb[0].mxu0
        %2605 = vdwg.mxu0
        %2607 = vrot.lane.b32.xlu0 %v2424, 120
        %v2608 = vpop.permute.xlu0 %2607
        %2609 = vrot.lane.b32.xlu0 %v2495, 120
        %v2610 = vpop.permute.xlu0 %2609
        %v2612 = vsel %vm1321, %v2608, 0
        %v2615 = vsel %vm1321, %v2610, 0
        %2617 = vmatprep.subr.bf16.mxu0 0
        %2618 = vmatpush1.bf16.xpose.msra.mxu0 %v2615
        %2619 = vmatprep.subr.bf16.mxu0 0
        %2620 = vmatpush1.bf16.xpose.msra.mxu0 0
        %2621 = vmatprep.subr.bf16.mxu0 0
        %2622 = vmatpush1.bf16.xpose.msra.mxu0 0
        %2623 = vmatprep.subr.bf16.mxu0 0
        %2624 = vmatpush1.bf16.xpose.msra.mxu0 0
        %2625 = vmatprep.subr.bf16.mxu0 0
        %2626 = vmatpush1.bf16.xpose.msra.mxu0 0
        %2627 = vmatprep.subr.bf16.mxu0 0
        %2628 = vmatpush1.bf16.xpose.msra.mxu0 0
        %2629 = vmatprep.subr.bf16.mxu0 0
        %2630 = vmatpush1.bf16.xpose.msra.mxu0 0
        %2631 = vmatprep.subr.bf16.mxu0 0
        %2632 = vmatpush1.bf16.xpose.msra.mxu0 0
        %2633 = vmatprep.subr.bf16.mxu0 0
        %2634 = vmatpush1.bf16.xpose.msra.mxu0 0
        %2635 = vmatprep.subr.bf16.mxu0 0
        %2636 = vmatpush1.bf16.xpose.msra.mxu0 0
        %2637 = vmatprep.subr.bf16.mxu0 0
        %2638 = vmatpush1.bf16.xpose.msra.mxu0 0
        %2639 = vmatprep.subr.bf16.mxu0 0
        %2640 = vmatpush1.bf16.xpose.msra.mxu0 0
        %2641 = vmatprep.subr.bf16.mxu0 0
        %2642 = vmatpush1.bf16.xpose.msra.mxu0 0
        %2643 = vmatprep.subr.bf16.mxu0 0
        %2644 = vmatpush1.bf16.xpose.msra.mxu0 0
        %2645 = vmatprep.subr.bf16.mxu0 0
        %2646 = vmatpush1.bf16.xpose.msra.mxu0 0
        %2647 = vmatprep.subr.bf16.mxu0 0
        %2648 = vmatpush1.bf16.xpose.msra.mxu0 0
        %2649 = vmatprep.mubr.bf16.mxu0 0
        %2650 = vmatmul.mubr.bf16.gmra.mrb[0].mxu0 %v2612
        %v2651 = vpop.f32.mrb[0].mxu0
        %v2652 = vadd.f32 0.0, %v2651
        %v2653 = vpop.f32.mrb[0].mxu0
        %v2654 = vpop.f32.mrb[0].mxu0
        %v2655 = vpop.f32.mrb[0].mxu0
        %2656 = vdwg.mxu0
        %v2657 = vmul.f32 %v2652, 0.35355338
        %v2658 = vadd.f32 %v2657, %v2496
        %v2659 = vsel %vm1321, %v2658, -inf
        %2660 = vmax.xlane.f32.xlu0 %v2659
        %v2661 = vpop.xlane.xlu0 %2660
        %v2662 = vsub.f32 %v2658, %v2661
        %v2663 = vmul.f32 %v2662, 1.442695
        %v2664 = vpow.pop %v2663
        %v2665 = vsel %vm1321, %v2664, 0.0
        %2666 = vadd.xlane.f32.xlu0 %v2665
        %v2667 = vpop.xlane.xlu0 %2666
        %v2668 = vrcp.pop %v2667
        %v2669 = vmul.f32 %v2664, %v2668
        %v2670 = vpack.c.bf16 %v2669, %v2669
        %2671 = vrot.lane.b32.xlu0 %v2495, 88
        %v2672 = vpop.permute.xlu0 %2671
        %v2674 = vsel %vm1321, %v2670, 0
        %v2677 = vsel %vm1387, %v2672, 0
        %2679 = vmatprep.subr.bf16.mxu0 0
        %2680 = vmatpush1.bf16.msra.mxu0 %v2677
        %2681 = vmatprep.subr.bf16.mxu0 0
        %2682 = vmatpush1.bf16.msra.mxu0 0
        %2683 = vmatprep.subr.bf16.mxu0 0
        %2684 = vmatpush1.bf16.msra.mxu0 0
        %2685 = vmatprep.subr.bf16.mxu0 0
        %2686 = vmatpush1.bf16.msra.mxu0 0
        %2687 = vmatprep.subr.bf16.mxu0 0
        %2688 = vmatpush1.bf16.msra.mxu0 0
        %2689 = vmatprep.subr.bf16.mxu0 0
        %2690 = vmatpush1.bf16.msra.mxu0 0
        %2691 = vmatprep.subr.bf16.mxu0 0
        %2692 = vmatpush1.bf16.msra.mxu0 0
        %2693 = vmatprep.subr.bf16.mxu0 0
        %2694 = vmatpush1.bf16.msra.mxu0 0
        %2695 = vmatprep.subr.bf16.mxu0 0
        %2696 = vmatpush1.bf16.msra.mxu0 0
        %2697 = vmatprep.subr.bf16.mxu0 0
        %2698 = vmatpush1.bf16.msra.mxu0 0
        %2699 = vmatprep.subr.bf16.mxu0 0
        %2700 = vmatpush1.bf16.msra.mxu0 0
        %2701 = vmatprep.subr.bf16.mxu0 0
        %2702 = vmatpush1.bf16.msra.mxu0 0
        %2703 = vmatprep.subr.bf16.mxu0 0
        %2704 = vmatpush1.bf16.msra.mxu0 0
        %2705 = vmatprep.subr.bf16.mxu0 0
        %2706 = vmatpush1.bf16.msra.mxu0 0
        %2707 = vmatprep.subr.bf16.mxu0 0
        %2708 = vmatpush1.bf16.msra.mxu0 0
        %2709 = vmatprep.subr.bf16.mxu0 0
        %2710 = vmatpush1.bf16.msra.mxu0 0
        %2711 = vmatprep.mubr.bf16.mxu0 0
        %2712 = vmatmul.mubr.bf16.gmra.mrb[0].mxu0 %v2674
        %v2713 = vpop.f32.mrb[0].mxu0
        %v2714 = vadd.f32 0.0, %v2713
        %v2715 = vpop.f32.mrb[0].mxu0
        %v2716 = vpop.f32.mrb[0].mxu0
        %v2717 = vpop.f32.mrb[0].mxu0
        %2718 = vdwg.mxu0
        %2719 = vrot.lane.b32.xlu0 %v2424, 112
        %v2720 = vpop.permute.xlu0 %2719
        %2721 = vrot.lane.b32.xlu0 %v2495, 112
        %v2722 = vpop.permute.xlu0 %2721
        %v2724 = vsel %vm1321, %v2720, 0
        %v2727 = vsel %vm1321, %v2722, 0
        %2729 = vmatprep.subr.bf16.mxu0 0
        %2730 = vmatpush1.bf16.xpose.msra.mxu0 %v2727
        %2731 = vmatprep.subr.bf16.mxu0 0
        %2732 = vmatpush1.bf16.xpose.msra.mxu0 0
        %2733 = vmatprep.subr.bf16.mxu0 0
        %2734 = vmatpush1.bf16.xpose.msra.mxu0 0
        %2735 = vmatprep.subr.bf16.mxu0 0
        %2736 = vmatpush1.bf16.xpose.msra.mxu0 0
        %2737 = vmatprep.subr.bf16.mxu0 0
        %2738 = vmatpush1.bf16.xpose.msra.mxu0 0
        %2739 = vmatprep.subr.bf16.mxu0 0
        %2740 = vmatpush1.bf16.xpose.msra.mxu0 0
        %2741 = vmatprep.subr.bf16.mxu0 0
        %2742 = vmatpush1.bf16.xpose.msra.mxu0 0
        %2743 = vmatprep.subr.bf16.mxu0 0
        %2744 = vmatpush1.bf16.xpose.msra.mxu0 0
        %2745 = vmatprep.subr.bf16.mxu0 0
        %2746 = vmatpush1.bf16.xpose.msra.mxu0 0
        %2747 = vmatprep.subr.bf16.mxu0 0
        %2748 = vmatpush1.bf16.xpose.msra.mxu0 0
        %2749 = vmatprep.subr.bf16.mxu0 0
        %2750 = vmatpush1.bf16.xpose.msra.mxu0 0
        %2751 = vmatprep.subr.bf16.mxu0 0
        %2752 = vmatpush1.bf16.xpose.msra.mxu0 0
        %2753 = vmatprep.subr.bf16.mxu0 0
        %2754 = vmatpush1.bf16.xpose.msra.mxu0 0
        %2755 = vmatprep.subr.bf16.mxu0 0
        %2756 = vmatpush1.bf16.xpose.msra.mxu0 0
        %2757 = vmatprep.subr.bf16.mxu0 0
        %2758 = vmatpush1.bf16.xpose.msra.mxu0 0
        %2759 = vmatprep.subr.bf16.mxu0 0
        %2760 = vmatpush1.bf16.xpose.msra.mxu0 0
        %2761 = vmatprep.mubr.bf16.mxu0 0
        %2762 = vmatmul.mubr.bf16.gmra.mrb[0].mxu0 %v2724
        %v2763 = vpop.f32.mrb[0].mxu0
        %v2764 = vadd.f32 0.0, %v2763
        %v2765 = vpop.f32.mrb[0].mxu0
        %v2766 = vpop.f32.mrb[0].mxu0
        %v2767 = vpop.f32.mrb[0].mxu0
        %2768 = vdwg.mxu0
        %v2769 = vmul.f32 %v2764, 0.35355338
        %v2770 = vadd.f32 %v2769, %v2496
        %v2771 = vsel %vm1321, %v2770, -inf
        %2772 = vmax.xlane.f32.xlu0 %v2771
        %v2773 = vpop.xlane.xlu0 %2772
        %v2774 = vsub.f32 %v2770, %v2773
        %v2775 = vmul.f32 %v2774, 1.442695
        %v2776 = vpow.pop %v2775
        %v2777 = vsel %vm1321, %v2776, 0.0
        %2778 = vadd.xlane.f32.xlu0 %v2777
        %v2779 = vpop.xlane.xlu0 %2778
        %v2780 = vrcp.pop %v2779
        %v2781 = vmul.f32 %v2776, %v2780
        %v2782 = vpack.c.bf16 %v2781, %v2781
        %2783 = vrot.lane.b32.xlu0 %v2495, 80
        %v2784 = vpop.permute.xlu0 %2783
        %v2786 = vsel %vm1321, %v2782, 0
        %v2789 = vsel %vm1387, %v2784, 0
        %2791 = vmatprep.subr.bf16.mxu0 0
        %2792 = vmatpush1.bf16.msra.mxu0 %v2789
        %2793 = vmatprep.subr.bf16.mxu0 0
        %2794 = vmatpush1.bf16.msra.mxu0 0
        %2795 = vmatprep.subr.bf16.mxu0 0
        %2796 = vmatpush1.bf16.msra.mxu0 0
        %2797 = vmatprep.subr.bf16.mxu0 0
        %2798 = vmatpush1.bf16.msra.mxu0 0
        %2799 = vmatprep.subr.bf16.mxu0 0
        %2800 = vmatpush1.bf16.msra.mxu0 0
        %2801 = vmatprep.subr.bf16.mxu0 0
        %2802 = vmatpush1.bf16.msra.mxu0 0
        %2803 = vmatprep.subr.bf16.mxu0 0
        %2804 = vmatpush1.bf16.msra.mxu0 0
        %2805 = vmatprep.subr.bf16.mxu0 0
        %2806 = vmatpush1.bf16.msra.mxu0 0
        %2807 = vmatprep.subr.bf16.mxu0 0
        %2808 = vmatpush1.bf16.msra.mxu0 0
        %2809 = vmatprep.subr.bf16.mxu0 0
        %2810 = vmatpush1.bf16.msra.mxu0 0
        %2811 = vmatprep.subr.bf16.mxu0 0
        %2812 = vmatpush1.bf16.msra.mxu0 0
        %2813 = vmatprep.subr.bf16.mxu0 0
        %2814 = vmatpush1.bf16.msra.mxu0 0
        %2815 = vmatprep.subr.bf16.mxu0 0
        %2816 = vmatpush1.bf16.msra.mxu0 0
        %2817 = vmatprep.subr.bf16.mxu0 0
        %2818 = vmatpush1.bf16.msra.mxu0 0
        %2819 = vmatprep.subr.bf16.mxu0 0
        %2820 = vmatpush1.bf16.msra.mxu0 0
        %2821 = vmatprep.subr.bf16.mxu0 0
        %2822 = vmatpush1.bf16.msra.mxu0 0
        %2823 = vmatprep.mubr.bf16.mxu0 0
        %2824 = vmatmul.mubr.bf16.gmra.mrb[0].mxu0 %v2786
        %v2825 = vpop.f32.mrb[0].mxu0
        %v2826 = vadd.f32 0.0, %v2825
        %v2827 = vpop.f32.mrb[0].mxu0
        %v2828 = vpop.f32.mrb[0].mxu0
        %v2829 = vpop.f32.mrb[0].mxu0
        %2830 = vdwg.mxu0
        %2831 = vrot.lane.b32.xlu0 %v2424, 104
        %v2832 = vpop.permute.xlu0 %2831
        %2833 = vrot.lane.b32.xlu0 %v2495, 104
        %v2834 = vpop.permute.xlu0 %2833
        %v2836 = vsel %vm1321, %v2832, 0
        %v2839 = vsel %vm1321, %v2834, 0
        %2841 = vmatprep.subr.bf16.mxu0 0
        %2842 = vmatpush1.bf16.xpose.msra.mxu0 %v2839
        %2843 = vmatprep.subr.bf16.mxu0 0
        %2844 = vmatpush1.bf16.xpose.msra.mxu0 0
        %2845 = vmatprep.subr.bf16.mxu0 0
        %2846 = vmatpush1.bf16.xpose.msra.mxu0 0
        %2847 = vmatprep.subr.bf16.mxu0 0
        %2848 = vmatpush1.bf16.xpose.msra.mxu0 0
        %2849 = vmatprep.subr.bf16.mxu0 0
        %2850 = vmatpush1.bf16.xpose.msra.mxu0 0
        %2851 = vmatprep.subr.bf16.mxu0 0
        %2852 = vmatpush1.bf16.xpose.msra.mxu0 0
        %2853 = vmatprep.subr.bf16.mxu0 0
        %2854 = vmatpush1.bf16.xpose.msra.mxu0 0
        %2855 = vmatprep.subr.bf16.mxu0 0
        %2856 = vmatpush1.bf16.xpose.msra.mxu0 0
        %2857 = vmatprep.subr.bf16.mxu0 0
        %2858 = vmatpush1.bf16.xpose.msra.mxu0 0
        %2859 = vmatprep.subr.bf16.mxu0 0
        %2860 = vmatpush1.bf16.xpose.msra.mxu0 0
        %2861 = vmatprep.subr.bf16.mxu0 0
        %2862 = vmatpush1.bf16.xpose.msra.mxu0 0
        %2863 = vmatprep.subr.bf16.mxu0 0
        %2864 = vmatpush1.bf16.xpose.msra.mxu0 0
        %2865 = vmatprep.subr.bf16.mxu0 0
        %2866 = vmatpush1.bf16.xpose.msra.mxu0 0
        %2867 = vmatprep.subr.bf16.mxu0 0
        %2868 = vmatpush1.bf16.xpose.msra.mxu0 0
        %2869 = vmatprep.subr.bf16.mxu0 0
        %2870 = vmatpush1.bf16.xpose.msra.mxu0 0
        %2871 = vmatprep.subr.bf16.mxu0 0
        %2872 = vmatpush1.bf16.xpose.msra.mxu0 0
        %2873 = vmatprep.mubr.bf16.mxu0 0
        %2874 = vmatmul.mubr.bf16.gmra.mrb[0].mxu0 %v2836
        %v2875 = vpop.f32.mrb[0].mxu0
        %v2876 = vadd.f32 0.0, %v2875
        %v2877 = vpop.f32.mrb[0].mxu0
        %v2878 = vpop.f32.mrb[0].mxu0
        %v2879 = vpop.f32.mrb[0].mxu0
        %2880 = vdwg.mxu0
        %v2881 = vmul.f32 %v2876, 0.35355338
        %v2882 = vadd.f32 %v2881, %v2496
        %v2883 = vsel %vm1321, %v2882, -inf
        %2884 = vmax.xlane.f32.xlu0 %v2883
        %v2885 = vpop.xlane.xlu0 %2884
        %v2886 = vsub.f32 %v2882, %v2885
        %v2887 = vmul.f32 %v2886, 1.442695
        %v2888 = vpow.pop %v2887
        %v2889 = vsel %vm1321, %v2888, 0.0
        %2890 = vadd.xlane.f32.xlu0 %v2889
        %v2891 = vpop.xlane.xlu0 %2890
        %v2892 = vrcp.pop %v2891
        %v2893 = vmul.f32 %v2888, %v2892
        %v2894 = vpack.c.bf16 %v2893, %v2893
        %2895 = vrot.lane.b32.xlu0 %v2495, 72
        %v2896 = vpop.permute.xlu0 %2895
        %v2898 = vsel %vm1321, %v2894, 0
        %v2901 = vsel %vm1387, %v2896, 0
        %2903 = vmatprep.subr.bf16.mxu0 0
        %2904 = vmatpush1.bf16.msra.mxu0 %v2901
        %2905 = vmatprep.subr.bf16.mxu0 0
        %2906 = vmatpush1.bf16.msra.mxu0 0
        %2907 = vmatprep.subr.bf16.mxu0 0
        %2908 = vmatpush1.bf16.msra.mxu0 0
        %2909 = vmatprep.subr.bf16.mxu0 0
        %2910 = vmatpush1.bf16.msra.mxu0 0
        %2911 = vmatprep.subr.bf16.mxu0 0
        %2912 = vmatpush1.bf16.msra.mxu0 0
        %2913 = vmatprep.subr.bf16.mxu0 0
        %2914 = vmatpush1.bf16.msra.mxu0 0
        %2915 = vmatprep.subr.bf16.mxu0 0
        %2916 = vmatpush1.bf16.msra.mxu0 0
        %2917 = vmatprep.subr.bf16.mxu0 0
        %2918 = vmatpush1.bf16.msra.mxu0 0
        %2919 = vmatprep.subr.bf16.mxu0 0
        %2920 = vmatpush1.bf16.msra.mxu0 0
        %2921 = vmatprep.subr.bf16.mxu0 0
        %2922 = vmatpush1.bf16.msra.mxu0 0
        %2923 = vmatprep.subr.bf16.mxu0 0
        %2924 = vmatpush1.bf16.msra.mxu0 0
        %2925 = vmatprep.subr.bf16.mxu0 0
        %2926 = vmatpush1.bf16.msra.mxu0 0
        %2927 = vmatprep.subr.bf16.mxu0 0
        %2928 = vmatpush1.bf16.msra.mxu0 0
        %2929 = vmatprep.subr.bf16.mxu0 0
        %2930 = vmatpush1.bf16.msra.mxu0 0
        %2931 = vmatprep.subr.bf16.mxu0 0
        %2932 = vmatpush1.bf16.msra.mxu0 0
        %2933 = vmatprep.subr.bf16.mxu0 0
        %2934 = vmatpush1.bf16.msra.mxu0 0
        %2935 = vmatprep.mubr.bf16.mxu0 0
        %2936 = vmatmul.mubr.bf16.gmra.mrb[0].mxu0 %v2898
        %v2937 = vpop.f32.mrb[0].mxu0
        %v2938 = vadd.f32 0.0, %v2937
        %v2939 = vpop.f32.mrb[0].mxu0
        %v2940 = vpop.f32.mrb[0].mxu0
        %v2941 = vpop.f32.mrb[0].mxu0
        %2942 = vdwg.mxu0
        %2944 = vrot.lane.b32.xlu0 %v2714, 8
        %v2945 = vpop.permute.xlu0 %2944
        %2948 = vrot.lane.b32.xlu0 %v2826, 16
        %v2949 = vpop.permute.xlu0 %2948
        %2952 = vrot.lane.b32.xlu0 %v2938, 24
        %v2953 = vpop.permute.xlu0 %2952
        %v2955 = vsel %vm1321, %v2601, %v2945
        %v2956 = vsel %vm1780, %v2955, %v2949
        %v2957 = vsel %vm1782, %v2956, %v2953
        %s2958 = scalar_lea.vmem [#allocation4], 8
        %v2959 = vld [vmem:[%s2958] sm:$0xff]
        %v2960 = vrot.slane %v2424, 4
        %v2961 = vrot.slane %v2495, 4
        %v2963 = vsel %vm1321, %v2960, 0
        %v2966 = vsel %vm1321, %v2961, 0
        %2968 = vmatprep.subr.bf16.mxu0 0
        %2969 = vmatpush1.bf16.xpose.msra.mxu0 %v2966
        %2970 = vmatprep.subr.bf16.mxu0 0
        %2971 = vmatpush1.bf16.xpose.msra.mxu0 0
        %2972 = vmatprep.subr.bf16.mxu0 0
        %2973 = vmatpush1.bf16.xpose.msra.mxu0 0
        %2974 = vmatprep.subr.bf16.mxu0 0
        %2975 = vmatpush1.bf16.xpose.msra.mxu0 0
        %2976 = vmatprep.subr.bf16.mxu0 0
        %2977 = vmatpush1.bf16.xpose.msra.mxu0 0
        %2978 = vmatprep.subr.bf16.mxu0 0
        %2979 = vmatpush1.bf16.xpose.msra.mxu0 0
        %2980 = vmatprep.subr.bf16.mxu0 0
        %2981 = vmatpush1.bf16.xpose.msra.mxu0 0
        %2982 = vmatprep.subr.bf16.mxu0 0
        %2983 = vmatpush1.bf16.xpose.msra.mxu0 0
        %2984 = vmatprep.subr.bf16.mxu0 0
        %2985 = vmatpush1.bf16.xpose.msra.mxu0 0
        %2986 = vmatprep.subr.bf16.mxu0 0
        %2987 = vmatpush1.bf16.xpose.msra.mxu0 0
        %2988 = vmatprep.subr.bf16.mxu0 0
        %2989 = vmatpush1.bf16.xpose.msra.mxu0 0
        %2990 = vmatprep.subr.bf16.mxu0 0
        %2991 = vmatpush1.bf16.xpose.msra.mxu0 0
        %2992 = vmatprep.subr.bf16.mxu0 0
        %2993 = vmatpush1.bf16.xpose.msra.mxu0 0
        %2994 = vmatprep.subr.bf16.mxu0 0
        %2995 = vmatpush1.bf16.xpose.msra.mxu0 0
        %2996 = vmatprep.subr.bf16.mxu0 0
        %2997 = vmatpush1.bf16.xpose.msra.mxu0 0
        %2998 = vmatprep.subr.bf16.mxu0 0
        %2999 = vmatpush1.bf16.xpose.msra.mxu0 0
        %3000 = vmatprep.mubr.bf16.mxu0 0
        %3001 = vmatmul.mubr.bf16.gmra.mrb[0].mxu0 %v2963
        %v3002 = vpop.f32.mrb[0].mxu0
        %v3003 = vadd.f32 0.0, %v3002
        %v3004 = vpop.f32.mrb[0].mxu0
        %v3005 = vpop.f32.mrb[0].mxu0
        %v3006 = vpop.f32.mrb[0].mxu0
        %3007 = vdwg.mxu0
        %v3008 = vmul.f32 %v3003, 0.35355338
        %v3009 = vadd.f32 %v3008, %v2959
        %v3010 = vsel %vm1321, %v3009, -inf
        %3011 = vmax.xlane.f32.xlu0 %v3010
        %v3012 = vpop.xlane.xlu0 %3011
        %v3013 = vsub.f32 %v3009, %v3012
        %v3014 = vmul.f32 %v3013, 1.442695
        %v3015 = vpow.pop %v3014
        %v3016 = vsel %vm1321, %v3015, 0.0
        %3017 = vadd.xlane.f32.xlu0 %v3016
        %v3018 = vpop.xlane.xlu0 %3017
        %v3019 = vrcp.pop %v3018
        %v3020 = vmul.f32 %v3015, %v3019
        %v3021 = vpack.c.bf16 %v3020, %v3020
        %3022 = vrot.lane.b32.xlu0 %v2961, 96
        %v3023 = vpop.permute.xlu0 %3022
        %v3025 = vsel %vm1321, %v3021, 0
        %v3028 = vsel %vm1387, %v3023, 0
        %3030 = vmatprep.subr.bf16.mxu0 0
        %3031 = vmatpush1.bf16.msra.mxu0 %v3028
        %3032 = vmatprep.subr.bf16.mxu0 0
        %3033 = vmatpush1.bf16.msra.mxu0 0
        %3034 = vmatprep.subr.bf16.mxu0 0
        %3035 = vmatpush1.bf16.msra.mxu0 0
        %3036 = vmatprep.subr.bf16.mxu0 0
        %3037 = vmatpush1.bf16.msra.mxu0 0
        %3038 = vmatprep.subr.bf16.mxu0 0
        %3039 = vmatpush1.bf16.msra.mxu0 0
        %3040 = vmatprep.subr.bf16.mxu0 0
        %3041 = vmatpush1.bf16.msra.mxu0 0
        %3042 = vmatprep.subr.bf16.mxu0 0
        %3043 = vmatpush1.bf16.msra.mxu0 0
        %3044 = vmatprep.subr.bf16.mxu0 0
        %3045 = vmatpush1.bf16.msra.mxu0 0
        %3046 = vmatprep.subr.bf16.mxu0 0
        %3047 = vmatpush1.bf16.msra.mxu0 0
        %3048 = vmatprep.subr.bf16.mxu0 0
        %3049 = vmatpush1.bf16.msra.mxu0 0
        %3050 = vmatprep.subr.bf16.mxu0 0
        %3051 = vmatpush1.bf16.msra.mxu0 0
        %3052 = vmatprep.subr.bf16.mxu0 0
        %3053 = vmatpush1.bf16.msra.mxu0 0
        %3054 = vmatprep.subr.bf16.mxu0 0
        %3055 = vmatpush1.bf16.msra.mxu0 0
        %3056 = vmatprep.subr.bf16.mxu0 0
        %3057 = vmatpush1.bf16.msra.mxu0 0
        %3058 = vmatprep.subr.bf16.mxu0 0
        %3059 = vmatpush1.bf16.msra.mxu0 0
        %3060 = vmatprep.subr.bf16.mxu0 0
        %3061 = vmatpush1.bf16.msra.mxu0 0
        %3062 = vmatprep.mubr.bf16.mxu0 0
        %3063 = vmatmul.mubr.bf16.gmra.mrb[0].mxu0 %v3025
        %v3064 = vpop.f32.mrb[0].mxu0
        %v3065 = vadd.f32 0.0, %v3064
        %v3066 = vpop.f32.mrb[0].mxu0
        %v3067 = vpop.f32.mrb[0].mxu0
        %v3068 = vpop.f32.mrb[0].mxu0
        %3069 = vdwg.mxu0
        %3070 = vrot.lane.b32.xlu0 %v2960, 120
        %v3071 = vpop.permute.xlu0 %3070
        %3072 = vrot.lane.b32.xlu0 %v2961, 120
        %v3073 = vpop.permute.xlu0 %3072
        %v3075 = vsel %vm1321, %v3071, 0
        %v3078 = vsel %vm1321, %v3073, 0
        %3080 = vmatprep.subr.bf16.mxu0 0
        %3081 = vmatpush1.bf16.xpose.msra.mxu0 %v3078
        %3082 = vmatprep.subr.bf16.mxu0 0
        %3083 = vmatpush1.bf16.xpose.msra.mxu0 0
        %3084 = vmatprep.subr.bf16.mxu0 0
        %3085 = vmatpush1.bf16.xpose.msra.mxu0 0
        %3086 = vmatprep.subr.bf16.mxu0 0
        %3087 = vmatpush1.bf16.xpose.msra.mxu0 0
        %3088 = vmatprep.subr.bf16.mxu0 0
        %3089 = vmatpush1.bf16.xpose.msra.mxu0 0
        %3090 = vmatprep.subr.bf16.mxu0 0
        %3091 = vmatpush1.bf16.xpose.msra.mxu0 0
        %3092 = vmatprep.subr.bf16.mxu0 0
        %3093 = vmatpush1.bf16.xpose.msra.mxu0 0
        %3094 = vmatprep.subr.bf16.mxu0 0
        %3095 = vmatpush1.bf16.xpose.msra.mxu0 0
        %3096 = vmatprep.subr.bf16.mxu0 0
        %3097 = vmatpush1.bf16.xpose.msra.mxu0 0
        %3098 = vmatprep.subr.bf16.mxu0 0
        %3099 = vmatpush1.bf16.xpose.msra.mxu0 0
        %3100 = vmatprep.subr.bf16.mxu0 0
        %3101 = vmatpush1.bf16.xpose.msra.mxu0 0
        %3102 = vmatprep.subr.bf16.mxu0 0
        %3103 = vmatpush1.bf16.xpose.msra.mxu0 0
        %3104 = vmatprep.subr.bf16.mxu0 0
        %3105 = vmatpush1.bf16.xpose.msra.mxu0 0
        %3106 = vmatprep.subr.bf16.mxu0 0
        %3107 = vmatpush1.bf16.xpose.msra.mxu0 0
        %3108 = vmatprep.subr.bf16.mxu0 0
        %3109 = vmatpush1.bf16.xpose.msra.mxu0 0
        %3110 = vmatprep.subr.bf16.mxu0 0
        %3111 = vmatpush1.bf16.xpose.msra.mxu0 0
        %3112 = vmatprep.mubr.bf16.mxu0 0
        %3113 = vmatmul.mubr.bf16.gmra.mrb[0].mxu0 %v3075
        %v3114 = vpop.f32.mrb[0].mxu0
        %v3115 = vadd.f32 0.0, %v3114
        %v3116 = vpop.f32.mrb[0].mxu0
        %v3117 = vpop.f32.mrb[0].mxu0
        %v3118 = vpop.f32.mrb[0].mxu0
        %3119 = vdwg.mxu0
        %v3120 = vmul.f32 %v3115, 0.35355338
        %v3121 = vadd.f32 %v3120, %v2959
        %v3122 = vsel %vm1321, %v3121, -inf
        %3123 = vmax.xlane.f32.xlu0 %v3122
        %v3124 = vpop.xlane.xlu0 %3123
        %v3125 = vsub.f32 %v3121, %v3124
        %v3126 = vmul.f32 %v3125, 1.442695
        %v3127 = vpow.pop %v3126
        %v3128 = vsel %vm1321, %v3127, 0.0
        %3129 = vadd.xlane.f32.xlu0 %v3128
        %v3130 = vpop.xlane.xlu0 %3129
        %v3131 = vrcp.pop %v3130
        %v3132 = vmul.f32 %v3127, %v3131
        %v3133 = vpack.c.bf16 %v3132, %v3132
        %3134 = vrot.lane.b32.xlu0 %v2961, 88
        %v3135 = vpop.permute.xlu0 %3134
        %v3137 = vsel %vm1321, %v3133, 0
        %v3140 = vsel %vm1387, %v3135, 0
        %3142 = vmatprep.subr.bf16.mxu0 0
        %3143 = vmatpush1.bf16.msra.mxu0 %v3140
        %3144 = vmatprep.subr.bf16.mxu0 0
        %3145 = vmatpush1.bf16.msra.mxu0 0
        %3146 = vmatprep.subr.bf16.mxu0 0
        %3147 = vmatpush1.bf16.msra.mxu0 0
        %3148 = vmatprep.subr.bf16.mxu0 0
        %3149 = vmatpush1.bf16.msra.mxu0 0
        %3150 = vmatprep.subr.bf16.mxu0 0
        %3151 = vmatpush1.bf16.msra.mxu0 0
        %3152 = vmatprep.subr.bf16.mxu0 0
        %3153 = vmatpush1.bf16.msra.mxu0 0
        %3154 = vmatprep.subr.bf16.mxu0 0
        %3155 = vmatpush1.bf16.msra.mxu0 0
        %3156 = vmatprep.subr.bf16.mxu0 0
        %3157 = vmatpush1.bf16.msra.mxu0 0
        %3158 = vmatprep.subr.bf16.mxu0 0
        %3159 = vmatpush1.bf16.msra.mxu0 0
        %3160 = vmatprep.subr.bf16.mxu0 0
        %3161 = vmatpush1.bf16.msra.mxu0 0
        %3162 = vmatprep.subr.bf16.mxu0 0
        %3163 = vmatpush1.bf16.msra.mxu0 0
        %3164 = vmatprep.subr.bf16.mxu0 0
        %3165 = vmatpush1.bf16.msra.mxu0 0
        %3166 = vmatprep.subr.bf16.mxu0 0
        %3167 = vmatpush1.bf16.msra.mxu0 0
        %3168 = vmatprep.subr.bf16.mxu0 0
        %3169 = vmatpush1.bf16.msra.mxu0 0
        %3170 = vmatprep.subr.bf16.mxu0 0
        %3171 = vmatpush1.bf16.msra.mxu0 0
        %3172 = vmatprep.subr.bf16.mxu0 0
        %3173 = vmatpush1.bf16.msra.mxu0 0
        %3174 = vmatprep.mubr.bf16.mxu0 0
        %3175 = vmatmul.mubr.bf16.gmra.mrb[0].mxu0 %v3137
        %v3176 = vpop.f32.mrb[0].mxu0
        %v3177 = vadd.f32 0.0, %v3176
        %v3178 = vpop.f32.mrb[0].mxu0
        %v3179 = vpop.f32.mrb[0].mxu0
        %v3180 = vpop.f32.mrb[0].mxu0
        %3181 = vdwg.mxu0
        %3182 = vrot.lane.b32.xlu0 %v2960, 112
        %v3183 = vpop.permute.xlu0 %3182
        %3184 = vrot.lane.b32.xlu0 %v2961, 112
        %v3185 = vpop.permute.xlu0 %3184
        %v3187 = vsel %vm1321, %v3183, 0
        %v3190 = vsel %vm1321, %v3185, 0
        %3192 = vmatprep.subr.bf16.mxu0 0
        %3193 = vmatpush1.bf16.xpose.msra.mxu0 %v3190
        %3194 = vmatprep.subr.bf16.mxu0 0
        %3195 = vmatpush1.bf16.xpose.msra.mxu0 0
        %3196 = vmatprep.subr.bf16.mxu0 0
        %3197 = vmatpush1.bf16.xpose.msra.mxu0 0
        %3198 = vmatprep.subr.bf16.mxu0 0
        %3199 = vmatpush1.bf16.xpose.msra.mxu0 0
        %3200 = vmatprep.subr.bf16.mxu0 0
        %3201 = vmatpush1.bf16.xpose.msra.mxu0 0
        %3202 = vmatprep.subr.bf16.mxu0 0
        %3203 = vmatpush1.bf16.xpose.msra.mxu0 0
        %3204 = vmatprep.subr.bf16.mxu0 0
        %3205 = vmatpush1.bf16.xpose.msra.mxu0 0
        %3206 = vmatprep.subr.bf16.mxu0 0
        %3207 = vmatpush1.bf16.xpose.msra.mxu0 0
        %3208 = vmatprep.subr.bf16.mxu0 0
        %3209 = vmatpush1.bf16.xpose.msra.mxu0 0
        %3210 = vmatprep.subr.bf16.mxu0 0
        %3211 = vmatpush1.bf16.xpose.msra.mxu0 0
        %3212 = vmatprep.subr.bf16.mxu0 0
        %3213 = vmatpush1.bf16.xpose.msra.mxu0 0
        %3214 = vmatprep.subr.bf16.mxu0 0
        %3215 = vmatpush1.bf16.xpose.msra.mxu0 0
        %3216 = vmatprep.subr.bf16.mxu0 0
        %3217 = vmatpush1.bf16.xpose.msra.mxu0 0
        %3218 = vmatprep.subr.bf16.mxu0 0
        %3219 = vmatpush1.bf16.xpose.msra.mxu0 0
        %3220 = vmatprep.subr.bf16.mxu0 0
        %3221 = vmatpush1.bf16.xpose.msra.mxu0 0
        %3222 = vmatprep.subr.bf16.mxu0 0
        %3223 = vmatpush1.bf16.xpose.msra.mxu0 0
        %3224 = vmatprep.mubr.bf16.mxu0 0
        %3225 = vmatmul.mubr.bf16.gmra.mrb[0].mxu0 %v3187
        %v3226 = vpop.f32.mrb[0].mxu0
        %v3227 = vadd.f32 0.0, %v3226
        %v3228 = vpop.f32.mrb[0].mxu0
        %v3229 = vpop.f32.mrb[0].mxu0
        %v3230 = vpop.f32.mrb[0].mxu0
        %3231 = vdwg.mxu0
        %v3232 = vmul.f32 %v3227, 0.35355338
        %v3233 = vadd.f32 %v3232, %v2959
        %v3234 = vsel %vm1321, %v3233, -inf
        %3235 = vmax.xlane.f32.xlu0 %v3234
        %v3236 = vpop.xlane.xlu0 %3235
        %v3237 = vsub.f32 %v3233, %v3236
        %v3238 = vmul.f32 %v3237, 1.442695
        %v3239 = vpow.pop %v3238
        %v3240 = vsel %vm1321, %v3239, 0.0
        %3241 = vadd.xlane.f32.xlu0 %v3240
        %v3242 = vpop.xlane.xlu0 %3241
        %v3243 = vrcp.pop %v3242
        %v3244 = vmul.f32 %v3239, %v3243
        %v3245 = vpack.c.bf16 %v3244, %v3244
        %3246 = vrot.lane.b32.xlu0 %v2961, 80
        %v3247 = vpop.permute.xlu0 %3246
        %v3249 = vsel %vm1321, %v3245, 0
        %v3252 = vsel %vm1387, %v3247, 0
        %3254 = vmatprep.subr.bf16.mxu0 0
        %3255 = vmatpush1.bf16.msra.mxu0 %v3252
        %3256 = vmatprep.subr.bf16.mxu0 0
        %3257 = vmatpush1.bf16.msra.mxu0 0
        %3258 = vmatprep.subr.bf16.mxu0 0
        %3259 = vmatpush1.bf16.msra.mxu0 0
        %3260 = vmatprep.subr.bf16.mxu0 0
        %3261 = vmatpush1.bf16.msra.mxu0 0
        %3262 = vmatprep.subr.bf16.mxu0 0
        %3263 = vmatpush1.bf16.msra.mxu0 0
        %3264 = vmatprep.subr.bf16.mxu0 0
        %3265 = vmatpush1.bf16.msra.mxu0 0
        %3266 = vmatprep.subr.bf16.mxu0 0
        %3267 = vmatpush1.bf16.msra.mxu0 0
        %3268 = vmatprep.subr.bf16.mxu0 0
        %3269 = vmatpush1.bf16.msra.mxu0 0
        %3270 = vmatprep.subr.bf16.mxu0 0
        %3271 = vmatpush1.bf16.msra.mxu0 0
        %3272 = vmatprep.subr.bf16.mxu0 0
        %3273 = vmatpush1.bf16.msra.mxu0 0
        %3274 = vmatprep.subr.bf16.mxu0 0
        %3275 = vmatpush1.bf16.msra.mxu0 0
        %3276 = vmatprep.subr.bf16.mxu0 0
        %3277 = vmatpush1.bf16.msra.mxu0 0
        %3278 = vmatprep.subr.bf16.mxu0 0
        %3279 = vmatpush1.bf16.msra.mxu0 0
        %3280 = vmatprep.subr.bf16.mxu0 0
        %3281 = vmatpush1.bf16.msra.mxu0 0
        %3282 = vmatprep.subr.bf16.mxu0 0
        %3283 = vmatpush1.bf16.msra.mxu0 0
        %3284 = vmatprep.subr.bf16.mxu0 0
        %3285 = vmatpush1.bf16.msra.mxu0 0
        %3286 = vmatprep.mubr.bf16.mxu0 0
        %3287 = vmatmul.mubr.bf16.gmra.mrb[0].mxu0 %v3249
        %v3288 = vpop.f32.mrb[0].mxu0
        %v3289 = vadd.f32 0.0, %v3288
        %v3290 = vpop.f32.mrb[0].mxu0
        %v3291 = vpop.f32.mrb[0].mxu0
        %v3292 = vpop.f32.mrb[0].mxu0
        %3293 = vdwg.mxu0
        %3294 = vrot.lane.b32.xlu0 %v2960, 104
        %v3295 = vpop.permute.xlu0 %3294
        %3296 = vrot.lane.b32.xlu0 %v2961, 104
        %v3297 = vpop.permute.xlu0 %3296
        %v3299 = vsel %vm1321, %v3295, 0
        %v3302 = vsel %vm1321, %v3297, 0
        %3304 = vmatprep.subr.bf16.mxu0 0
        %3305 = vmatpush1.bf16.xpose.msra.mxu0 %v3302
        %3306 = vmatprep.subr.bf16.mxu0 0
        %3307 = vmatpush1.bf16.xpose.msra.mxu0 0
        %3308 = vmatprep.subr.bf16.mxu0 0
        %3309 = vmatpush1.bf16.xpose.msra.mxu0 0
        %3310 = vmatprep.subr.bf16.mxu0 0
        %3311 = vmatpush1.bf16.xpose.msra.mxu0 0
        %3312 = vmatprep.subr.bf16.mxu0 0
        %3313 = vmatpush1.bf16.xpose.msra.mxu0 0
        %3314 = vmatprep.subr.bf16.mxu0 0
        %3315 = vmatpush1.bf16.xpose.msra.mxu0 0
        %3316 = vmatprep.subr.bf16.mxu0 0
        %3317 = vmatpush1.bf16.xpose.msra.mxu0 0
        %3318 = vmatprep.subr.bf16.mxu0 0
        %3319 = vmatpush1.bf16.xpose.msra.mxu0 0
        %3320 = vmatprep.subr.bf16.mxu0 0
        %3321 = vmatpush1.bf16.xpose.msra.mxu0 0
        %3322 = vmatprep.subr.bf16.mxu0 0
        %3323 = vmatpush1.bf16.xpose.msra.mxu0 0
        %3324 = vmatprep.subr.bf16.mxu0 0
        %3325 = vmatpush1.bf16.xpose.msra.mxu0 0
        %3326 = vmatprep.subr.bf16.mxu0 0
        %3327 = vmatpush1.bf16.xpose.msra.mxu0 0
        %3328 = vmatprep.subr.bf16.mxu0 0
        %3329 = vmatpush1.bf16.xpose.msra.mxu0 0
        %3330 = vmatprep.subr.bf16.mxu0 0
        %3331 = vmatpush1.bf16.xpose.msra.mxu0 0
        %3332 = vmatprep.subr.bf16.mxu0 0
        %3333 = vmatpush1.bf16.xpose.msra.mxu0 0
        %3334 = vmatprep.subr.bf16.mxu0 0
        %3335 = vmatpush1.bf16.xpose.msra.mxu0 0
        %3336 = vmatprep.mubr.bf16.mxu0 0
        %3337 = vmatmul.mubr.bf16.gmra.mrb[0].mxu0 %v3299
        %v3338 = vpop.f32.mrb[0].mxu0
        %v3339 = vadd.f32 0.0, %v3338
        %v3340 = vpop.f32.mrb[0].mxu0
        %v3341 = vpop.f32.mrb[0].mxu0
        %v3342 = vpop.f32.mrb[0].mxu0
        %3343 = vdwg.mxu0
        %v3344 = vmul.f32 %v3339, 0.35355338
        %v3345 = vadd.f32 %v3344, %v2959
        %v3346 = vsel %vm1321, %v3345, -inf
        %3347 = vmax.xlane.f32.xlu0 %v3346
        %v3348 = vpop.xlane.xlu0 %3347
        %v3349 = vsub.f32 %v3345, %v3348
        %v3350 = vmul.f32 %v3349, 1.442695
        %v3351 = vpow.pop %v3350
        %v3352 = vsel %vm1321, %v3351, 0.0
        %3353 = vadd.xlane.f32.xlu0 %v3352
        %v3354 = vpop.xlane.xlu0 %3353
        %v3355 = vrcp.pop %v3354
        %v3356 = vmul.f32 %v3351, %v3355
        %v3357 = vpack.c.bf16 %v3356, %v3356
        %3358 = vrot.lane.b32.xlu0 %v2961, 72
        %v3359 = vpop.permute.xlu0 %3358
        %v3361 = vsel %vm1321, %v3357, 0
        %v3364 = vsel %vm1387, %v3359, 0
        %3366 = vmatprep.subr.bf16.mxu0 0
        %3367 = vmatpush1.bf16.msra.mxu0 %v3364
        %3368 = vmatprep.subr.bf16.mxu0 0
        %3369 = vmatpush1.bf16.msra.mxu0 0
        %3370 = vmatprep.subr.bf16.mxu0 0
        %3371 = vmatpush1.bf16.msra.mxu0 0
        %3372 = vmatprep.subr.bf16.mxu0 0
        %3373 = vmatpush1.bf16.msra.mxu0 0
        %3374 = vmatprep.subr.bf16.mxu0 0
        %3375 = vmatpush1.bf16.msra.mxu0 0
        %3376 = vmatprep.subr.bf16.mxu0 0
        %3377 = vmatpush1.bf16.msra.mxu0 0
        %3378 = vmatprep.subr.bf16.mxu0 0
        %3379 = vmatpush1.bf16.msra.mxu0 0
        %3380 = vmatprep.subr.bf16.mxu0 0
        %3381 = vmatpush1.bf16.msra.mxu0 0
        %3382 = vmatprep.subr.bf16.mxu0 0
        %3383 = vmatpush1.bf16.msra.mxu0 0
        %3384 = vmatprep.subr.bf16.mxu0 0
        %3385 = vmatpush1.bf16.msra.mxu0 0
        %3386 = vmatprep.subr.bf16.mxu0 0
        %3387 = vmatpush1.bf16.msra.mxu0 0
        %3388 = vmatprep.subr.bf16.mxu0 0
        %3389 = vmatpush1.bf16.msra.mxu0 0
        %3390 = vmatprep.subr.bf16.mxu0 0
        %3391 = vmatpush1.bf16.msra.mxu0 0
        %3392 = vmatprep.subr.bf16.mxu0 0
        %3393 = vmatpush1.bf16.msra.mxu0 0
        %3394 = vmatprep.subr.bf16.mxu0 0
        %3395 = vmatpush1.bf16.msra.mxu0 0
        %3396 = vmatprep.subr.bf16.mxu0 0
        %3397 = vmatpush1.bf16.msra.mxu0 0
        %3398 = vmatprep.mubr.bf16.mxu0 0
        %3399 = vmatmul.mubr.bf16.gmra.mrb[0].mxu0 %v3361
        %v3400 = vpop.f32.mrb[0].mxu0
        %v3401 = vadd.f32 0.0, %v3400
        %v3402 = vpop.f32.mrb[0].mxu0
        %v3403 = vpop.f32.mrb[0].mxu0
        %v3404 = vpop.f32.mrb[0].mxu0
        %3405 = vdwg.mxu0
        %3407 = vrot.lane.b32.xlu0 %v3177, 8
        %v3408 = vpop.permute.xlu0 %3407
        %3411 = vrot.lane.b32.xlu0 %v3289, 16
        %v3412 = vpop.permute.xlu0 %3411
        %3415 = vrot.lane.b32.xlu0 %v3401, 24
        %v3416 = vpop.permute.xlu0 %3415
        %v3418 = vsel %vm1321, %v3065, %v3408
        %v3419 = vsel %vm1780, %v3418, %v3412
        %v3420 = vsel %vm1782, %v3419, %v3416
        %v3421 = vpack.c.bf16 %v3420, %v2957
        %v3422 = vld [vmem:[%s1141] sm:$0xf]
        %v3423 = vld [vmem:[%s1141 + $0x4] sm:$0xf]
        %v3424 = vld [vmem:[%s1141 + $0x8] sm:$0xf]
        %v3425 = vld [vmem:[%s1141 + $0xc] sm:$0xf]
        %v3426 = vld [vmem:[%s931] sm:$0x1]
        %v3428 = vlaneseq
        %v3429 = vshrl.u32 %v3428, 7
        %v3430 = vsub.s32 0, %v3429
        %v3431 = vrot.slane %v3426, %v3430
        %v3437 = vunpack.c.l.b16 %v3422
        %v3438 = vunpack.c.l.b16 %v3423
        %v3439 = vunpack.c.l.b16 %v3424
        %v3440 = vunpack.c.l.b16 %v3425
        %v3441 = vpack.c.b16 %v3438, %v3437
        %v3442 = vpack.c.b16 %v3440, %v3439
        %v3446 = vsel %vm1208, %v3421, 0
        %3448 = vmatprep.subr.bf16.mxu0 0
        %3449 = vmatpush1.bf16.msra.mxu0 %v3441
        %3450 = vmatprep.subr.bf16.mxu0 0
        %3451 = vmatpush1.bf16.msra.mxu0 %v3442
        %3452 = vmatprep.subr.bf16.mxu0 0
        %3453 = vmatpush1.bf16.msra.mxu0 0
        %3454 = vmatprep.subr.bf16.mxu0 0
        %3455 = vmatpush1.bf16.msra.mxu0 0
        %3456 = vmatprep.subr.bf16.mxu0 0
        %3457 = vmatpush1.bf16.msra.mxu0 0
        %3458 = vmatprep.subr.bf16.mxu0 0
        %3459 = vmatpush1.bf16.msra.mxu0 0
        %3460 = vmatprep.subr.bf16.mxu0 0
        %3461 = vmatpush1.bf16.msra.mxu0 0
        %3462 = vmatprep.subr.bf16.mxu0 0
        %3463 = vmatpush1.bf16.msra.mxu0 0
        %3464 = vmatprep.subr.bf16.mxu0 0
        %3465 = vmatpush1.bf16.msra.mxu0 0
        %3466 = vmatprep.subr.bf16.mxu0 0
        %3467 = vmatpush1.bf16.msra.mxu0 0
        %3468 = vmatprep.subr.bf16.mxu0 0
        %3469 = vmatpush1.bf16.msra.mxu0 0
        %3470 = vmatprep.subr.bf16.mxu0 0
        %3471 = vmatpush1.bf16.msra.mxu0 0
        %3472 = vmatprep.subr.bf16.mxu0 0
        %3473 = vmatpush1.bf16.msra.mxu0 0
        %3474 = vmatprep.subr.bf16.mxu0 0
        %3475 = vmatpush1.bf16.msra.mxu0 0
        %3476 = vmatprep.subr.bf16.mxu0 0
        %3477 = vmatpush1.bf16.msra.mxu0 0
        %3478 = vmatprep.subr.bf16.mxu0 0
        %3479 = vmatpush1.bf16.msra.mxu0 0
        %3480 = vmatprep.mubr.bf16.mxu0 0
        %3481 = vmatmul.mubr.bf16.gmra.mrb[0].mxu0 %v3446
        %v3482 = vpop.f32.mrb[0].mxu0
        %v3483 = vadd.f32 %v3431, %v3482
        %v3484 = vpop.f32.mrb[0].mxu0
        %v3485 = vpop.f32.mrb[0].mxu0
        %v3486 = vadd.f32 %v3431, %v3485
        %v3487 = vpop.f32.mrb[0].mxu0
        %3488 = vdwg.mxu0
        %v3489 = vadd.f32 %v2316, %v3483
        %v3490 = vadd.f32 %v2317, %v3486
        %v3491 = vsel %vm1208, %v3489, 0.0
        %3492 = vadd.xlane.f32.xlu0 %v3491
        %v3493 = vpop.xlane.xlu0 %3492
        %v3494 = vsel %vm1208, %v3490, 0.0
        %3495 = vadd.xlane.f32.xlu0 %v3494
        %v3496 = vpop.xlane.xlu0 %3495
        %v3497 = vmul.f32 %v3493, %v1215
        %v3498 = vmul.f32 %v3496, %v1215
        %v3499 = vsub.f32 %v3489, %v3497
        %v3500 = vsub.f32 %v3490, %v3498
        %v3501 = vmul.f32 %v3499, %v3499
        %v3502 = vmul.f32 %v3500, %v3500
        %v3503 = vsel %vm1208, %v3501, 0.0
        %3504 = vadd.xlane.f32.xlu0 %v3503
        %v3505 = vpop.xlane.xlu0 %3504
        %v3506 = vsel %vm1208, %v3502, 0.0
        %3507 = vadd.xlane.f32.xlu0 %v3506
        %v3508 = vpop.xlane.xlu0 %3507
        %v3509 = vmul.f32 %v3505, %v1215
        %v3510 = vmul.f32 %v3508, %v1215
        %v3511 = vadd.f32 %v3509, 1e-05
        %v3512 = vadd.f32 %v3510, 1e-05
        %v3513 = vrsqrt.pop %v3511
        %v3514 = vrsqrt.pop %v3512
        %v3515 = vmul.f32 %v3499, %v3513
        %v3516 = vmul.f32 %v3500, %v3514
        %v3517 = vlaneseq
        %v3518 = vshrl.u32 %v3517, 7
        %v3519 = vsub.s32 2, %v3518
        %v3520 = vrot.slane %v1206, %v3519
        %v3521 = vmul.f32 %v3515, %v3520
        %v3522 = vmul.f32 %v3516, %v3520
        %v3523 = vlaneseq
        %v3524 = vshrl.u32 %v3523, 7
        %v3525 = vsub.s32 2, %v3524
        %v3526 = vrot.slane %v1207, %v3525
        %v3527 = vadd.f32 %v3521, %v3526
        %v3528 = vadd.f32 %v3522, %v3526
        %v3529 = vpack.c.bf16 %v3528, %v3527
        %v3530 = vld [vmem:[%s1146] sm:$0xf]
        %v3531 = vld [vmem:[%s1146 + $0x4] sm:$0xf]
        %v3532 = vld [vmem:[%s1146 + $0x8] sm:$0xf]
        %v3533 = vld [vmem:[%s1146 + $0xc] sm:$0xf]
        %v3534 = vld [vmem:[%s939] sm:$0x1]
        %v3536 = vlaneseq
        %v3537 = vshrl.u32 %v3536, 7
        %v3538 = vsub.s32 0, %v3537
        %v3539 = vrot.slane %v3534, %v3538
        %v3545 = vunpack.c.l.b16 %v3530
        %v3546 = vunpack.c.l.b16 %v3531
        %v3547 = vunpack.c.l.b16 %v3532
        %v3548 = vunpack.c.l.b16 %v3533
        %v3549 = vpack.c.b16 %v3546, %v3545
        %v3550 = vpack.c.b16 %v3548, %v3547
        %v3554 = vsel %vm1208, %v3529, 0
        %3556 = vmatprep.subr.bf16.mxu0 0
        %3557 = vmatpush1.bf16.msra.mxu0 %v3549
        %3558 = vmatprep.subr.bf16.mxu0 0
        %3559 = vmatpush1.bf16.msra.mxu0 %v3550
        %3560 = vmatprep.subr.bf16.mxu0 0
        %3561 = vmatpush1.bf16.msra.mxu0 0
        %3562 = vmatprep.subr.bf16.mxu0 0
        %3563 = vmatpush1.bf16.msra.mxu0 0
        %3564 = vmatprep.subr.bf16.mxu0 0
        %3565 = vmatpush1.bf16.msra.mxu0 0
        %3566 = vmatprep.subr.bf16.mxu0 0
        %3567 = vmatpush1.bf16.msra.mxu0 0
        %3568 = vmatprep.subr.bf16.mxu0 0
        %3569 = vmatpush1.bf16.msra.mxu0 0
        %3570 = vmatprep.subr.bf16.mxu0 0
        %3571 = vmatpush1.bf16.msra.mxu0 0
        %3572 = vmatprep.subr.bf16.mxu0 0
        %3573 = vmatpush1.bf16.msra.mxu0 0
        %3574 = vmatprep.subr.bf16.mxu0 0
        %3575 = vmatpush1.bf16.msra.mxu0 0
        %3576 = vmatprep.subr.bf16.mxu0 0
        %3577 = vmatpush1.bf16.msra.mxu0 0
        %3578 = vmatprep.subr.bf16.mxu0 0
        %3579 = vmatpush1.bf16.msra.mxu0 0
        %3580 = vmatprep.subr.bf16.mxu0 0
        %3581 = vmatpush1.bf16.msra.mxu0 0
        %3582 = vmatprep.subr.bf16.mxu0 0
        %3583 = vmatpush1.bf16.msra.mxu0 0
        %3584 = vmatprep.subr.bf16.mxu0 0
        %3585 = vmatpush1.bf16.msra.mxu0 0
        %3586 = vmatprep.subr.bf16.mxu0 0
        %3587 = vmatpush1.bf16.msra.mxu0 0
        %3588 = vmatprep.mubr.bf16.mxu0 0
        %3589 = vmatmul.mubr.bf16.gmra.mrb[0].mxu0 %v3554
        %v3590 = vpop.f32.mrb[0].mxu0
        %v3591 = vadd.f32 %v3539, %v3590
        %v3592 = vpop.f32.mrb[0].mxu0
        %v3593 = vpop.f32.mrb[0].mxu0
        %v3594 = vadd.f32 %v3539, %v3593
        %v3595 = vpop.f32.mrb[0].mxu0
        %3596 = vdwg.mxu0
        %v3597 = vxor.u32 %v3591, 2147483648
        %v3598 = vxor.u32 %v3594, 2147483648
        %v3599 = vmul.f32 %v3597, 1.442695
        %v3600 = vpow.pop %v3599
        %v3601 = vmul.f32 %v3598, 1.442695
        %v3602 = vpow.pop %v3601
        %v3603 = vadd.f32 %v3600, 1.0
        %v3604 = vadd.f32 %v3602, 1.0
        %v3605 = vrcp.pop %v3603
        %v3606 = vmul.f32 1.0, %v3605
        %v3607 = vrcp.pop %v3604
        %v3608 = vmul.f32 1.0, %v3607
        %v3609 = vmul.f32 %v3591, %v3606
        %v3610 = vmul.f32 %v3594, %v3608
        %v3611 = vpack.c.bf16 %v3610, %v3609
        %v3612 = vld [vmem:[%s1151] sm:$0xf]
        %v3613 = vld [vmem:[%s1151 + $0x4] sm:$0xf]
        %v3614 = vld [vmem:[%s1151 + $0x8] sm:$0xf]
        %v3615 = vld [vmem:[%s1151 + $0xc] sm:$0xf]
        %v3616 = vld [vmem:[%s1151 + $0x10] sm:$0xf]
        %v3617 = vld [vmem:[%s1151 + $0x14] sm:$0xf]
        %v3618 = vld [vmem:[%s1151 + $0x18] sm:$0xf]
        %v3619 = vld [vmem:[%s1151 + $0x1c] sm:$0xf]
        %v3620 = vld [vmem:[%s1151 + $0x20] sm:$0xf]
        %v3621 = vld [vmem:[%s1151 + $0x24] sm:$0xf]
        %v3622 = vld [vmem:[%s1151 + $0x28] sm:$0xf]
        %v3623 = vld [vmem:[%s1151 + $0x2c] sm:$0xf]
        %v3624 = vld [vmem:[%s1151 + $0x30] sm:$0xf]
        %v3625 = vld [vmem:[%s1151 + $0x34] sm:$0xf]
        %v3626 = vld [vmem:[%s1151 + $0x38] sm:$0xf]
        %v3627 = vld [vmem:[%s1151 + $0x3c] sm:$0xf]
        %v3628 = vld [vmem:[%s947] sm:$0x1]
        %v3630 = vlaneseq
        %v3631 = vshrl.u32 %v3630, 7
        %v3632 = vsub.s32 0, %v3631
        %v3633 = vrot.slane %v3628, %v3632
        %v3651 = vunpack.c.l.b16 %v3612
        %v3652 = vunpack.c.l.b16 %v3613
        %v3653 = vunpack.c.l.b16 %v3614
        %v3654 = vunpack.c.l.b16 %v3615
        %v3655 = vunpack.c.l.b16 %v3616
        %v3656 = vunpack.c.l.b16 %v3617
        %v3657 = vunpack.c.l.b16 %v3618
        %v3658 = vunpack.c.l.b16 %v3619
        %v3659 = vunpack.c.l.b16 %v3620
        %v3660 = vunpack.c.l.b16 %v3621
        %v3661 = vunpack.c.l.b16 %v3622
        %v3662 = vunpack.c.l.b16 %v3623
        %v3663 = vunpack.c.l.b16 %v3624
        %v3664 = vunpack.c.l.b16 %v3625
        %v3665 = vunpack.c.l.b16 %v3626
        %v3666 = vunpack.c.l.b16 %v3627
        %v3667 = vpack.c.b16 %v3652, %v3651
        %v3668 = vpack.c.b16 %v3654, %v3653
        %v3669 = vpack.c.b16 %v3656, %v3655
        %v3670 = vpack.c.b16 %v3658, %v3657
        %v3671 = vpack.c.b16 %v3660, %v3659
        %v3672 = vpack.c.b16 %v3662, %v3661
        %v3673 = vpack.c.b16 %v3664, %v3663
        %v3674 = vpack.c.b16 %v3666, %v3665
        %3683 = vmatprep.subr.bf16.mxu0 0
        %3684 = vmatpush1.bf16.msra.mxu0 %v3667
        %3685 = vmatprep.subr.bf16.mxu0 0
        %3686 = vmatpush1.bf16.msra.mxu0 %v3668
        %3687 = vmatprep.subr.bf16.mxu0 0
        %3688 = vmatpush1.bf16.msra.mxu0 %v3669
        %3689 = vmatprep.subr.bf16.mxu0 0
        %3690 = vmatpush1.bf16.msra.mxu0 %v3670
        %3691 = vmatprep.subr.bf16.mxu0 0
        %3692 = vmatpush1.bf16.msra.mxu0 %v3671
        %3693 = vmatprep.subr.bf16.mxu0 0
        %3694 = vmatpush1.bf16.msra.mxu0 %v3672
        %3695 = vmatprep.subr.bf16.mxu0 0
        %3696 = vmatpush1.bf16.msra.mxu0 %v3673
        %3697 = vmatprep.subr.bf16.mxu0 0
        %3698 = vmatpush1.bf16.msra.mxu0 %v3674
        %3699 = vmatprep.subr.bf16.mxu0 0
        %3700 = vmatpush1.bf16.msra.mxu0 0
        %3701 = vmatprep.subr.bf16.mxu0 0
        %3702 = vmatpush1.bf16.msra.mxu0 0
        %3703 = vmatprep.subr.bf16.mxu0 0
        %3704 = vmatpush1.bf16.msra.mxu0 0
        %3705 = vmatprep.subr.bf16.mxu0 0
        %3706 = vmatpush1.bf16.msra.mxu0 0
        %3707 = vmatprep.subr.bf16.mxu0 0
        %3708 = vmatpush1.bf16.msra.mxu0 0
        %3709 = vmatprep.subr.bf16.mxu0 0
        %3710 = vmatpush1.bf16.msra.mxu0 0
        %3711 = vmatprep.subr.bf16.mxu0 0
        %3712 = vmatpush1.bf16.msra.mxu0 0
        %3713 = vmatprep.subr.bf16.mxu0 0
        %3714 = vmatpush1.bf16.msra.mxu0 0
        %3715 = vmatprep.mubr.bf16.mxu0 0
        %3716 = vmatmul.mubr.bf16.gmra.mrb[0].mxu0 %v3611
        %v3717 = vpop.f32.mrb[0].mxu0
        %v3718 = vadd.f32 %v3633, %v3717
        %v3719 = vpop.f32.mrb[0].mxu0
        %v3720 = vpop.f32.mrb[0].mxu0
        %v3721 = vadd.f32 %v3633, %v3720
        %v3722 = vpop.f32.mrb[0].mxu0
        %3723 = vdwg.mxu0
        %v3724 = vadd.f32 %v3489, %v3718
        %v3725 = vadd.f32 %v3490, %v3721
        %3726 = vst.msk [vmem:[#allocation2] sm:$0xff] %vm1208, %v3724
        %3727 = vst.msk [vmem:[#allocation2 + $0x8] sm:$0xff] %vm1208, %v3725
        %p3728 = scmp.eq.s32.totalorder %s51, 1
        // Predicated region
        $region141: #{transformer_decoder.1} parent=107 // pred_check
          %p3729 = pneg %p3728
        $region142: #{transformer_decoder.1} parent=107 // pred_check_branch
          %3731 = sbr.rel (%p3729) target = $region144
        $region143: #{transformer_decoder.1} parent=107 // pred_region
          %v3732 = vld [vmem:[%s20] sm:$0x1]
          %v3733 = vld [vmem:[%s21] sm:$0x1]
          %v3734 = vsel %vm1208, %v3724, 0.0
          %3735 = vadd.xlane.f32.xlu0 %v3734
          %v3736 = vpop.xlane.xlu0 %3735
          %v3737 = vsel %vm1208, %v3725, 0.0
          %3738 = vadd.xlane.f32.xlu0 %v3737
          %v3739 = vpop.xlane.xlu0 %3738
          %v3740 = vmul.f32 %v3736, %v1215
          %v3741 = vmul.f32 %v3739, %v1215
          %v3742 = vsub.f32 %v3724, %v3740
          %v3743 = vsub.f32 %v3725, %v3741
          %v3744 = vmul.f32 %v3742, %v3742
          %v3745 = vmul.f32 %v3743, %v3743
          %v3746 = vsel %vm1208, %v3744, 0.0
          %3747 = vadd.xlane.f32.xlu0 %v3746
          %v3748 = vpop.xlane.xlu0 %3747
          %v3749 = vsel %vm1208, %v3745, 0.0
          %3750 = vadd.xlane.f32.xlu0 %v3749
          %v3751 = vpop.xlane.xlu0 %3750
          %v3752 = vmul.f32 %v3748, %v1215
          %v3753 = vmul.f32 %v3751, %v1215
          %v3754 = vadd.f32 %v3752, 1e-05
          %v3755 = vadd.f32 %v3753, 1e-05
          %v3756 = vrsqrt.pop %v3754
          %v3757 = vrsqrt.pop %v3755
          %v3758 = vmul.f32 %v3742, %v3756
          %v3759 = vmul.f32 %v3743, %v3757
          %v3761 = vlaneseq
          %v3762 = vshrl.u32 %v3761, 7
          %v3763 = vsub.s32 0, %v3762
          %v3764 = vrot.slane %v3732, %v3763
          %v3766 = vmul.f32 %v3758, %v3764
          %v3767 = vmul.f32 %v3759, %v3764
          %v3769 = vlaneseq
          %v3770 = vshrl.u32 %v3769, 7
          %v3771 = vsub.s32 0, %v3770
          %v3772 = vrot.slane %v3733, %v3771
          %v3774 = vadd.f32 %v3766, %v3772
          %v3775 = vadd.f32 %v3767, %v3772
          %3776 = vst.msk [vmem:[#allocation17] sm:$0xff] %vm1208, %v3774
          %3777 = vst.msk [vmem:[#allocation17 + $0x8] sm:$0xff] %vm1208, %v3775
        $region144: #{transformer_decoder.1} parent=107 // pred_fallthru
          _
        // Predicated region
        $region145: #{transformer_decoder.1} parent=107 // pred_check
          %p3778 = pneg %p638
        $region146: #{transformer_decoder.1} parent=107 // pred_check_branch
          %3780 = sbr.rel (%p3778) target = $region148
        $region147: #{transformer_decoder.1} parent=107 // pred_region
          %s3781 = smul.u32 2, %s50
          %s3783 = ssub.s32 256, 256
          %3784 = vsyncadd [#allocation7], %s3783
          %s3785 = smul.addr %s3781, 128
          %s3786 = scalar_lea.hbm %s22, %s3785
          %s3787 = sshll.u32 [#allocation17], 4
          %s3788 = int_to_ptr.vmem [resolvable:$true] %s3787
          %3793 = dma.vmem_to_hbm [thread:$0]  %s3788, 256, %s3786, [#allocation7], 128, 128, 8
        $region148: #{transformer_decoder.1} parent=107 // pred_fallthru
          _
        // Predicated region
        $region149: #{transformer_decoder.1} parent=107 // pred_check
          %p3794 = pneg %p638
        $region150: #{transformer_decoder.1} parent=107 // pred_check_branch
          %3796 = sbr.rel (%p3794) target = $region152
        $region151: #{transformer_decoder.1} parent=107 // pred_region
          %3797 = dma.done [#allocation7], 256
        $region152: #{transformer_decoder.1} parent=107 // pred_fallthru
          _
      $region108: #{transformer_decoder.1} parent=5 // pred_fallthru
        _
      %p3798 = scmp.le.s32.totalorder 2, %s41
      // Predicated region
      $region153: #{transformer_decoder.1} parent=5 // pred_check
        %p3799 = pneg %p3798
      $region154: #{transformer_decoder.1} parent=5 // pred_check_branch
        %3801 = sbr.rel (%p3799) target = $region156
      $region155: #{transformer_decoder.1} parent=5 // pred_region
        %s3802 = ssub.s32 %s41, 2
      $region156: #{transformer_decoder.1} parent=5 // pred_fallthru
        _
    $region6: #{transformer_decoder.1} parent=1 // loop_footer
      %s45 = sadd.s32 1, %s41
    $region7: #{transformer_decoder.1} parent=1 // loop_footer_branch
      %40 = sbr.rel target = $region3
    $region8: #{transformer_decoder.1} parent=1 // loop_exit
      _
    %3803 = vsyncpa [#allocation6], 1
    %s3804 = scalar_lea.sflag [#allocation6], 1
    %3805 = vsyncpa %s3804, 1
    %3806 = vsyncpa [#allocation9], 1
    %s3807 = scalar_lea.sflag [#allocation9], 1
    %3808 = vsyncpa %s3807, 1
    %3809 = vsyncpa [#allocation12], 1
    %s3810 = scalar_lea.sflag [#allocation12], 1
    %3811 = vsyncpa %s3810, 1
    %3812 = vsyncpa [#allocation15], 1
    %s3813 = scalar_lea.sflag [#allocation15], 1
    %3814 = vsyncpa %s3813, 1
    %3815 = vsyncpa [#allocation7], 1
    %s3816 = scalar_lea.sflag [#allocation7], 1
    %3817 = vsyncpa %s3816, 1

</llo_original>
